<compile_context>
chip_gen: v7x
topology: tpu7x:2x2x1
jax: 0.10.0
libtpu: 0.0.40
codegen_flags: <defaults>
</compile_context>

<pallas_src>
import functools
import math

import jax
import jax.numpy as jnp
from jax.experimental import pallas as pl
from jax.experimental.pallas import tpu as pltpu

TWO_PI = 2.0 * math.pi
_VMEM_LIMIT = 32 << 20     # scoped VMEM limit, safe on v5e/v6e/v7x
_TILE_BUDGET = 12 << 20    # double-buffered block budget for lane-tile picking
_MAX_PLANES = 25           # worst case (solve2+prep): 6 in + 9 const + 10 out

# Constant-stack plane indices:  hat[p] = 1j * C[p] * w_hat  for p in 0..3
_C_VX, _C_VY, _C_GX, _C_GY = 0, 1, 2, 3
_C_G, _C_DINV, _C_FDT, _C_AFDT, _C_BFDT = 4, 5, 6, 7, 8
_N_CONST = 9


# ----------------------------- Pallas kernels --------------------------------

def _prep_kernel(wr_ref, wi_ref, c_ref, hr_ref, hi_ref):
    """Vorticity->velocity + spectral gradients:  hat[p] = 1j*C[p]*w_hat."""
    wr = wr_ref[0]                      # (Ky, tn)
    wi = wi_ref[0]
    for p in range(4):                  # static unroll over the 4 planes
        c = c_ref[p]
        hr_ref[p] = -c * wi
        hi_ref[p] = c * wr


def _solve1_prep_kernel(wr_ref, wi_ref, ar_ref, ai_ref, c_ref, hr_ref, hi_ref):
    """u1 = (w*(1+b*dt*L) + dt*filter*adv0)/(1-b*dt*L), fused with prep(u1).

    u1 is never written to HBM; only its 4 derivative planes are emitted.
    """
    cg = c_ref[_C_G]
    di = c_ref[_C_DINV]
    fdt = c_ref[_C_FDT]
    u1r = (wr_ref[0] * cg + fdt * ar_ref[0]) * di
    u1i = (wi_ref[0] * cg + fdt * ai_ref[0]) * di
    for p in range(4):
        c = c_ref[p]
        hr_ref[p] = -c * u1i
        hi_ref[p] = c * u1r


def _solve2_kernel(wr_ref, wi_ref, a0r_ref, a0i_ref, a1r_ref, a1i_ref, c_ref,
                   ur_ref, ui_ref):
    """u2 = (w*(1+b*dt*L) + dt*filt*(a*adv1 + (1-a)*adv0)) / (1-b*dt*L)."""
    cg = c_ref[_C_G]
    di = c_ref[_C_DINV]
    af = c_ref[_C_AFDT]
    bf = c_ref[_C_BFDT]
    ur_ref[0] = (wr_ref[0] * cg + af * a1r_ref[0] + bf * a0r_ref[0]) * di
    ui_ref[0] = (wi_ref[0] * cg + af * a1i_ref[0] + bf * a0i_ref[0]) * di


def _solve2_prep_kernel(wr_ref, wi_ref, a0r_ref, a0i_ref, a1r_ref, a1i_ref,
                        c_ref, ur_ref, ui_ref, hr_ref, hi_ref):
    """Same as _solve2_kernel, plus the spectral prep of u2 for the next step."""
    cg = c_ref[_C_G]
    di = c_ref[_C_DINV]
    af = c_ref[_C_AFDT]
    bf = c_ref[_C_BFDT]
    u2r = (wr_ref[0] * cg + af * a1r_ref[0] + bf * a0r_ref[0]) * di
    u2i = (wi_ref[0] * cg + af * a1i_ref[0] + bf * a0i_ref[0]) * di
    ur_ref[0] = u2r
    ui_ref[0] = u2i
    for p in range(4):
        c = c_ref[p]
        hr_ref[p] = -c * u2i
        hi_ref[p] = c * u2r


# --------------------------- pallas_call wrapper ------------------------------

def _pick_lane_tile(nx, ky, n_planes=_MAX_PLANES, budget=_TILE_BUDGET):
    """Largest lane tile (full Nx or a multiple of 128) fitting the VMEM budget."""
    def cost(t):                        # double-buffered f32 plane blocks
        return 2 * 4 * n_planes * ky * t
    tn = nx
    while cost(tn) > budget and tn % 2 == 0 and (tn // 2) % 128 == 0:
        tn //= 2
    return tn


def _ew_call(kernel, batched, consts, out_stacks, tn):
    """Run an elementwise spectral kernel on a fully parallel (B, Nx//tn) grid.

    batched:  (B, Ky, Nx) f32 arrays           -> blocks (1, Ky, tn)
    consts:   (9, Ky, Nx) f32 constant stack   -> grid-invariant blocks
    outputs:  for each s in out_stacks, a real/imag pair of (B*s, Ky, Nx) arrays.
    """
    B, Ky, Nx = batched[0].shape
    grid = (B, Nx // tn)
    bspec = pl.BlockSpec((1, Ky, tn), lambda b, j: (b, 0, j))
    cspec = pl.BlockSpec((consts.shape[0], Ky, tn), lambda b, j: (0, 0, j))
    in_specs = [bspec] * len(batched) + [cspec]
    out_shape, out_specs = [], []
    for s in out_stacks:
        spec = pl.BlockSpec((s, Ky, tn), lambda b, j: (b, 0, j))
        for _ in range(2):              # real / imag pair
            out_shape.append(jax.ShapeDtypeStruct((B * s, Ky, Nx), jnp.float32))
            out_specs.append(spec)
    return pl.pallas_call(
        kernel,
        grid=grid,
        in_specs=in_specs,
        out_specs=tuple(out_specs),
        out_shape=tuple(out_shape),
        compiler_params=pltpu.CompilerParams(
            dimension_semantics=("parallel", "parallel"),
            vmem_limit_bytes=_VMEM_LIMIT),
    )(*batched, consts)


# ------------------------------ module port ----------------------------------

def brick_wall_filter_2d(n):
    """2/3-rule brick wall filter (matches torch_cfd), natural (Nx, Ny//2+1)."""
    filt = jnp.zeros((n, n // 2 + 1), jnp.float32)
    nb = int(2.0 / 3.0 * n) // 2
    kb = int(2.0 / 3.0 * (n // 2 + 1))
    filt = filt.at[:nb, :kb].set(1.0)
    filt = filt.at[n - nb:, :kb].set(1.0)
    return filt


class NavierStokes2DSpectralPallas:
    """JAX/Pallas port of NavierStokes2DSpectral + order-2 IMEXStepper (RK2-CN)."""

    def __init__(self, viscosity, n, domain_length=2.0 * math.pi, drag=0.0,
                 smooth=True, alpha=0.5, beta=0.5):
        self.viscosity = float(viscosity)
        self.n = int(n)
        self.drag = float(drag)
        self.smooth = bool(smooth)
        self.alpha = float(alpha)       # IMEXStepper RK weight (Heun)
        self.beta = float(beta)         # Crank-Nicolson implicit weight
        # TODO(synk): forcing_fn is None in this port (no forcing term).

        step = domain_length / n
        kx1 = jnp.fft.fftfreq(n, d=step).astype(jnp.float32)
        ky1 = jnp.fft.rfftfreq(n, d=step).astype(jnp.float32)
        kx, ky = jnp.meshgrid(kx1, ky1, indexing="ij")       # (Nx, Ky) natural

        laplace = (-4.0 * math.pi ** 2) * (kx ** 2 + ky ** 2)
        # laplace[0,0] := 1 to avoid div-by-zero (matches torch_cfd mean-mode trick)
        inv_lap = 1.0 / laplace.at[0, 0].set(1.0)
        linear = self.viscosity * laplace - self.drag

        def t(a):   # natural (Nx, Ky) -> lane-dense (Ky, Nx)
            return jnp.swapaxes(a, -1, -2).astype(jnp.float32)

        # Pre-fused spectral-derivative constants:  hat[p] = 1j * C[p] * w_hat
        #   C0 -> vx_hat, C1 -> vy_hat, C2 -> grad_x_hat, C3 -> grad_y_hat
        self.cstack = jnp.stack([t(-TWO_PI * ky * inv_lap),
                                 t(TWO_PI * kx * inv_lap),
                                 t(TWO_PI * kx),
                                 t(TWO_PI * ky)], axis=0)     # (4, Ky, Nx)
        self.linear_term_t = t(linear)                        # (Ky, Nx)
        self.filter_t = t(brick_wall_filter_2d(n))            # (Ky, Nx)

    # -(grad w . v) in spectral space from the 4 stacked derivative planes.
    def _advection_hat(self, hr, hi):
        B4, Ky, Nx = hr.shape
        B = B4 // 4
        Ny = self.n
        hats = jax.lax.complex(hr, hi).reshape(B, 4, Ky, Nx)
        hats = jnp.swapaxes(hats, -1, -2)                     # (B, 4, Nx, Ky)
        # One batched inverse FFT for all 4 planes (vx, vy, grad_x, grad_y).
        fields = jnp.fft.irfft2(hats, s=(Nx, Ny))             # (B, 4, Nx, Ny)
        vx, vy, gx, gy = (fields[:, 0], fields[:, 1],
                          fields[:, 2], fields[:, 3])
        # Advection product stays in plain jnp so XLA fuses it around the FFTs.
        adv = -(gx * vx + gy * vy)                            # (B, Nx, Ny)
        adv_hat = jnp.swapaxes(jnp.fft.rfft2(adv), -1, -2)    # (B, Ky, Nx)
        return (jnp.real(adv_hat).astype(jnp.float32),
                jnp.imag(adv_hat).astype(jnp.float32))

    def forward(self, vort_hat, dt, steps=1):
        """vort_hat: (B, nx, ny//2+1) complex64. Returns (vort_hat', dvort/dt)."""
        dt = float(dt)
        squeeze = vort_hat.ndim == 2
        if squeeze:
            vort_hat = vort_hat[None]
        w = jnp.swapaxes(vort_hat, -1, -2)                    # (B, Ky, Nx)
        wr = jnp.real(w).astype(jnp.float32)
        wi = jnp.imag(w).astype(jnp.float32)
        _, Ky, Nx = wr.shape
        tn = _pick_lane_tile(Nx, Ky)

        # Host-side fused constants (dt is static for this traced call).
        beta_dt = self.beta * dt
        cg = 1.0 + beta_dt * self.linear_term_t
        di = 1.0 / (1.0 - beta_dt * self.linear_term_t)
        filt = self.filter_t if self.smooth else jnp.ones_like(self.filter_t)
        fdt = dt * filt
        consts = jnp.concatenate(
            [self.cstack,
             jnp.stack([cg, di, fdt, self.alpha * fdt,
                        (1.0 - self.alpha) * fdt], axis=0)],
            axis=0).astype(jnp.float32)                       # (9, Ky, Nx)

        wr0, wi0 = wr, wi
        hr = hi = None
        for s in range(steps):
            if s == 0:
                # prep(w) only for the first step; later steps get it fused
                # into the previous step's solve2.
                hr, hi = _ew_call(_prep_kernel, [wr, wi], consts, (4,), tn)
            a0r, a0i = self._advection_hat(hr, hi)
            h1r, h1i = _ew_call(_solve1_prep_kernel, [wr, wi, a0r, a0i],
                                consts, (4,), tn)
            a1r, a1i = self._advection_hat(h1r, h1i)
            if s + 1 < steps:
                wr, wi, hr, hi = _ew_call(
                    _solve2_prep_kernel, [wr, wi, a0r, a0i, a1r, a1i],
                    consts, (1, 4), tn)
            else:
                wr, wi = _ew_call(
                    _solve2_kernel, [wr, wi, a0r, a0i, a1r, a1i],
                    consts, (1,), tn)

        scale = 1.0 / (steps * dt)
        vort_new = jnp.swapaxes(jax.lax.complex(wr, wi), -1, -2)
        dvortdt = scale * jnp.swapaxes(jax.lax.complex(wr - wr0, wi - wi0),
                                       -1, -2)
        if squeeze:
            vort_new, dvortdt = vort_new[0], dvortdt[0]
        return vort_new.astype(jnp.complex64), dvortdt.astype(jnp.complex64)


# --------------------- pure-jnp reference (for validation) --------------------

def _reference_forward(vort_hat, dt, steps, *, viscosity, n, drag, smooth,
                       alpha, beta, domain_length=2.0 * math.pi):
    step = domain_length / n
    kx1 = jnp.fft.fftfreq(n, d=step).astype(jnp.float32)
    ky1 = jnp.fft.rfftfreq(n, d=step).astype(jnp.float32)
    kx, ky = jnp.meshgrid(kx1, ky1, indexing="ij")
    laplace = (-4.0 * math.pi ** 2) * (kx ** 2 + ky ** 2)
    linear_term = viscosity * laplace - drag
    lap_safe = laplace.at[0, 0].set(1.0)
    filt = brick_wall_filter_2d(n)

    def explicit(vh):
        psi = -vh / lap_safe
        vxh = 2j * math.pi * ky * psi
        vyh = -2j * math.pi * kx * psi
        vx = jnp.fft.irfft2(vxh, s=(n, n))
        vy = jnp.fft.irfft2(vyh, s=(n, n))
        gx = jnp.fft.irfft2(2j * math.pi * kx * vh, s=(n, n))
        gy = jnp.fft.irfft2(2j * math.pi * ky * vh, s=(n, n))
        adv_hat = jnp.fft.rfft2(-(gx * vx + gy * vy))
        return adv_hat * filt if smooth else adv_hat

    def implicit(vh):
        return linear_term * vh

    def solve(vh, ss):
        return vh / (1.0 - ss * linear_term)

    u = vort_hat
    u0 = u
    for _ in range(steps):
        g = u + beta * dt * implicit(u)
        h = explicit(u)
        u = solve(g + dt * h, beta * dt)
        h = alpha * explicit(u) + (1.0 - alpha) * h
        u = solve(g + dt * h, beta * dt)
    return u, (u - u0) / (steps * dt)


# ---------------------------------- main --------------------------------------

if __name__ == "__main__":
    B, N = 2, 16
    dt, steps = 1e-2, 2
    key = jax.random.PRNGKey(0)
    vort = jax.random.normal(key, (B, N, N), dtype=jnp.float32)
    vort_hat = jnp.fft.rfft2(vort)                            # (2, 16, 9) c64

    model = NavierStokes2DSpectralPallas(
        viscosity=1e-2, n=N, drag=0.1, smooth=True, alpha=0.5, beta=0.5)

    fwd = jax.jit(functools.partial(model.forward, dt=dt, steps=steps))
    vort_new, dvortdt = fwd(vort_hat)
    jax.block_until_ready((vort_new, dvortdt))

    assert vort_new.shape == (B, N, N // 2 + 1)
    assert dvortdt.shape == (B, N, N // 2 + 1)
    assert vort_new.dtype == jnp.complex64
    assert bool(jnp.all(jnp.isfinite(jnp.abs(vort_new))))
    assert bool(jnp.all(jnp.isfinite(jnp.abs(dvortdt))))

    # Numerical check against a pure-jnp implementation of the torch module.
    ref_new, ref_dt = _reference_forward(
        vort_hat, dt, steps, viscosity=1e-2, n=N, drag=0.1, smooth=True,
        alpha=0.5, beta=0.5)

    def rel_err(a, b):
        return float(jnp.linalg.norm(a - b) / (jnp.linalg.norm(b) + 1e-30))

    assert rel_err(vort_new, ref_new) < 1e-3, rel_err(vort_new, ref_new)
    assert rel_err(dvortdt, ref_dt) < 1e-3, rel_err(dvortdt, ref_dt)
    print("KERNEL_OK")
</pallas_src>

<mosaic_0001>
module attributes {stable_mosaic.version = 11 : i64} {
  func.func @_prep_kernel(%arg0: i32, %arg1: i32, %arg2: memref<1x9x16xf32, #tpu.memory_space<vmem>>, %arg3: memref<1x9x16xf32, #tpu.memory_space<vmem>>, %arg4: memref<9x9x16xf32, #tpu.memory_space<vmem>>, %arg5: memref<4x9x16xf32, #tpu.memory_space<vmem>>, %arg6: memref<4x9x16xf32, #tpu.memory_space<vmem>>) attributes {dimension_semantics = [#tpu.dimension_semantics<parallel>, #tpu.dimension_semantics<parallel>], iteration_bounds = array<i64: 2, 1>, scalar_prefetch = 0 : i64, scratch_operands = 0 : i64, tpu.core_type = #tpu.core_type<tc>, window_params = [{transform_indices = @transform_0, window_bounds = array<i64: 1, 9, 16>}, {transform_indices = @transform_1, window_bounds = array<i64: 1, 9, 16>}, {transform_indices = @transform_2, window_bounds = array<i64: 9, 9, 16>}, {transform_indices = @transform_3, window_bounds = array<i64: 4, 9, 16>}, {transform_indices = @transform_4, window_bounds = array<i64: 4, 9, 16>}]} {
    %c0 = arith.constant 0 : index
    %c0_0 = arith.constant 0 : index
    %c0_1 = arith.constant 0 : index
    %0 = vector.load %arg2[%c0, %c0_0, %c0_1] : memref<1x9x16xf32, #tpu.memory_space<vmem>>, vector<1x9x16xf32>
    %1 = vector.shape_cast %0 : vector<1x9x16xf32> to vector<9x16xf32>
    %c0_2 = arith.constant 0 : index
    %c0_3 = arith.constant 0 : index
    %c0_4 = arith.constant 0 : index
    %2 = vector.load %arg3[%c0_2, %c0_3, %c0_4] : memref<1x9x16xf32, #tpu.memory_space<vmem>>, vector<1x9x16xf32>
    %3 = vector.shape_cast %2 : vector<1x9x16xf32> to vector<9x16xf32>
    %c0_5 = arith.constant 0 : index
    %c0_6 = arith.constant 0 : index
    %c0_7 = arith.constant 0 : index
    %4 = vector.load %arg4[%c0_5, %c0_6, %c0_7] : memref<9x9x16xf32, #tpu.memory_space<vmem>>, vector<1x9x16xf32>
    %5 = vector.shape_cast %4 : vector<1x9x16xf32> to vector<9x16xf32>
    %cst = arith.constant 0.000000e+00 : f32
    %6 = vector.broadcast %cst : f32 to vector<9x16xf32>
    %7 = arith.subf %6, %5 : vector<9x16xf32>
    %8 = arith.mulf %7, %3 : vector<9x16xf32>
    %c0_8 = arith.constant 0 : index
    %c0_9 = arith.constant 0 : index
    %c0_10 = arith.constant 0 : index
    %9 = vector.load %arg5[%c0_8, %c0_9, %c0_10] : memref<4x9x16xf32, #tpu.memory_space<vmem>>, vector<1x9x16xf32>
    %10 = vector.shape_cast %9 : vector<1x9x16xf32> to vector<9x16xf32>
    %11 = vector.shape_cast %8 : vector<9x16xf32> to vector<1x9x16xf32>
    tpu.vector_store %arg5[%c0_8, %c0_9, %c0_10], %11 {strides = array<i32>} : memref<4x9x16xf32, #tpu.memory_space<vmem>>, vector<1x9x16xf32>,
    %12 = arith.mulf %5, %1 : vector<9x16xf32>
    %c0_11 = arith.constant 0 : index
    %c0_12 = arith.constant 0 : index
    %c0_13 = arith.constant 0 : index
    %13 = vector.load %arg6[%c0_11, %c0_12, %c0_13] : memref<4x9x16xf32, #tpu.memory_space<vmem>>, vector<1x9x16xf32>
    %14 = vector.shape_cast %13 : vector<1x9x16xf32> to vector<9x16xf32>
    %15 = vector.shape_cast %12 : vector<9x16xf32> to vector<1x9x16xf32>
    tpu.vector_store %arg6[%c0_11, %c0_12, %c0_13], %15 {strides = array<i32>} : memref<4x9x16xf32, #tpu.memory_space<vmem>>, vector<1x9x16xf32>,
    %c1 = arith.constant 1 : index
    %c0_14 = arith.constant 0 : index
    %c0_15 = arith.constant 0 : index
    %16 = vector.load %arg4[%c1, %c0_14, %c0_15] : memref<9x9x16xf32, #tpu.memory_space<vmem>>, vector<1x9x16xf32>
    %17 = vector.shape_cast %16 : vector<1x9x16xf32> to vector<9x16xf32>
    %cst_16 = arith.constant 0.000000e+00 : f32
    %18 = vector.broadcast %cst_16 : f32 to vector<9x16xf32>
    %19 = arith.subf %18, %17 : vector<9x16xf32>
    %20 = arith.mulf %19, %3 : vector<9x16xf32>
    %c1_17 = arith.constant 1 : index
    %c0_18 = arith.constant 0 : index
    %c0_19 = arith.constant 0 : index
    %21 = vector.load %arg5[%c1_17, %c0_18, %c0_19] : memref<4x9x16xf32, #tpu.memory_space<vmem>>, vector<1x9x16xf32>
    %22 = vector.shape_cast %21 : vector<1x9x16xf32> to vector<9x16xf32>
    %23 = vector.shape_cast %20 : vector<9x16xf32> to vector<1x9x16xf32>
    tpu.vector_store %arg5[%c1_17, %c0_18, %c0_19], %23 {strides = array<i32>} : memref<4x9x16xf32, #tpu.memory_space<vmem>>, vector<1x9x16xf32>,
    %24 = arith.mulf %17, %1 : vector<9x16xf32>
    %c1_20 = arith.constant 1 : index
    %c0_21 = arith.constant 0 : index
    %c0_22 = arith.constant 0 : index
    %25 = vector.load %arg6[%c1_20, %c0_21, %c0_22] : memref<4x9x16xf32, #tpu.memory_space<vmem>>, vector<1x9x16xf32>
    %26 = vector.shape_cast %25 : vector<1x9x16xf32> to vector<9x16xf32>
    %27 = vector.shape_cast %24 : vector<9x16xf32> to vector<1x9x16xf32>
    tpu.vector_store %arg6[%c1_20, %c0_21, %c0_22], %27 {strides = array<i32>} : memref<4x9x16xf32, #tpu.memory_space<vmem>>, vector<1x9x16xf32>,
    %c2 = arith.constant 2 : index
    %c0_23 = arith.constant 0 : index
    %c0_24 = arith.constant 0 : index
    %28 = vector.load %arg4[%c2, %c0_23, %c0_24] : memref<9x9x16xf32, #tpu.memory_space<vmem>>, vector<1x9x16xf32>
    %29 = vector.shape_cast %28 : vector<1x9x16xf32> to vector<9x16xf32>
    %cst_25 = arith.constant 0.000000e+00 : f32
    %30 = vector.broadcast %cst_25 : f32 to vector<9x16xf32>
    %31 = arith.subf %30, %29 : vector<9x16xf32>
    %32 = arith.mulf %31, %3 : vector<9x16xf32>
    %c2_26 = arith.constant 2 : index
    %c0_27 = arith.constant 0 : index
    %c0_28 = arith.constant 0 : index
    %33 = vector.load %arg5[%c2_26, %c0_27, %c0_28] : memref<4x9x16xf32, #tpu.memory_space<vmem>>, vector<1x9x16xf32>
    %34 = vector.shape_cast %33 : vector<1x9x16xf32> to vector<9x16xf32>
    %35 = vector.shape_cast %32 : vector<9x16xf32> to vector<1x9x16xf32>
    tpu.vector_store %arg5[%c2_26, %c0_27, %c0_28], %35 {strides = array<i32>} : memref<4x9x16xf32, #tpu.memory_space<vmem>>, vector<1x9x16xf32>,
    %36 = arith.mulf %29, %1 : vector<9x16xf32>
    %c2_29 = arith.constant 2 : index
    %c0_30 = arith.constant 0 : index
    %c0_31 = arith.constant 0 : index
    %37 = vector.load %arg6[%c2_29, %c0_30, %c0_31] : memref<4x9x16xf32, #tpu.memory_space<vmem>>, vector<1x9x16xf32>
    %38 = vector.shape_cast %37 : vector<1x9x16xf32> to vector<9x16xf32>
    %39 = vector.shape_cast %36 : vector<9x16xf32> to vector<1x9x16xf32>
    tpu.vector_store %arg6[%c2_29, %c0_30, %c0_31], %39 {strides = array<i32>} : memref<4x9x16xf32, #tpu.memory_space<vmem>>, vector<1x9x16xf32>,
    %c3 = arith.constant 3 : index
    %c0_32 = arith.constant 0 : index
    %c0_33 = arith.constant 0 : index
    %40 = vector.load %arg4[%c3, %c0_32, %c0_33] : memref<9x9x16xf32, #tpu.memory_space<vmem>>, vector<1x9x16xf32>
    %41 = vector.shape_cast %40 : vector<1x9x16xf32> to vector<9x16xf32>
    %cst_34 = arith.constant 0.000000e+00 : f32
    %42 = vector.broadcast %cst_34 : f32 to vector<9x16xf32>
    %43 = arith.subf %42, %41 : vector<9x16xf32>
    %44 = arith.mulf %43, %3 : vector<9x16xf32>
    %c3_35 = arith.constant 3 : index
    %c0_36 = arith.constant 0 : index
    %c0_37 = arith.constant 0 : index
    %45 = vector.load %arg5[%c3_35, %c0_36, %c0_37] : memref<4x9x16xf32, #tpu.memory_space<vmem>>, vector<1x9x16xf32>
    %46 = vector.shape_cast %45 : vector<1x9x16xf32> to vector<9x16xf32>
    %47 = vector.shape_cast %44 : vector<9x16xf32> to vector<1x9x16xf32>
    tpu.vector_store %arg5[%c3_35, %c0_36, %c0_37], %47 {strides = array<i32>} : memref<4x9x16xf32, #tpu.memory_space<vmem>>, vector<1x9x16xf32>,
    %48 = arith.mulf %41, %1 : vector<9x16xf32>
    %c3_38 = arith.constant 3 : index
    %c0_39 = arith.constant 0 : index
    %c0_40 = arith.constant 0 : index
    %49 = vector.load %arg6[%c3_38, %c0_39, %c0_40] : memref<4x9x16xf32, #tpu.memory_space<vmem>>, vector<1x9x16xf32>
    %50 = vector.shape_cast %49 : vector<1x9x16xf32> to vector<9x16xf32>
    %51 = vector.shape_cast %48 : vector<9x16xf32> to vector<1x9x16xf32>
    tpu.vector_store %arg6[%c3_38, %c0_39, %c0_40], %51 {strides = array<i32>} : memref<4x9x16xf32, #tpu.memory_space<vmem>>, vector<1x9x16xf32>,
    return
  }
  func.func @transform_0(%arg0: i32, %arg1: i32) -> (i32, i32, i32) {
    %c0_i32 = arith.constant 0 : i32
    %c0_i32_0 = arith.constant 0 : i32
    return %arg0, %c0_i32, %arg1 : i32, i32, i32
  }
  func.func @transform_1(%arg0: i32, %arg1: i32) -> (i32, i32, i32) {
    %c0_i32 = arith.constant 0 : i32
    %c0_i32_0 = arith.constant 0 : i32
    return %arg0, %c0_i32, %arg1 : i32, i32, i32
  }
  func.func @transform_2(%arg0: i32, %arg1: i32) -> (i32, i32, i32) {
    %c0_i32 = arith.constant 0 : i32
    %c0_i32_0 = arith.constant 0 : i32
    %c0_i32_1 = arith.constant 0 : i32
    return %c0_i32, %c0_i32_0, %arg1 : i32, i32, i32
  }
  func.func @transform_3(%arg0: i32, %arg1: i32) -> (i32, i32, i32) {
    %c0_i32 = arith.constant 0 : i32
    %c0_i32_0 = arith.constant 0 : i32
    return %arg0, %c0_i32, %arg1 : i32, i32, i32
  }
  func.func @transform_4(%arg0: i32, %arg1: i32) -> (i32, i32, i32) {
    %c0_i32 = arith.constant 0 : i32
    %c0_i32_0 = arith.constant 0 : i32
    return %arg0, %c0_i32, %arg1 : i32, i32, i32
  }
}

module attributes {stable_mosaic.version = 11 : i64} {
  func.func @_solve2_prep_kernel(%arg0: i32, %arg1: i32, %arg2: memref<1x9x16xf32, #tpu.memory_space<vmem>>, %arg3: memref<1x9x16xf32, #tpu.memory_space<vmem>>, %arg4: memref<1x9x16xf32, #tpu.memory_space<vmem>>, %arg5: memref<1x9x16xf32, #tpu.memory_space<vmem>>, %arg6: memref<1x9x16xf32, #tpu.memory_space<vmem>>, %arg7: memref<1x9x16xf32, #tpu.memory_space<vmem>>, %arg8: memref<9x9x16xf32, #tpu.memory_space<vmem>>, %arg9: memref<1x9x16xf32, #tpu.memory_space<vmem>>, %arg10: memref<1x9x16xf32, #tpu.memory_space<vmem>>, %arg11: memref<4x9x16xf32, #tpu.memory_space<vmem>>, %arg12: memref<4x9x16xf32, #tpu.memory_space<vmem>>) attributes {dimension_semantics = [#tpu.dimension_semantics<parallel>, #tpu.dimension_semantics<parallel>], iteration_bounds = array<i64: 2, 1>, scalar_prefetch = 0 : i64, scratch_operands = 0 : i64, tpu.core_type = #tpu.core_type<tc>, window_params = [{transform_indices = @transform_0, window_bounds = array<i64: 1, 9, 16>}, {transform_indices = @transform_1, window_bounds = array<i64: 1, 9, 16>}, {transform_indices = @transform_2, window_bounds = array<i64: 1, 9, 16>}, {transform_indices = @transform_3, window_bounds = array<i64: 1, 9, 16>}, {transform_indices = @transform_4, window_bounds = array<i64: 1, 9, 16>}, {transform_indices = @transform_5, window_bounds = array<i64: 1, 9, 16>}, {transform_indices = @transform_6, window_bounds = array<i64: 9, 9, 16>}, {transform_indices = @transform_7, window_bounds = array<i64: 1, 9, 16>}, {transform_indices = @transform_8, window_bounds = array<i64: 1, 9, 16>}, {transform_indices = @transform_9, window_bounds = array<i64: 4, 9, 16>}, {transform_indices = @transform_10, window_bounds = array<i64: 4, 9, 16>}]} {
    %c4 = arith.constant 4 : index
    %c0 = arith.constant 0 : index
    %c0_0 = arith.constant 0 : index
    %0 = vector.load %arg8[%c4, %c0, %c0_0] : memref<9x9x16xf32, #tpu.memory_space<vmem>>, vector<1x9x16xf32>
    %1 = vector.shape_cast %0 : vector<1x9x16xf32> to vector<9x16xf32>
    %c5 = arith.constant 5 : index
    %c0_1 = arith.constant 0 : index
    %c0_2 = arith.constant 0 : index
    %2 = vector.load %arg8[%c5, %c0_1, %c0_2] : memref<9x9x16xf32, #tpu.memory_space<vmem>>, vector<1x9x16xf32>
    %3 = vector.shape_cast %2 : vector<1x9x16xf32> to vector<9x16xf32>
    %c7 = arith.constant 7 : index
    %c0_3 = arith.constant 0 : index
    %c0_4 = arith.constant 0 : index
    %4 = vector.load %arg8[%c7, %c0_3, %c0_4] : memref<9x9x16xf32, #tpu.memory_space<vmem>>, vector<1x9x16xf32>
    %5 = vector.shape_cast %4 : vector<1x9x16xf32> to vector<9x16xf32>
    %c8 = arith.constant 8 : index
    %c0_5 = arith.constant 0 : index
    %c0_6 = arith.constant 0 : index
    %6 = vector.load %arg8[%c8, %c0_5, %c0_6] : memref<9x9x16xf32, #tpu.memory_space<vmem>>, vector<1x9x16xf32>
    %7 = vector.shape_cast %6 : vector<1x9x16xf32> to vector<9x16xf32>
    %c0_7 = arith.constant 0 : index
    %c0_8 = arith.constant 0 : index
    %c0_9 = arith.constant 0 : index
    %8 = vector.load %arg2[%c0_7, %c0_8, %c0_9] : memref<1x9x16xf32, #tpu.memory_space<vmem>>, vector<1x9x16xf32>
    %9 = vector.shape_cast %8 : vector<1x9x16xf32> to vector<9x16xf32>
    %10 = arith.mulf %9, %1 : vector<9x16xf32>
    %c0_10 = arith.constant 0 : index
    %c0_11 = arith.constant 0 : index
    %c0_12 = arith.constant 0 : index
    %11 = vector.load %arg6[%c0_10, %c0_11, %c0_12] : memref<1x9x16xf32, #tpu.memory_space<vmem>>, vector<1x9x16xf32>
    %12 = vector.shape_cast %11 : vector<1x9x16xf32> to vector<9x16xf32>
    %13 = arith.mulf %5, %12 : vector<9x16xf32>
    %14 = arith.addf %10, %13 : vector<9x16xf32>
    %c0_13 = arith.constant 0 : index
    %c0_14 = arith.constant 0 : index
    %c0_15 = arith.constant 0 : index
    %15 = vector.load %arg4[%c0_13, %c0_14, %c0_15] : memref<1x9x16xf32, #tpu.memory_space<vmem>>, vector<1x9x16xf32>
    %16 = vector.shape_cast %15 : vector<1x9x16xf32> to vector<9x16xf32>
    %17 = arith.mulf %7, %16 : vector<9x16xf32>
    %18 = arith.addf %14, %17 : vector<9x16xf32>
    %19 = arith.mulf %18, %3 : vector<9x16xf32>
    %c0_16 = arith.constant 0 : index
    %c0_17 = arith.constant 0 : index
    %c0_18 = arith.constant 0 : index
    %20 = vector.load %arg3[%c0_16, %c0_17, %c0_18] : memref<1x9x16xf32, #tpu.memory_space<vmem>>, vector<1x9x16xf32>
    %21 = vector.shape_cast %20 : vector<1x9x16xf32> to vector<9x16xf32>
    %22 = arith.mulf %21, %1 : vector<9x16xf32>
    %c0_19 = arith.constant 0 : index
    %c0_20 = arith.constant 0 : index
    %c0_21 = arith.constant 0 : index
    %23 = vector.load %arg7[%c0_19, %c0_20, %c0_21] : memref<1x9x16xf32, #tpu.memory_space<vmem>>, vector<1x9x16xf32>
    %24 = vector.shape_cast %23 : vector<1x9x16xf32> to vector<9x16xf32>
    %25 = arith.mulf %5, %24 : vector<9x16xf32>
    %26 = arith.addf %22, %25 : vector<9x16xf32>
    %c0_22 = arith.constant 0 : index
    %c0_23 = arith.constant 0 : index
    %c0_24 = arith.constant 0 : index
    %27 = vector.load %arg5[%c0_22, %c0_23, %c0_24] : memref<1x9x16xf32, #tpu.memory_space<vmem>>, vector<1x9x16xf32>
    %28 = vector.shape_cast %27 : vector<1x9x16xf32> to vector<9x16xf32>
    %29 = arith.mulf %7, %28 : vector<9x16xf32>
    %30 = arith.addf %26, %29 : vector<9x16xf32>
    %31 = arith.mulf %30, %3 : vector<9x16xf32>
    %c0_25 = arith.constant 0 : index
    %c0_26 = arith.constant 0 : index
    %c0_27 = arith.constant 0 : index
    %32 = vector.load %arg9[%c0_25, %c0_26, %c0_27] : memref<1x9x16xf32, #tpu.memory_space<vmem>>, vector<1x9x16xf32>
    %33 = vector.shape_cast %32 : vector<1x9x16xf32> to vector<9x16xf32>
    %34 = vector.shape_cast %19 : vector<9x16xf32> to vector<1x9x16xf32>
    tpu.vector_store %arg9[%c0_25, %c0_26, %c0_27], %34 {strides = array<i32>} : memref<1x9x16xf32, #tpu.memory_space<vmem>>, vector<1x9x16xf32>,
    %c0_28 = arith.constant 0 : index
    %c0_29 = arith.constant 0 : index
    %c0_30 = arith.constant 0 : index
    %35 = vector.load %arg10[%c0_28, %c0_29, %c0_30] : memref<1x9x16xf32, #tpu.memory_space<vmem>>, vector<1x9x16xf32>
    %36 = vector.shape_cast %35 : vector<1x9x16xf32> to vector<9x16xf32>
    %37 = vector.shape_cast %31 : vector<9x16xf32> to vector<1x9x16xf32>
    tpu.vector_store %arg10[%c0_28, %c0_29, %c0_30], %37 {strides = array<i32>} : memref<1x9x16xf32, #tpu.memory_space<vmem>>, vector<1x9x16xf32>,
    %c0_31 = arith.constant 0 : index
    %c0_32 = arith.constant 0 : index
    %c0_33 = arith.constant 0 : index
    %38 = vector.load %arg8[%c0_31, %c0_32, %c0_33] : memref<9x9x16xf32, #tpu.memory_space<vmem>>, vector<1x9x16xf32>
    %39 = vector.shape_cast %38 : vector<1x9x16xf32> to vector<9x16xf32>
    %cst = arith.constant 0.000000e+00 : f32
    %40 = vector.broadcast %cst : f32 to vector<9x16xf32>
    %41 = arith.subf %40, %39 : vector<9x16xf32>
    %42 = arith.mulf %41, %31 : vector<9x16xf32>
    %c0_34 = arith.constant 0 : index
    %c0_35 = arith.constant 0 : index
    %c0_36 = arith.constant 0 : index
    %43 = vector.load %arg11[%c0_34, %c0_35, %c0_36] : memref<4x9x16xf32, #tpu.memory_space<vmem>>, vector<1x9x16xf32>
    %44 = vector.shape_cast %43 : vector<1x9x16xf32> to vector<9x16xf32>
    %45 = vector.shape_cast %42 : vector<9x16xf32> to vector<1x9x16xf32>
    tpu.vector_store %arg11[%c0_34, %c0_35, %c0_36], %45 {strides = array<i32>} : memref<4x9x16xf32, #tpu.memory_space<vmem>>, vector<1x9x16xf32>,
    %46 = arith.mulf %39, %19 : vector<9x16xf32>
    %c0_37 = arith.constant 0 : index
    %c0_38 = arith.constant 0 : index
    %c0_39 = arith.constant 0 : index
    %47 = vector.load %arg12[%c0_37, %c0_38, %c0_39] : memref<4x9x16xf32, #tpu.memory_space<vmem>>, vector<1x9x16xf32>
    %48 = vector.shape_cast %47 : vector<1x9x16xf32> to vector<9x16xf32>
    %49 = vector.shape_cast %46 : vector<9x16xf32> to vector<1x9x16xf32>
    tpu.vector_store %arg12[%c0_37, %c0_38, %c0_39], %49 {strides = array<i32>} : memref<4x9x16xf32, #tpu.memory_space<vmem>>, vector<1x9x16xf32>,
    %c1 = arith.constant 1 : index
    %c0_40 = arith.constant 0 : index
    %c0_41 = arith.constant 0 : index
    %50 = vector.load %arg8[%c1, %c0_40, %c0_41] : memref<9x9x16xf32, #tpu.memory_space<vmem>>, vector<1x9x16xf32>
    %51 = vector.shape_cast %50 : vector<1x9x16xf32> to vector<9x16xf32>
    %cst_42 = arith.constant 0.000000e+00 : f32
    %52 = vector.broadcast %cst_42 : f32 to vector<9x16xf32>
    %53 = arith.subf %52, %51 : vector<9x16xf32>
    %54 = arith.mulf %53, %31 : vector<9x16xf32>
    %c1_43 = arith.constant 1 : index
    %c0_44 = arith.constant 0 : index
    %c0_45 = arith.constant 0 : index
    %55 = vector.load %arg11[%c1_43, %c0_44, %c0_45] : memref<4x9x16xf32, #tpu.memory_space<vmem>>, vector<1x9x16xf32>
    %56 = vector.shape_cast %55 : vector<1x9x16xf32> to vector<9x16xf32>
    %57 = vector.shape_cast %54 : vector<9x16xf32> to vector<1x9x16xf32>
    tpu.vector_store %arg11[%c1_43, %c0_44, %c0_45], %57 {strides = array<i32>} : memref<4x9x16xf32, #tpu.memory_space<vmem>>, vector<1x9x16xf32>,
    %58 = arith.mulf %51, %19 : vector<9x16xf32>
    %c1_46 = arith.constant 1 : index
    %c0_47 = arith.constant 0 : index
    %c0_48 = arith.constant 0 : index
    %59 = vector.load %arg12[%c1_46, %c0_47, %c0_48] : memref<4x9x16xf32, #tpu.memory_space<vmem>>, vector<1x9x16xf32>
    %60 = vector.shape_cast %59 : vector<1x9x16xf32> to vector<9x16xf32>
    %61 = vector.shape_cast %58 : vector<9x16xf32> to vector<1x9x16xf32>
    tpu.vector_store %arg12[%c1_46, %c0_47, %c0_48], %61 {strides = array<i32>} : memref<4x9x16xf32, #tpu.memory_space<vmem>>, vector<1x9x16xf32>,
    %c2 = arith.constant 2 : index
    %c0_49 = arith.constant 0 : index
    %c0_50 = arith.constant 0 : index
    %62 = vector.load %arg8[%c2, %c0_49, %c0_50] : memref<9x9x16xf32, #tpu.memory_space<vmem>>, vector<1x9x16xf32>
    %63 = vector.shape_cast %62 : vector<1x9x16xf32> to vector<9x16xf32>
    %cst_51 = arith.constant 0.000000e+00 : f32
    %64 = vector.broadcast %cst_51 : f32 to vector<9x16xf32>
    %65 = arith.subf %64, %63 : vector<9x16xf32>
    %66 = arith.mulf %65, %31 : vector<9x16xf32>
    %c2_52 = arith.constant 2 : index
    %c0_53 = arith.constant 0 : index
    %c0_54 = arith.constant 0 : index
    %67 = vector.load %arg11[%c2_52, %c0_53, %c0_54] : memref<4x9x16xf32, #tpu.memory_space<vmem>>, vector<1x9x16xf32>
    %68 = vector.shape_cast %67 : vector<1x9x16xf32> to vector<9x16xf32>
    %69 = vector.shape_cast %66 : vector<9x16xf32> to vector<1x9x16xf32>
    tpu.vector_store %arg11[%c2_52, %c0_53, %c0_54], %69 {strides = array<i32>} : memref<4x9x16xf32, #tpu.memory_space<vmem>>, vector<1x9x16xf32>,
    %70 = arith.mulf %63, %19 : vector<9x16xf32>
    %c2_55 = arith.constant 2 : index
    %c0_56 = arith.constant 0 : index
    %c0_57 = arith.constant 0 : index
    %71 = vector.load %arg12[%c2_55, %c0_56, %c0_57] : memref<4x9x16xf32, #tpu.memory_space<vmem>>, vector<1x9x16xf32>
    %72 = vector.shape_cast %71 : vector<1x9x16xf32> to vector<9x16xf32>
    %73 = vector.shape_cast %70 : vector<9x16xf32> to vector<1x9x16xf32>
    tpu.vector_store %arg12[%c2_55, %c0_56, %c0_57], %73 {strides = array<i32>} : memref<4x9x16xf32, #tpu.memory_space<vmem>>, vector<1x9x16xf32>,
    %c3 = arith.constant 3 : index
    %c0_58 = arith.constant 0 : index
    %c0_59 = arith.constant 0 : index
    %74 = vector.load %arg8[%c3, %c0_58, %c0_59] : memref<9x9x16xf32, #tpu.memory_space<vmem>>, vector<1x9x16xf32>
    %75 = vector.shape_cast %74 : vector<1x9x16xf32> to vector<9x16xf32>
    %cst_60 = arith.constant 0.000000e+00 : f32
    %76 = vector.broadcast %cst_60 : f32 to vector<9x16xf32>
    %77 = arith.subf %76, %75 : vector<9x16xf32>
    %78 = arith.mulf %77, %31 : vector<9x16xf32>
    %c3_61 = arith.constant 3 : index
    %c0_62 = arith.constant 0 : index
    %c0_63 = arith.constant 0 : index
    %79 = vector.load %arg11[%c3_61, %c0_62, %c0_63] : memref<4x9x16xf32, #tpu.memory_space<vmem>>, vector<1x9x16xf32>
    %80 = vector.shape_cast %79 : vector<1x9x16xf32> to vector<9x16xf32>
    %81 = vector.shape_cast %78 : vector<9x16xf32> to vector<1x9x16xf32>
    tpu.vector_store %arg11[%c3_61, %c0_62, %c0_63], %81 {strides = array<i32>} : memref<4x9x16xf32, #tpu.memory_space<vmem>>, vector<1x9x16xf32>,
    %82 = arith.mulf %75, %19 : vector<9x16xf32>
    %c3_64 = arith.constant 3 : index
    %c0_65 = arith.constant 0 : index
    %c0_66 = arith.constant 0 : index
    %83 = vector.load %arg12[%c3_64, %c0_65, %c0_66] : memref<4x9x16xf32, #tpu.memory_space<vmem>>, vector<1x9x16xf32>
    %84 = vector.shape_cast %83 : vector<1x9x16xf32> to vector<9x16xf32>
    %85 = vector.shape_cast %82 : vector<9x16xf32> to vector<1x9x16xf32>
    tpu.vector_store %arg12[%c3_64, %c0_65, %c0_66], %85 {strides = array<i32>} : memref<4x9x16xf32, #tpu.memory_space<vmem>>, vector<1x9x16xf32>,
    return
  }
  func.func @transform_0(%arg0: i32, %arg1: i32) -> (i32, i32, i32) {
    %c0_i32 = arith.constant 0 : i32
    %c0_i32_0 = arith.constant 0 : i32
    return %arg0, %c0_i32, %arg1 : i32, i32, i32
  }
  func.func @transform_1(%arg0: i32, %arg1: i32) -> (i32, i32, i32) {
    %c0_i32 = arith.constant 0 : i32
    %c0_i32_0 = arith.constant 0 : i32
    return %arg0, %c0_i32, %arg1 : i32, i32, i32
  }
  func.func @transform_2(%arg0: i32, %arg1: i32) -> (i32, i32, i32) {
    %c0_i32 = arith.constant 0 : i32
    %c0_i32_0 = arith.constant 0 : i32
    return %arg0, %c0_i32, %arg1 : i32, i32, i32
  }
  func.func @transform_3(%arg0: i32, %arg1: i32) -> (i32, i32, i32) {
    %c0_i32 = arith.constant 0 : i32
    %c0_i32_0 = arith.constant 0 : i32
    return %arg0, %c0_i32, %arg1 : i32, i32, i32
  }
  func.func @transform_4(%arg0: i32, %arg1: i32) -> (i32, i32, i32) {
    %c0_i32 = arith.constant 0 : i32
    %c0_i32_0 = arith.constant 0 : i32
    return %arg0, %c0_i32, %arg1 : i32, i32, i32
  }
  func.func @transform_5(%arg0: i32, %arg1: i32) -> (i32, i32, i32) {
    %c0_i32 = arith.constant 0 : i32
    %c0_i32_0 = arith.constant 0 : i32
    return %arg0, %c0_i32, %arg1 : i32, i32, i32
  }
  func.func @transform_6(%arg0: i32, %arg1: i32) -> (i32, i32, i32) {
    %c0_i32 = arith.constant 0 : i32
    %c0_i32_0 = arith.constant 0 : i32
    %c0_i32_1 = arith.constant 0 : i32
    return %c0_i32, %c0_i32_0, %arg1 : i32, i32, i32
  }
  func.func @transform_7(%arg0: i32, %arg1: i32) -> (i32, i32, i32) {
    %c0_i32 = arith.constant 0 : i32
    %c0_i32_0 = arith.constant 0 : i32
    return %arg0, %c0_i32, %arg1 : i32, i32, i32
  }
  func.func @transform_8(%arg0: i32, %arg1: i32) -> (i32, i32, i32) {
    %c0_i32 = arith.constant 0 : i32
    %c0_i32_0 = arith.constant 0 : i32
    return %arg0, %c0_i32, %arg1 : i32, i32, i32
  }
  func.func @transform_9(%arg0: i32, %arg1: i32) -> (i32, i32, i32) {
    %c0_i32 = arith.constant 0 : i32
    %c0_i32_0 = arith.constant 0 : i32
    return %arg0, %c0_i32, %arg1 : i32, i32, i32
  }
  func.func @transform_10(%arg0: i32, %arg1: i32) -> (i32, i32, i32) {
    %c0_i32 = arith.constant 0 : i32
    %c0_i32_0 = arith.constant 0 : i32
    return %arg0, %c0_i32, %arg1 : i32, i32, i32
  }
}

module attributes {stable_mosaic.version = 11 : i64} {
  func.func @_solve1_prep_kernel(%arg0: i32, %arg1: i32, %arg2: memref<1x9x16xf32, #tpu.memory_space<vmem>>, %arg3: memref<1x9x16xf32, #tpu.memory_space<vmem>>, %arg4: memref<1x9x16xf32, #tpu.memory_space<vmem>>, %arg5: memref<1x9x16xf32, #tpu.memory_space<vmem>>, %arg6: memref<9x9x16xf32, #tpu.memory_space<vmem>>, %arg7: memref<4x9x16xf32, #tpu.memory_space<vmem>>, %arg8: memref<4x9x16xf32, #tpu.memory_space<vmem>>) attributes {dimension_semantics = [#tpu.dimension_semantics<parallel>, #tpu.dimension_semantics<parallel>], iteration_bounds = array<i64: 2, 1>, scalar_prefetch = 0 : i64, scratch_operands = 0 : i64, tpu.core_type = #tpu.core_type<tc>, window_params = [{transform_indices = @transform_0, window_bounds = array<i64: 1, 9, 16>}, {transform_indices = @transform_1, window_bounds = array<i64: 1, 9, 16>}, {transform_indices = @transform_2, window_bounds = array<i64: 1, 9, 16>}, {transform_indices = @transform_3, window_bounds = array<i64: 1, 9, 16>}, {transform_indices = @transform_4, window_bounds = array<i64: 9, 9, 16>}, {transform_indices = @transform_5, window_bounds = array<i64: 4, 9, 16>}, {transform_indices = @transform_6, window_bounds = array<i64: 4, 9, 16>}]} {
    %c4 = arith.constant 4 : index
    %c0 = arith.constant 0 : index
    %c0_0 = arith.constant 0 : index
    %0 = vector.load %arg6[%c4, %c0, %c0_0] : memref<9x9x16xf32, #tpu.memory_space<vmem>>, vector<1x9x16xf32>
    %1 = vector.shape_cast %0 : vector<1x9x16xf32> to vector<9x16xf32>
    %c5 = arith.constant 5 : index
    %c0_1 = arith.constant 0 : index
    %c0_2 = arith.constant 0 : index
    %2 = vector.load %arg6[%c5, %c0_1, %c0_2] : memref<9x9x16xf32, #tpu.memory_space<vmem>>, vector<1x9x16xf32>
    %3 = vector.shape_cast %2 : vector<1x9x16xf32> to vector<9x16xf32>
    %c6 = arith.constant 6 : index
    %c0_3 = arith.constant 0 : index
    %c0_4 = arith.constant 0 : index
    %4 = vector.load %arg6[%c6, %c0_3, %c0_4] : memref<9x9x16xf32, #tpu.memory_space<vmem>>, vector<1x9x16xf32>
    %5 = vector.shape_cast %4 : vector<1x9x16xf32> to vector<9x16xf32>
    %c0_5 = arith.constant 0 : index
    %c0_6 = arith.constant 0 : index
    %c0_7 = arith.constant 0 : index
    %6 = vector.load %arg2[%c0_5, %c0_6, %c0_7] : memref<1x9x16xf32, #tpu.memory_space<vmem>>, vector<1x9x16xf32>
    %7 = vector.shape_cast %6 : vector<1x9x16xf32> to vector<9x16xf32>
    %8 = arith.mulf %7, %1 : vector<9x16xf32>
    %c0_8 = arith.constant 0 : index
    %c0_9 = arith.constant 0 : index
    %c0_10 = arith.constant 0 : index
    %9 = vector.load %arg4[%c0_8, %c0_9, %c0_10] : memref<1x9x16xf32, #tpu.memory_space<vmem>>, vector<1x9x16xf32>
    %10 = vector.shape_cast %9 : vector<1x9x16xf32> to vector<9x16xf32>
    %11 = arith.mulf %5, %10 : vector<9x16xf32>
    %12 = arith.addf %8, %11 : vector<9x16xf32>
    %13 = arith.mulf %12, %3 : vector<9x16xf32>
    %c0_11 = arith.constant 0 : index
    %c0_12 = arith.constant 0 : index
    %c0_13 = arith.constant 0 : index
    %14 = vector.load %arg3[%c0_11, %c0_12, %c0_13] : memref<1x9x16xf32, #tpu.memory_space<vmem>>, vector<1x9x16xf32>
    %15 = vector.shape_cast %14 : vector<1x9x16xf32> to vector<9x16xf32>
    %16 = arith.mulf %15, %1 : vector<9x16xf32>
    %c0_14 = arith.constant 0 : index
    %c0_15 = arith.constant 0 : index
    %c0_16 = arith.constant 0 : index
    %17 = vector.load %arg5[%c0_14, %c0_15, %c0_16] : memref<1x9x16xf32, #tpu.memory_space<vmem>>, vector<1x9x16xf32>
    %18 = vector.shape_cast %17 : vector<1x9x16xf32> to vector<9x16xf32>
    %19 = arith.mulf %5, %18 : vector<9x16xf32>
    %20 = arith.addf %16, %19 : vector<9x16xf32>
    %21 = arith.mulf %20, %3 : vector<9x16xf32>
    %c0_17 = arith.constant 0 : index
    %c0_18 = arith.constant 0 : index
    %c0_19 = arith.constant 0 : index
    %22 = vector.load %arg6[%c0_17, %c0_18, %c0_19] : memref<9x9x16xf32, #tpu.memory_space<vmem>>, vector<1x9x16xf32>
    %23 = vector.shape_cast %22 : vector<1x9x16xf32> to vector<9x16xf32>
    %cst = arith.constant 0.000000e+00 : f32
    %24 = vector.broadcast %cst : f32 to vector<9x16xf32>
    %25 = arith.subf %24, %23 : vector<9x16xf32>
    %26 = arith.mulf %25, %21 : vector<9x16xf32>
    %c0_20 = arith.constant 0 : index
    %c0_21 = arith.constant 0 : index
    %c0_22 = arith.constant 0 : index
    %27 = vector.load %arg7[%c0_20, %c0_21, %c0_22] : memref<4x9x16xf32, #tpu.memory_space<vmem>>, vector<1x9x16xf32>
    %28 = vector.shape_cast %27 : vector<1x9x16xf32> to vector<9x16xf32>
    %29 = vector.shape_cast %26 : vector<9x16xf32> to vector<1x9x16xf32>
    tpu.vector_store %arg7[%c0_20, %c0_21, %c0_22], %29 {strides = array<i32>} : memref<4x9x16xf32, #tpu.memory_space<vmem>>, vector<1x9x16xf32>,
    %30 = arith.mulf %23, %13 : vector<9x16xf32>
    %c0_23 = arith.constant 0 : index
    %c0_24 = arith.constant 0 : index
    %c0_25 = arith.constant 0 : index
    %31 = vector.load %arg8[%c0_23, %c0_24, %c0_25] : memref<4x9x16xf32, #tpu.memory_space<vmem>>, vector<1x9x16xf32>
    %32 = vector.shape_cast %31 : vector<1x9x16xf32> to vector<9x16xf32>
    %33 = vector.shape_cast %30 : vector<9x16xf32> to vector<1x9x16xf32>
    tpu.vector_store %arg8[%c0_23, %c0_24, %c0_25], %33 {strides = array<i32>} : memref<4x9x16xf32, #tpu.memory_space<vmem>>, vector<1x9x16xf32>,
    %c1 = arith.constant 1 : index
    %c0_26 = arith.constant 0 : index
    %c0_27 = arith.constant 0 : index
    %34 = vector.load %arg6[%c1, %c0_26, %c0_27] : memref<9x9x16xf32, #tpu.memory_space<vmem>>, vector<1x9x16xf32>
    %35 = vector.shape_cast %34 : vector<1x9x16xf32> to vector<9x16xf32>
    %cst_28 = arith.constant 0.000000e+00 : f32
    %36 = vector.broadcast %cst_28 : f32 to vector<9x16xf32>
    %37 = arith.subf %36, %35 : vector<9x16xf32>
    %38 = arith.mulf %37, %21 : vector<9x16xf32>
    %c1_29 = arith.constant 1 : index
    %c0_30 = arith.constant 0 : index
    %c0_31 = arith.constant 0 : index
    %39 = vector.load %arg7[%c1_29, %c0_30, %c0_31] : memref<4x9x16xf32, #tpu.memory_space<vmem>>, vector<1x9x16xf32>
    %40 = vector.shape_cast %39 : vector<1x9x16xf32> to vector<9x16xf32>
    %41 = vector.shape_cast %38 : vector<9x16xf32> to vector<1x9x16xf32>
    tpu.vector_store %arg7[%c1_29, %c0_30, %c0_31], %41 {strides = array<i32>} : memref<4x9x16xf32, #tpu.memory_space<vmem>>, vector<1x9x16xf32>,
    %42 = arith.mulf %35, %13 : vector<9x16xf32>
    %c1_32 = arith.constant 1 : index
    %c0_33 = arith.constant 0 : index
    %c0_34 = arith.constant 0 : index
    %43 = vector.load %arg8[%c1_32, %c0_33, %c0_34] : memref<4x9x16xf32, #tpu.memory_space<vmem>>, vector<1x9x16xf32>
    %44 = vector.shape_cast %43 : vector<1x9x16xf32> to vector<9x16xf32>
    %45 = vector.shape_cast %42 : vector<9x16xf32> to vector<1x9x16xf32>
    tpu.vector_store %arg8[%c1_32, %c0_33, %c0_34], %45 {strides = array<i32>} : memref<4x9x16xf32, #tpu.memory_space<vmem>>, vector<1x9x16xf32>,
    %c2 = arith.constant 2 : index
    %c0_35 = arith.constant 0 : index
    %c0_36 = arith.constant 0 : index
    %46 = vector.load %arg6[%c2, %c0_35, %c0_36] : memref<9x9x16xf32, #tpu.memory_space<vmem>>, vector<1x9x16xf32>
    %47 = vector.shape_cast %46 : vector<1x9x16xf32> to vector<9x16xf32>
    %cst_37 = arith.constant 0.000000e+00 : f32
    %48 = vector.broadcast %cst_37 : f32 to vector<9x16xf32>
    %49 = arith.subf %48, %47 : vector<9x16xf32>
    %50 = arith.mulf %49, %21 : vector<9x16xf32>
    %c2_38 = arith.constant 2 : index
    %c0_39 = arith.constant 0 : index
    %c0_40 = arith.constant 0 : index
    %51 = vector.load %arg7[%c2_38, %c0_39, %c0_40] : memref<4x9x16xf32, #tpu.memory_space<vmem>>, vector<1x9x16xf32>
    %52 = vector.shape_cast %51 : vector<1x9x16xf32> to vector<9x16xf32>
    %53 = vector.shape_cast %50 : vector<9x16xf32> to vector<1x9x16xf32>
    tpu.vector_store %arg7[%c2_38, %c0_39, %c0_40], %53 {strides = array<i32>} : memref<4x9x16xf32, #tpu.memory_space<vmem>>, vector<1x9x16xf32>,
    %54 = arith.mulf %47, %13 : vector<9x16xf32>
    %c2_41 = arith.constant 2 : index
    %c0_42 = arith.constant 0 : index
    %c0_43 = arith.constant 0 : index
    %55 = vector.load %arg8[%c2_41, %c0_42, %c0_43] : memref<4x9x16xf32, #tpu.memory_space<vmem>>, vector<1x9x16xf32>
    %56 = vector.shape_cast %55 : vector<1x9x16xf32> to vector<9x16xf32>
    %57 = vector.shape_cast %54 : vector<9x16xf32> to vector<1x9x16xf32>
    tpu.vector_store %arg8[%c2_41, %c0_42, %c0_43], %57 {strides = array<i32>} : memref<4x9x16xf32, #tpu.memory_space<vmem>>, vector<1x9x16xf32>,
    %c3 = arith.constant 3 : index
    %c0_44 = arith.constant 0 : index
    %c0_45 = arith.constant 0 : index
    %58 = vector.load %arg6[%c3, %c0_44, %c0_45] : memref<9x9x16xf32, #tpu.memory_space<vmem>>, vector<1x9x16xf32>
    %59 = vector.shape_cast %58 : vector<1x9x16xf32> to vector<9x16xf32>
    %cst_46 = arith.constant 0.000000e+00 : f32
    %60 = vector.broadcast %cst_46 : f32 to vector<9x16xf32>
    %61 = arith.subf %60, %59 : vector<9x16xf32>
    %62 = arith.mulf %61, %21 : vector<9x16xf32>
    %c3_47 = arith.constant 3 : index
    %c0_48 = arith.constant 0 : index
    %c0_49 = arith.constant 0 : index
    %63 = vector.load %arg7[%c3_47, %c0_48, %c0_49] : memref<4x9x16xf32, #tpu.memory_space<vmem>>, vector<1x9x16xf32>
    %64 = vector.shape_cast %63 : vector<1x9x16xf32> to vector<9x16xf32>
    %65 = vector.shape_cast %62 : vector<9x16xf32> to vector<1x9x16xf32>
    tpu.vector_store %arg7[%c3_47, %c0_48, %c0_49], %65 {strides = array<i32>} : memref<4x9x16xf32, #tpu.memory_space<vmem>>, vector<1x9x16xf32>,
    %66 = arith.mulf %59, %13 : vector<9x16xf32>
    %c3_50 = arith.constant 3 : index
    %c0_51 = arith.constant 0 : index
    %c0_52 = arith.constant 0 : index
    %67 = vector.load %arg8[%c3_50, %c0_51, %c0_52] : memref<4x9x16xf32, #tpu.memory_space<vmem>>, vector<1x9x16xf32>
    %68 = vector.shape_cast %67 : vector<1x9x16xf32> to vector<9x16xf32>
    %69 = vector.shape_cast %66 : vector<9x16xf32> to vector<1x9x16xf32>
    tpu.vector_store %arg8[%c3_50, %c0_51, %c0_52], %69 {strides = array<i32>} : memref<4x9x16xf32, #tpu.memory_space<vmem>>, vector<1x9x16xf32>,
    return
  }
  func.func @transform_0(%arg0: i32, %arg1: i32) -> (i32, i32, i32) {
    %c0_i32 = arith.constant 0 : i32
    %c0_i32_0 = arith.constant 0 : i32
    return %arg0, %c0_i32, %arg1 : i32, i32, i32
  }
  func.func @transform_1(%arg0: i32, %arg1: i32) -> (i32, i32, i32) {
    %c0_i32 = arith.constant 0 : i32
    %c0_i32_0 = arith.constant 0 : i32
    return %arg0, %c0_i32, %arg1 : i32, i32, i32
  }
  func.func @transform_2(%arg0: i32, %arg1: i32) -> (i32, i32, i32) {
    %c0_i32 = arith.constant 0 : i32
    %c0_i32_0 = arith.constant 0 : i32
    return %arg0, %c0_i32, %arg1 : i32, i32, i32
  }
  func.func @transform_3(%arg0: i32, %arg1: i32) -> (i32, i32, i32) {
    %c0_i32 = arith.constant 0 : i32
    %c0_i32_0 = arith.constant 0 : i32
    return %arg0, %c0_i32, %arg1 : i32, i32, i32
  }
  func.func @transform_4(%arg0: i32, %arg1: i32) -> (i32, i32, i32) {
    %c0_i32 = arith.constant 0 : i32
    %c0_i32_0 = arith.constant 0 : i32
    %c0_i32_1 = arith.constant 0 : i32
    return %c0_i32, %c0_i32_0, %arg1 : i32, i32, i32
  }
  func.func @transform_5(%arg0: i32, %arg1: i32) -> (i32, i32, i32) {
    %c0_i32 = arith.constant 0 : i32
    %c0_i32_0 = arith.constant 0 : i32
    return %arg0, %c0_i32, %arg1 : i32, i32, i32
  }
  func.func @transform_6(%arg0: i32, %arg1: i32) -> (i32, i32, i32) {
    %c0_i32 = arith.constant 0 : i32
    %c0_i32_0 = arith.constant 0 : i32
    return %arg0, %c0_i32, %arg1 : i32, i32, i32
  }
}

module attributes {stable_mosaic.version = 11 : i64} {
  func.func @_solve2_kernel(%arg0: i32, %arg1: i32, %arg2: memref<1x9x16xf32, #tpu.memory_space<vmem>>, %arg3: memref<1x9x16xf32, #tpu.memory_space<vmem>>, %arg4: memref<1x9x16xf32, #tpu.memory_space<vmem>>, %arg5: memref<1x9x16xf32, #tpu.memory_space<vmem>>, %arg6: memref<1x9x16xf32, #tpu.memory_space<vmem>>, %arg7: memref<1x9x16xf32, #tpu.memory_space<vmem>>, %arg8: memref<9x9x16xf32, #tpu.memory_space<vmem>>, %arg9: memref<1x9x16xf32, #tpu.memory_space<vmem>>, %arg10: memref<1x9x16xf32, #tpu.memory_space<vmem>>) attributes {dimension_semantics = [#tpu.dimension_semantics<parallel>, #tpu.dimension_semantics<parallel>], iteration_bounds = array<i64: 2, 1>, scalar_prefetch = 0 : i64, scratch_operands = 0 : i64, tpu.core_type = #tpu.core_type<tc>, window_params = [{transform_indices = @transform_0, window_bounds = array<i64: 1, 9, 16>}, {transform_indices = @transform_1, window_bounds = array<i64: 1, 9, 16>}, {transform_indices = @transform_2, window_bounds = array<i64: 1, 9, 16>}, {transform_indices = @transform_3, window_bounds = array<i64: 1, 9, 16>}, {transform_indices = @transform_4, window_bounds = array<i64: 1, 9, 16>}, {transform_indices = @transform_5, window_bounds = array<i64: 1, 9, 16>}, {transform_indices = @transform_6, window_bounds = array<i64: 9, 9, 16>}, {transform_indices = @transform_7, window_bounds = array<i64: 1, 9, 16>}, {transform_indices = @transform_8, window_bounds = array<i64: 1, 9, 16>}]} {
    %c4 = arith.constant 4 : index
    %c0 = arith.constant 0 : index
    %c0_0 = arith.constant 0 : index
    %0 = vector.load %arg8[%c4, %c0, %c0_0] : memref<9x9x16xf32, #tpu.memory_space<vmem>>, vector<1x9x16xf32>
    %1 = vector.shape_cast %0 : vector<1x9x16xf32> to vector<9x16xf32>
    %c5 = arith.constant 5 : index
    %c0_1 = arith.constant 0 : index
    %c0_2 = arith.constant 0 : index
    %2 = vector.load %arg8[%c5, %c0_1, %c0_2] : memref<9x9x16xf32, #tpu.memory_space<vmem>>, vector<1x9x16xf32>
    %3 = vector.shape_cast %2 : vector<1x9x16xf32> to vector<9x16xf32>
    %c7 = arith.constant 7 : index
    %c0_3 = arith.constant 0 : index
    %c0_4 = arith.constant 0 : index
    %4 = vector.load %arg8[%c7, %c0_3, %c0_4] : memref<9x9x16xf32, #tpu.memory_space<vmem>>, vector<1x9x16xf32>
    %5 = vector.shape_cast %4 : vector<1x9x16xf32> to vector<9x16xf32>
    %c8 = arith.constant 8 : index
    %c0_5 = arith.constant 0 : index
    %c0_6 = arith.constant 0 : index
    %6 = vector.load %arg8[%c8, %c0_5, %c0_6] : memref<9x9x16xf32, #tpu.memory_space<vmem>>, vector<1x9x16xf32>
    %7 = vector.shape_cast %6 : vector<1x9x16xf32> to vector<9x16xf32>
    %c0_7 = arith.constant 0 : index
    %c0_8 = arith.constant 0 : index
    %c0_9 = arith.constant 0 : index
    %8 = vector.load %arg2[%c0_7, %c0_8, %c0_9] : memref<1x9x16xf32, #tpu.memory_space<vmem>>, vector<1x9x16xf32>
    %9 = vector.shape_cast %8 : vector<1x9x16xf32> to vector<9x16xf32>
    %10 = arith.mulf %9, %1 : vector<9x16xf32>
    %c0_10 = arith.constant 0 : index
    %c0_11 = arith.constant 0 : index
    %c0_12 = arith.constant 0 : index
    %11 = vector.load %arg6[%c0_10, %c0_11, %c0_12] : memref<1x9x16xf32, #tpu.memory_space<vmem>>, vector<1x9x16xf32>
    %12 = vector.shape_cast %11 : vector<1x9x16xf32> to vector<9x16xf32>
    %13 = arith.mulf %5, %12 : vector<9x16xf32>
    %14 = arith.addf %10, %13 : vector<9x16xf32>
    %c0_13 = arith.constant 0 : index
    %c0_14 = arith.constant 0 : index
    %c0_15 = arith.constant 0 : index
    %15 = vector.load %arg4[%c0_13, %c0_14, %c0_15] : memref<1x9x16xf32, #tpu.memory_space<vmem>>, vector<1x9x16xf32>
    %16 = vector.shape_cast %15 : vector<1x9x16xf32> to vector<9x16xf32>
    %17 = arith.mulf %7, %16 : vector<9x16xf32>
    %18 = arith.addf %14, %17 : vector<9x16xf32>
    %19 = arith.mulf %18, %3 : vector<9x16xf32>
    %c0_16 = arith.constant 0 : index
    %c0_17 = arith.constant 0 : index
    %c0_18 = arith.constant 0 : index
    %20 = vector.load %arg9[%c0_16, %c0_17, %c0_18] : memref<1x9x16xf32, #tpu.memory_space<vmem>>, vector<1x9x16xf32>
    %21 = vector.shape_cast %20 : vector<1x9x16xf32> to vector<9x16xf32>
    %22 = vector.shape_cast %19 : vector<9x16xf32> to vector<1x9x16xf32>
    tpu.vector_store %arg9[%c0_16, %c0_17, %c0_18], %22 {strides = array<i32>} : memref<1x9x16xf32, #tpu.memory_space<vmem>>, vector<1x9x16xf32>,
    %c0_19 = arith.constant 0 : index
    %c0_20 = arith.constant 0 : index
    %c0_21 = arith.constant 0 : index
    %23 = vector.load %arg3[%c0_19, %c0_20, %c0_21] : memref<1x9x16xf32, #tpu.memory_space<vmem>>, vector<1x9x16xf32>
    %24 = vector.shape_cast %23 : vector<1x9x16xf32> to vector<9x16xf32>
    %25 = arith.mulf %24, %1 : vector<9x16xf32>
    %c0_22 = arith.constant 0 : index
    %c0_23 = arith.constant 0 : index
    %c0_24 = arith.constant 0 : index
    %26 = vector.load %arg7[%c0_22, %c0_23, %c0_24] : memref<1x9x16xf32, #tpu.memory_space<vmem>>, vector<1x9x16xf32>
    %27 = vector.shape_cast %26 : vector<1x9x16xf32> to vector<9x16xf32>
    %28 = arith.mulf %5, %27 : vector<9x16xf32>
    %29 = arith.addf %25, %28 : vector<9x16xf32>
    %c0_25 = arith.constant 0 : index
    %c0_26 = arith.constant 0 : index
    %c0_27 = arith.constant 0 : index
    %30 = vector.load %arg5[%c0_25, %c0_26, %c0_27] : memref<1x9x16xf32, #tpu.memory_space<vmem>>, vector<1x9x16xf32>
    %31 = vector.shape_cast %30 : vector<1x9x16xf32> to vector<9x16xf32>
    %32 = arith.mulf %7, %31 : vector<9x16xf32>
    %33 = arith.addf %29, %32 : vector<9x16xf32>
    %34 = arith.mulf %33, %3 : vector<9x16xf32>
    %c0_28 = arith.constant 0 : index
    %c0_29 = arith.constant 0 : index
    %c0_30 = arith.constant 0 : index
    %35 = vector.load %arg10[%c0_28, %c0_29, %c0_30] : memref<1x9x16xf32, #tpu.memory_space<vmem>>, vector<1x9x16xf32>
    %36 = vector.shape_cast %35 : vector<1x9x16xf32> to vector<9x16xf32>
    %37 = vector.shape_cast %34 : vector<9x16xf32> to vector<1x9x16xf32>
    tpu.vector_store %arg10[%c0_28, %c0_29, %c0_30], %37 {strides = array<i32>} : memref<1x9x16xf32, #tpu.memory_space<vmem>>, vector<1x9x16xf32>,
    return
  }
  func.func @transform_0(%arg0: i32, %arg1: i32) -> (i32, i32, i32) {
    %c0_i32 = arith.constant 0 : i32
    %c0_i32_0 = arith.constant 0 : i32
    return %arg0, %c0_i32, %arg1 : i32, i32, i32
  }
  func.func @transform_1(%arg0: i32, %arg1: i32) -> (i32, i32, i32) {
    %c0_i32 = arith.constant 0 : i32
    %c0_i32_0 = arith.constant 0 : i32
    return %arg0, %c0_i32, %arg1 : i32, i32, i32
  }
  func.func @transform_2(%arg0: i32, %arg1: i32) -> (i32, i32, i32) {
    %c0_i32 = arith.constant 0 : i32
    %c0_i32_0 = arith.constant 0 : i32
    return %arg0, %c0_i32, %arg1 : i32, i32, i32
  }
  func.func @transform_3(%arg0: i32, %arg1: i32) -> (i32, i32, i32) {
    %c0_i32 = arith.constant 0 : i32
    %c0_i32_0 = arith.constant 0 : i32
    return %arg0, %c0_i32, %arg1 : i32, i32, i32
  }
  func.func @transform_4(%arg0: i32, %arg1: i32) -> (i32, i32, i32) {
    %c0_i32 = arith.constant 0 : i32
    %c0_i32_0 = arith.constant 0 : i32
    return %arg0, %c0_i32, %arg1 : i32, i32, i32
  }
  func.func @transform_5(%arg0: i32, %arg1: i32) -> (i32, i32, i32) {
    %c0_i32 = arith.constant 0 : i32
    %c0_i32_0 = arith.constant 0 : i32
    return %arg0, %c0_i32, %arg1 : i32, i32, i32
  }
  func.func @transform_6(%arg0: i32, %arg1: i32) -> (i32, i32, i32) {
    %c0_i32 = arith.constant 0 : i32
    %c0_i32_0 = arith.constant 0 : i32
    %c0_i32_1 = arith.constant 0 : i32
    return %c0_i32, %c0_i32_0, %arg1 : i32, i32, i32
  }
  func.func @transform_7(%arg0: i32, %arg1: i32) -> (i32, i32, i32) {
    %c0_i32 = arith.constant 0 : i32
    %c0_i32_0 = arith.constant 0 : i32
    return %arg0, %c0_i32, %arg1 : i32, i32, i32
  }
  func.func @transform_8(%arg0: i32, %arg1: i32) -> (i32, i32, i32) {
    %c0_i32 = arith.constant 0 : i32
    %c0_i32_0 = arith.constant 0 : i32
    return %arg0, %c0_i32, %arg1 : i32, i32, i32
  }
}

</mosaic_0001>

<llo_original>
// kernel: custom-call
$region0: #{custom-call}
  %s0 = inlined_call_operand.vmem [shape: c64[2,16,9], index: 0, kind: input, shape index: {}]
  %s1 = inlined_call_operand.vmem [shape: f32[2,16,9], index: 1, kind: output, shape index: {}]
  %v2 = vld [vmem:[%s0] sm:$0xff]
  %3 = vst [vmem:[%s1] sm:$0xff] %v2
  %s4 = scalar_lea.vmem %s1, 8
  %s5 = scalar_lea.vmem %s0, 8
  %v6 = vld [vmem:[%s5] sm:$0xff]
  %7 = vst [vmem:[%s4] sm:$0xff] %v6
  %s8 = scalar_lea.vmem %s1, 16
  %s9 = scalar_lea.vmem %s0, 16
  %v10 = vld [vmem:[%s9] sm:$0xff]
  %11 = vst [vmem:[%s8] sm:$0xff] %v10
  %s12 = scalar_lea.vmem %s1, 24
  %s13 = scalar_lea.vmem %s0, 24
  %v14 = vld [vmem:[%s13] sm:$0xff]
  %15 = vst [vmem:[%s12] sm:$0xff] %v14

// kernel: custom-call.1
$region0: #{custom-call.1}
  %s0 = inlined_call_operand.vmem [shape: c64[2,16,9], index: 0, kind: input, shape index: {}]
  %s1 = inlined_call_operand.vmem [shape: f32[2,16,9], index: 1, kind: output, shape index: {}]
  %s2 = scalar_lea.vmem %s0, 32
  %v3 = vld [vmem:[%s2] sm:$0xff]
  %4 = vst [vmem:[%s1] sm:$0xff] %v3
  %s5 = scalar_lea.vmem %s1, 8
  %s6 = scalar_lea.vmem %s2, 8
  %v7 = vld [vmem:[%s6] sm:$0xff]
  %8 = vst [vmem:[%s5] sm:$0xff] %v7
  %s9 = scalar_lea.vmem %s1, 16
  %s10 = scalar_lea.vmem %s2, 16
  %v11 = vld [vmem:[%s10] sm:$0xff]
  %12 = vst [vmem:[%s9] sm:$0xff] %v11
  %s13 = scalar_lea.vmem %s1, 24
  %s14 = scalar_lea.vmem %s2, 24
  %v15 = vld [vmem:[%s14] sm:$0xff]
  %16 = vst [vmem:[%s13] sm:$0xff] %v15

// kernel: reverse.8
$region0: #{reverse.8}
  %s0 = inlined_call_operand.vmem [shape: f32[2,4,16,7], index: 0, kind: input, shape index: {}]
  %s1 = inlined_call_operand.vmem [shape: f32[2,4,16,7], index: 1, kind: output, shape index: {}]
  $region1: #{reverse.8} parent=0
    #allocation0 [shape = 'u8[65536]{0}', space=vmem, size = 0x10000, scoped, tag = 'operand span for operand 0']
    #allocation1 [shape = 'u8[32768]{0}', space=vmem, size = 0x8000, scoped, tag = 'operand span for operand 1']
    %s2 = scalar_lea.vmem [#allocation0], 8
    // Predicated region
    $region2: #{reverse.8} parent=1 // pred_check
      _
    $region3: #{reverse.8} parent=1 // pred_check_branch
      %4 = sbr.rel (0) target = $region5
    $region4: #{reverse.8} parent=1 // pred_region
      // Predicated region
      $region6: #{reverse.8} parent=4 // pred_check
        _
      $region7: #{reverse.8} parent=4 // pred_check_branch
        %6 = sbr.rel (0) target = $region9
      $region8: #{reverse.8} parent=4 // pred_region
        // Predicated region
        $region21: #{reverse.8} parent=8 // pred_check
          _
        $region22: #{reverse.8} parent=8 // pred_check_branch
          %35 = sbr.rel (0) target = $region24
        $region23: #{reverse.8} parent=8 // pred_region
          loop: start=0, step=1, limit=1
          $region25: #{reverse.8} parent=23 // loop_pre_header
            _
          $region26: #{reverse.8} parent=23 // loop_header
            %s37 = sphi 0, %s41
            %p38 = scmp.ge.s32.totalorder %s37, 1
            %s42 = sphi %s0, %s0
            %s43 = sphi %s2, %s2
          $region27: #{reverse.8} parent=23 // loop_header_branch
            %40 = sbr.rel (%p38) target = $region31
          $region28: #{reverse.8} parent=23 // loop_body
            %v44 = vld [vmem:[%s42] sm:$0xff]
            %45 = vst [vmem:[%s43] sm:$0xff] %v44
            %v46 = vld [vmem:[%s42 + $0x8] sm:$0xff]
            %47 = vst [vmem:[%s43 + $0x10] sm:$0xff] %v46
            %v48 = vld [vmem:[%s42 + $0x10] sm:$0xff]
            %49 = vst [vmem:[%s43 + $0x20] sm:$0xff] %v48
            %v50 = vld [vmem:[%s42 + $0x18] sm:$0xff]
            %51 = vst [vmem:[%s43 + $0x30] sm:$0xff] %v50
            %v52 = vld [vmem:[%s42 + $0x20] sm:$0xff]
            %53 = vst [vmem:[%s43 + $0x40] sm:$0xff] %v52
            %v54 = vld [vmem:[%s42 + $0x28] sm:$0xff]
            %55 = vst [vmem:[%s43 + $0x50] sm:$0xff] %v54
            %v56 = vld [vmem:[%s42 + $0x30] sm:$0xff]
            %57 = vst [vmem:[%s43 + $0x60] sm:$0xff] %v56
            %v58 = vld [vmem:[%s42 + $0x38] sm:$0xff]
            %59 = vst [vmem:[%s43 + $0x70] sm:$0xff] %v58
          $region29: #{reverse.8} parent=23 // loop_footer
            %s41 = sadd.s32 1, %s37
          $region30: #{reverse.8} parent=23 // loop_footer_branch
            %36 = sbr.rel target = $region26
          $region31: #{reverse.8} parent=23 // loop_exit
            _
        $region24: #{reverse.8} parent=8 // pred_fallthru
          _
        // Predicated region
        $region32: #{reverse.8} parent=8 // pred_check
          _
        $region33: #{reverse.8} parent=8 // pred_check_branch
          %61 = sbr.rel target = $region35
        $region34: #{reverse.8} parent=8 // pred_region
          _
        $region35: #{reverse.8} parent=8 // pred_fallthru
          _
      $region9: #{reverse.8} parent=4 // pred_fallthru
        _
      // Predicated region
      $region10: #{reverse.8} parent=4 // pred_check
        _
      $region11: #{reverse.8} parent=4 // pred_check_branch
        %8 = sbr.rel target = $region13
      $region12: #{reverse.8} parent=4 // pred_region
        loop: start=0, step=1, limit=1
        $region14: #{reverse.8} parent=12 // loop_pre_header
          _
        $region15: #{reverse.8} parent=12 // loop_header
          %s11 = sphi 0, %s15
          %p12 = scmp.ge.s32.totalorder %s11, 1
          %s16 = sphi %s0, %s0
          %s17 = sphi %s2, %s2
        $region16: #{reverse.8} parent=12 // loop_header_branch
          %14 = sbr.rel (%p12) target = $region20
        $region17: #{reverse.8} parent=12 // loop_body
          %v18 = vld [vmem:[%s16] sm:$0xff]
          %19 = vst [vmem:[%s17] sm:$0xff] %v18
          %v20 = vld [vmem:[%s16 + $0x8] sm:$0xff]
          %21 = vst [vmem:[%s17 + $0x10] sm:$0xff] %v20
          %v22 = vld [vmem:[%s16 + $0x10] sm:$0xff]
          %23 = vst [vmem:[%s17 + $0x20] sm:$0xff] %v22
          %v24 = vld [vmem:[%s16 + $0x18] sm:$0xff]
          %25 = vst [vmem:[%s17 + $0x30] sm:$0xff] %v24
          %v26 = vld [vmem:[%s16 + $0x20] sm:$0xff]
          %27 = vst [vmem:[%s17 + $0x40] sm:$0xff] %v26
          %v28 = vld [vmem:[%s16 + $0x28] sm:$0xff]
          %29 = vst [vmem:[%s17 + $0x50] sm:$0xff] %v28
          %v30 = vld [vmem:[%s16 + $0x30] sm:$0xff]
          %31 = vst [vmem:[%s17 + $0x60] sm:$0xff] %v30
          %v32 = vld [vmem:[%s16 + $0x38] sm:$0xff]
          %33 = vst [vmem:[%s17 + $0x70] sm:$0xff] %v32
        $region18: #{reverse.8} parent=12 // loop_footer
          %s15 = sadd.s32 1, %s11
        $region19: #{reverse.8} parent=12 // loop_footer_branch
          %10 = sbr.rel target = $region15
        $region20: #{reverse.8} parent=12 // loop_exit
          _
      $region13: #{reverse.8} parent=4 // pred_fallthru
        _
    $region5: #{reverse.8} parent=1 // pred_fallthru
      _
    %62 = vnop
    %s63 = scalar_lea.vmem [#allocation0], 7
    %v64 = vld [vmem:[%s63] ss:$-1 sm:$0xff]
    %v65 = vrot.slane %v64, 1
    %66 = vst [vmem:[#allocation1] sm:$0xff] %v65
    %s67 = scalar_lea.vmem [#allocation0], 8
    %s68 = scalar_lea.vmem %s67, 7 [#allocation0]
    %v69 = vld [vmem:[%s68] ss:$-1 sm:$0xff]
    %v70 = vrot.slane %v69, 1
    %v71 = vlaneseq
    %v72 = vshrl.u32 %v71, 7
    %vm73 = vcmp.lt.s32.totalorder %v72, 7
    %74 = vst.msk [vmem:[#allocation1] sm:$0xff] %vm73, %v70
    %s75 = scalar_lea.vmem [#allocation1], 8
    %s76 = scalar_lea.vmem [#allocation0], 16
    %s77 = scalar_lea.vmem %s76, 7 [#allocation0]
    %v78 = vld [vmem:[%s77] ss:$-1 sm:$0xff]
    %v79 = vrot.slane %v78, 1
    %80 = vst [vmem:[%s75] sm:$0xff] %v79
    %s81 = scalar_lea.vmem %s76, 8 [#allocation0]
    %s82 = scalar_lea.vmem %s81, 7 [#allocation0]
    %v83 = vld [vmem:[%s82] ss:$-1 sm:$0xff]
    %v84 = vrot.slane %v83, 1
    %v85 = vlaneseq
    %v86 = vshrl.u32 %v85, 7
    %vm87 = vcmp.lt.s32.totalorder %v86, 7
    %88 = vst.msk [vmem:[%s75] sm:$0xff] %vm87, %v84
    %s89 = scalar_lea.vmem [#allocation1], 16
    %s90 = scalar_lea.vmem [#allocation0], 32
    %s91 = scalar_lea.vmem %s90, 7 [#allocation0]
    %v92 = vld [vmem:[%s91] ss:$-1 sm:$0xff]
    %v93 = vrot.slane %v92, 1
    %94 = vst [vmem:[%s89] sm:$0xff] %v93
    %s95 = scalar_lea.vmem %s90, 8 [#allocation0]
    %s96 = scalar_lea.vmem %s95, 7 [#allocation0]
    %v97 = vld [vmem:[%s96] ss:$-1 sm:$0xff]
    %v98 = vrot.slane %v97, 1
    %v99 = vlaneseq
    %v100 = vshrl.u32 %v99, 7
    %vm101 = vcmp.lt.s32.totalorder %v100, 7
    %102 = vst.msk [vmem:[%s89] sm:$0xff] %vm101, %v98
    %s103 = scalar_lea.vmem [#allocation1], 24
    %s104 = scalar_lea.vmem [#allocation0], 48
    %s105 = scalar_lea.vmem %s104, 7 [#allocation0]
    %v106 = vld [vmem:[%s105] ss:$-1 sm:$0xff]
    %v107 = vrot.slane %v106, 1
    %108 = vst [vmem:[%s103] sm:$0xff] %v107
    %s109 = scalar_lea.vmem %s104, 8 [#allocation0]
    %s110 = scalar_lea.vmem %s109, 7 [#allocation0]
    %v111 = vld [vmem:[%s110] ss:$-1 sm:$0xff]
    %v112 = vrot.slane %v111, 1
    %v113 = vlaneseq
    %v114 = vshrl.u32 %v113, 7
    %vm115 = vcmp.lt.s32.totalorder %v114, 7
    %116 = vst.msk [vmem:[%s103] sm:$0xff] %vm115, %v112
    %s117 = scalar_lea.vmem [#allocation1], 32
    %s118 = scalar_lea.vmem [#allocation0], 64
    %s119 = scalar_lea.vmem %s118, 7 [#allocation0]
    %v120 = vld [vmem:[%s119] ss:$-1 sm:$0xff]
    %v121 = vrot.slane %v120, 1
    %122 = vst [vmem:[%s117] sm:$0xff] %v121
    %s123 = scalar_lea.vmem %s118, 8 [#allocation0]
    %s124 = scalar_lea.vmem %s123, 7 [#allocation0]
    %v125 = vld [vmem:[%s124] ss:$-1 sm:$0xff]
    %v126 = vrot.slane %v125, 1
    %v127 = vlaneseq
    %v128 = vshrl.u32 %v127, 7
    %vm129 = vcmp.lt.s32.totalorder %v128, 7
    %130 = vst.msk [vmem:[%s117] sm:$0xff] %vm129, %v126
    %s131 = scalar_lea.vmem [#allocation1], 40
    %s132 = scalar_lea.vmem [#allocation0], 80
    %s133 = scalar_lea.vmem %s132, 7 [#allocation0]
    %v134 = vld [vmem:[%s133] ss:$-1 sm:$0xff]
    %v135 = vrot.slane %v134, 1
    %136 = vst [vmem:[%s131] sm:$0xff] %v135
    %s137 = scalar_lea.vmem %s132, 8 [#allocation0]
    %s138 = scalar_lea.vmem %s137, 7 [#allocation0]
    %v139 = vld [vmem:[%s138] ss:$-1 sm:$0xff]
    %v140 = vrot.slane %v139, 1
    %v141 = vlaneseq
    %v142 = vshrl.u32 %v141, 7
    %vm143 = vcmp.lt.s32.totalorder %v142, 7
    %144 = vst.msk [vmem:[%s131] sm:$0xff] %vm143, %v140
    %s145 = scalar_lea.vmem [#allocation1], 48
    %s146 = scalar_lea.vmem [#allocation0], 96
    %s147 = scalar_lea.vmem %s146, 7 [#allocation0]
    %v148 = vld [vmem:[%s147] ss:$-1 sm:$0xff]
    %v149 = vrot.slane %v148, 1
    %150 = vst [vmem:[%s145] sm:$0xff] %v149
    %s151 = scalar_lea.vmem %s146, 8 [#allocation0]
    %s152 = scalar_lea.vmem %s151, 7 [#allocation0]
    %v153 = vld [vmem:[%s152] ss:$-1 sm:$0xff]
    %v154 = vrot.slane %v153, 1
    %v155 = vlaneseq
    %v156 = vshrl.u32 %v155, 7
    %vm157 = vcmp.lt.s32.totalorder %v156, 7
    %158 = vst.msk [vmem:[%s145] sm:$0xff] %vm157, %v154
    %s159 = scalar_lea.vmem [#allocation1], 56
    %s160 = scalar_lea.vmem [#allocation0], 112
    %s161 = scalar_lea.vmem %s160, 7 [#allocation0]
    %v162 = vld [vmem:[%s161] ss:$-1 sm:$0xff]
    %v163 = vrot.slane %v162, 1
    %164 = vst [vmem:[%s159] sm:$0xff] %v163
    %s165 = scalar_lea.vmem %s160, 8 [#allocation0]
    %s166 = scalar_lea.vmem %s165, 7 [#allocation0]
    %v167 = vld [vmem:[%s166] ss:$-1 sm:$0xff]
    %v168 = vrot.slane %v167, 1
    %v169 = vlaneseq
    %v170 = vshrl.u32 %v169, 7
    %vm171 = vcmp.lt.s32.totalorder %v170, 7
    %172 = vst.msk [vmem:[%s159] sm:$0xff] %vm171, %v168
    // Predicated region
    $region36: #{reverse.8} parent=1 // pred_check
      _
    $region37: #{reverse.8} parent=1 // pred_check_branch
      %174 = sbr.rel (0) target = $region39
    $region38: #{reverse.8} parent=1 // pred_region
      // Predicated region
      $region40: #{reverse.8} parent=38 // pred_check
        _
      $region41: #{reverse.8} parent=38 // pred_check_branch
        %176 = sbr.rel (0) target = $region43
      $region42: #{reverse.8} parent=38 // pred_region
        // Predicated region
        $region55: #{reverse.8} parent=42 // pred_check
          _
        $region56: #{reverse.8} parent=42 // pred_check_branch
          %205 = sbr.rel (0) target = $region58
        $region57: #{reverse.8} parent=42 // pred_region
          loop: start=0, step=1, limit=1
          $region59: #{reverse.8} parent=57 // loop_pre_header
            _
          $region60: #{reverse.8} parent=57 // loop_header
            %s207 = sphi 0, %s211
            %p208 = scmp.ge.s32.totalorder %s207, 1
            %s212 = sphi [#allocation1], [#allocation1]
            %s213 = sphi %s1, %s1
          $region61: #{reverse.8} parent=57 // loop_header_branch
            %210 = sbr.rel (%p208) target = $region65
          $region62: #{reverse.8} parent=57 // loop_body
            %v214 = vld [vmem:[%s212] sm:$0xff]
            %215 = vst [vmem:[%s213] sm:$0xff] %v214
            %v216 = vld [vmem:[%s212 + $0x8] sm:$0xff]
            %217 = vst [vmem:[%s213 + $0x8] sm:$0xff] %v216
            %v218 = vld [vmem:[%s212 + $0x10] sm:$0xff]
            %219 = vst [vmem:[%s213 + $0x10] sm:$0xff] %v218
            %v220 = vld [vmem:[%s212 + $0x18] sm:$0xff]
            %221 = vst [vmem:[%s213 + $0x18] sm:$0xff] %v220
            %v222 = vld [vmem:[%s212 + $0x20] sm:$0xff]
            %223 = vst [vmem:[%s213 + $0x20] sm:$0xff] %v222
            %v224 = vld [vmem:[%s212 + $0x28] sm:$0xff]
            %225 = vst [vmem:[%s213 + $0x28] sm:$0xff] %v224
            %v226 = vld [vmem:[%s212 + $0x30] sm:$0xff]
            %227 = vst [vmem:[%s213 + $0x30] sm:$0xff] %v226
            %v228 = vld [vmem:[%s212 + $0x38] sm:$0xff]
            %229 = vst [vmem:[%s213 + $0x38] sm:$0xff] %v228
          $region63: #{reverse.8} parent=57 // loop_footer
            %s211 = sadd.s32 1, %s207
          $region64: #{reverse.8} parent=57 // loop_footer_branch
            %206 = sbr.rel target = $region60
          $region65: #{reverse.8} parent=57 // loop_exit
            _
        $region58: #{reverse.8} parent=42 // pred_fallthru
          _
        // Predicated region
        $region66: #{reverse.8} parent=42 // pred_check
          _
        $region67: #{reverse.8} parent=42 // pred_check_branch
          %231 = sbr.rel target = $region69
        $region68: #{reverse.8} parent=42 // pred_region
          _
        $region69: #{reverse.8} parent=42 // pred_fallthru
          _
      $region43: #{reverse.8} parent=38 // pred_fallthru
        _
      // Predicated region
      $region44: #{reverse.8} parent=38 // pred_check
        _
      $region45: #{reverse.8} parent=38 // pred_check_branch
        %178 = sbr.rel target = $region47
      $region46: #{reverse.8} parent=38 // pred_region
        loop: start=0, step=1, limit=1
        $region48: #{reverse.8} parent=46 // loop_pre_header
          _
        $region49: #{reverse.8} parent=46 // loop_header
          %s181 = sphi 0, %s185
          %p182 = scmp.ge.s32.totalorder %s181, 1
          %s186 = sphi [#allocation1], [#allocation1]
          %s187 = sphi %s1, %s1
        $region50: #{reverse.8} parent=46 // loop_header_branch
          %184 = sbr.rel (%p182) target = $region54
        $region51: #{reverse.8} parent=46 // loop_body
          %v188 = vld [vmem:[%s186] sm:$0xff]
          %189 = vst [vmem:[%s187] sm:$0xff] %v188
          %v190 = vld [vmem:[%s186 + $0x8] sm:$0xff]
          %191 = vst [vmem:[%s187 + $0x8] sm:$0xff] %v190
          %v192 = vld [vmem:[%s186 + $0x10] sm:$0xff]
          %193 = vst [vmem:[%s187 + $0x10] sm:$0xff] %v192
          %v194 = vld [vmem:[%s186 + $0x18] sm:$0xff]
          %195 = vst [vmem:[%s187 + $0x18] sm:$0xff] %v194
          %v196 = vld [vmem:[%s186 + $0x20] sm:$0xff]
          %197 = vst [vmem:[%s187 + $0x20] sm:$0xff] %v196
          %v198 = vld [vmem:[%s186 + $0x28] sm:$0xff]
          %199 = vst [vmem:[%s187 + $0x28] sm:$0xff] %v198
          %v200 = vld [vmem:[%s186 + $0x30] sm:$0xff]
          %201 = vst [vmem:[%s187 + $0x30] sm:$0xff] %v200
          %v202 = vld [vmem:[%s186 + $0x38] sm:$0xff]
          %203 = vst [vmem:[%s187 + $0x38] sm:$0xff] %v202
        $region52: #{reverse.8} parent=46 // loop_footer
          %s185 = sadd.s32 1, %s181
        $region53: #{reverse.8} parent=46 // loop_footer_branch
          %180 = sbr.rel target = $region49
        $region54: #{reverse.8} parent=46 // loop_exit
          _
      $region47: #{reverse.8} parent=38 // pred_fallthru
        _
    $region39: #{reverse.8} parent=1 // pred_fallthru
      _
    %232 = vnop

// kernel: forward.5
$region0: #{forward.5}
  #allocation0 [shape = 'u32[]', space=smem, size = 0x4, offset = 0x4, fixed_abs, tag = 'smem constant byte address 0x4 - core index']
  #allocation1 [shape = 'u32[144,128]{1,0:T(1,128)}', space=vmem, size = 0x12000, scoped, tag = 'internal scratch']
  %s0 = inlined_call_operand.vmem [shape: f32[2,9,16], index: 0, kind: input, shape index: {}]
  %s1 = inlined_call_operand.vmem [shape: f32[2,9,16], index: 1, kind: input, shape index: {}]
  %s2 = inlined_call_operand.vmem [shape: f32[9,9,16], index: 2, kind: input, shape index: {}]
  %s3 = inlined_call_operand.vmem [shape: f32[8,9,16], index: 3, kind: output, shape index: {0}]
  %s4 = inlined_call_operand.vmem [shape: f32[8,9,16], index: 4, kind: output, shape index: {1}]
  %5 = xla_tuple %s3, %s4
  %s6 = sld [smem:[#allocation0]]
  $region53: #{forward.5} parent=0
    _
  %s8 = ssub.s32 1, %s6
  %s9 = scalar_select 0, %s8, %s6
  loop: start=0, step=1, limit=4
  $region2: #{forward.5} parent=0 // loop_pre_header
    _
  $region3: #{forward.5} parent=0 // loop_header
    %s11 = sphi 0, %s15
    %p12 = scmp.ge.s32.totalorder %s11, 4
    %s18 = sphi 0, %s30
    %s19 = sphi 0, %s26
    %s20 = sphi 0, %s18
    %s21 = sphi 0, %s19
    %s22 = sphi 0, %s20
    %s23 = sphi 0, %s21
    %s35 = sphi 0, %s37
    %s38 = sphi 0, %s35
    %s39 = sphi 0, %s38
    %s55 = sphi 0, %s39
    %s63 = sphi 0, %s65
    %s66 = sphi 0, %s63
    %s67 = sphi 0, %s66
    %s83 = sphi 0, %s67
    %s89 = sphi 0, %s91
    %s92 = sphi 0, %s89
    %s93 = sphi 0, %s92
    %s109 = sphi 0, %s93
    %s117 = sphi 0, %s119
    %s120 = sphi 0, %s117
    %s121 = sphi 0, %s120
    %s137 = sphi 0, %s121
    %s145 = sphi 0, %s147
    %s148 = sphi 0, %s145
    %s149 = sphi 0, %s148
    %s165 = sphi 0, %s149
  $region4: #{forward.5} parent=0 // loop_header_branch
    %14 = sbr.rel (%p12) target = $region8
  $region5: #{forward.5} parent=0 // loop_body
    %s16 = ssub.s32 %s11, 1
    %s17 = ssub.s32 %s11, 2
    %s24 = sadd.s32 1, %s19
    %p25 = scmp.ge.s32.totalorder %s24, 1
    %s26 = scalar_select %p25, 0, %s24
    %s27 = sadd.s32 1, %s18
    %s28 = scalar_select %p25, %s27, %s18
    %p29 = scmp.ge.s32.totalorder %s28, 2
    %s30 = scalar_select %p29, 0, %s28
    %s31 = ssub.s32 %s18, %s30
    %s32 = ssub.s32 %s19, %s26
    %s33 = sor.u32 %s31, %s32
    %p34 = scmp.eq.s32.totalorder %s33, 0
    %s36 = sadd.s32 %s35, 1
    %s37 = scalar_select %p34, %s35, %s36
    %p40 = pneg %p34
    %p41 = scmp.eq.s32.totalorder %s11, 1
    %p42 = por %p40, %p41
    %p43 = scmp.ne.s32.totalorder %s35, %s38
    %p44 = scmp.eq.s32.totalorder %s11, 0
    %p45 = por %p43, %p44
    %p46 = scmp.ne.s32.totalorder %s35, %s38
    %p47 = scmp.eq.s32.totalorder %s16, 1
    %p48 = por %p46, %p47
    %p49 = scmp.ne.s32.totalorder %s38, %s39
    %p50 = scmp.eq.s32.totalorder %s16, 0
    %p51 = por %p49, %p50
    %p52 = scmp.ne.s32.totalorder %s38, %s39
    %p53 = scmp.eq.s32.totalorder %s17, 1
    %p54 = por %p52, %p53
    %p56 = scmp.ne.s32.totalorder %s39, %s55
    %p57 = scmp.eq.s32.totalorder %s17, 0
    %p58 = por %p56, %p57
    %s59 = ssub.s32 %s18, %s30
    %s60 = ssub.s32 %s19, %s26
    %s61 = sor.u32 %s59, %s60
    %p62 = scmp.eq.s32.totalorder %s61, 0
    %s64 = sadd.s32 %s63, 1
    %s65 = scalar_select %p62, %s63, %s64
    %p68 = pneg %p62
    %p69 = scmp.eq.s32.totalorder %s11, 1
    %p70 = por %p68, %p69
    %p71 = scmp.ne.s32.totalorder %s63, %s66
    %p72 = scmp.eq.s32.totalorder %s11, 0
    %p73 = por %p71, %p72
    %p74 = scmp.ne.s32.totalorder %s63, %s66
    %p75 = scmp.eq.s32.totalorder %s16, 1
    %p76 = por %p74, %p75
    %p77 = scmp.ne.s32.totalorder %s66, %s67
    %p78 = scmp.eq.s32.totalorder %s16, 0
    %p79 = por %p77, %p78
    %p80 = scmp.ne.s32.totalorder %s66, %s67
    %p81 = scmp.eq.s32.totalorder %s17, 1
    %p82 = por %p80, %p81
    %p84 = scmp.ne.s32.totalorder %s67, %s83
    %p85 = scmp.eq.s32.totalorder %s17, 0
    %p86 = por %p84, %p85
    %s87 = ssub.s32 %s19, %s26
    %p88 = scmp.eq.s32.totalorder %s87, 0
    %s90 = sadd.s32 %s89, 1
    %s91 = scalar_select %p88, %s89, %s90
    %p94 = pneg %p88
    %p95 = scmp.eq.s32.totalorder %s11, 1
    %p96 = por %p94, %p95
    %p97 = scmp.ne.s32.totalorder %s89, %s92
    %p98 = scmp.eq.s32.totalorder %s11, 0
    %p99 = por %p97, %p98
    %p100 = scmp.ne.s32.totalorder %s89, %s92
    %p101 = scmp.eq.s32.totalorder %s16, 1
    %p102 = por %p100, %p101
    %p103 = scmp.ne.s32.totalorder %s92, %s93
    %p104 = scmp.eq.s32.totalorder %s16, 0
    %p105 = por %p103, %p104
    %p106 = scmp.ne.s32.totalorder %s92, %s93
    %p107 = scmp.eq.s32.totalorder %s17, 1
    %p108 = por %p106, %p107
    %p110 = scmp.ne.s32.totalorder %s93, %s109
    %p111 = scmp.eq.s32.totalorder %s17, 0
    %p112 = por %p110, %p111
    %s113 = ssub.s32 %s18, %s30
    %s114 = ssub.s32 %s19, %s26
    %s115 = sor.u32 %s113, %s114
    %p116 = scmp.eq.s32.totalorder %s115, 0
    %s118 = sadd.s32 %s117, 1
    %s119 = scalar_select %p116, %s117, %s118
    %p122 = pneg %p116
    %p123 = scmp.eq.s32.totalorder %s11, 1
    %p124 = por %p122, %p123
    %p125 = scmp.ne.s32.totalorder %s117, %s120
    %p126 = scmp.eq.s32.totalorder %s11, 0
    %p127 = por %p125, %p126
    %p128 = scmp.ne.s32.totalorder %s117, %s120
    %p129 = scmp.eq.s32.totalorder %s16, 1
    %p130 = por %p128, %p129
    %p131 = scmp.ne.s32.totalorder %s120, %s121
    %p132 = scmp.eq.s32.totalorder %s16, 0
    %p133 = por %p131, %p132
    %p134 = scmp.ne.s32.totalorder %s120, %s121
    %p135 = scmp.eq.s32.totalorder %s17, 1
    %p136 = por %p134, %p135
    %p138 = scmp.ne.s32.totalorder %s121, %s137
    %p139 = scmp.eq.s32.totalorder %s17, 0
    %p140 = por %p138, %p139
    %s141 = ssub.s32 %s18, %s30
    %s142 = ssub.s32 %s19, %s26
    %s143 = sor.u32 %s141, %s142
    %p144 = scmp.eq.s32.totalorder %s143, 0
    %s146 = sadd.s32 %s145, 1
    %s147 = scalar_select %p144, %s145, %s146
    %p150 = pneg %p144
    %p151 = scmp.eq.s32.totalorder %s11, 1
    %p152 = por %p150, %p151
    %p153 = scmp.ne.s32.totalorder %s145, %s148
    %p154 = scmp.eq.s32.totalorder %s11, 0
    %p155 = por %p153, %p154
    %p156 = scmp.ne.s32.totalorder %s145, %s148
    %p157 = scmp.eq.s32.totalorder %s16, 1
    %p158 = por %p156, %p157
    %p159 = scmp.ne.s32.totalorder %s148, %s149
    %p160 = scmp.eq.s32.totalorder %s16, 0
    %p161 = por %p159, %p160
    %p162 = scmp.ne.s32.totalorder %s148, %s149
    %p163 = scmp.eq.s32.totalorder %s17, 1
    %p164 = por %p162, %p163
    %p166 = scmp.ne.s32.totalorder %s149, %s165
    %p167 = scmp.eq.s32.totalorder %s17, 0
    %p168 = por %p166, %p167
    %p169 = scmp.le.s32.totalorder 1, %s11
    %p170 = scmp.lt.s32.totalorder %s11, 3
    %p171 = pnand %p169, %p170
    %p172 = pneg %p171
    // Predicated region
    $region9: #{forward.5} parent=5 // pred_check
      _
    $region10: #{forward.5} parent=5 // pred_check_branch
      %174 = sbr.rel (%p171) target = $region12
    $region11: #{forward.5} parent=5 // pred_region
      %s175 = ssub.s32 %s11, 1
      // Predicated region
      $region13: #{forward.5} parent=11 // pred_check
        %p176 = pneg %p105
      $region14: #{forward.5} parent=11 // pred_check_branch
        %178 = sbr.rel (%p176) target = $region16
      $region15: #{forward.5} parent=11 // pred_region
        %p179 = scmp.lt.s32.totalorder %s21, 0
        %s180 = scalar_select %p179, %s21, 0
        %s181 = smul.addr %s180, 8
        %s182 = scalar_lea.vmem %s2, %s181
      $region16: #{forward.5} parent=11 // pred_fallthru
        _
    $region12: #{forward.5} parent=5 // pred_fallthru
      _
    %p183 = scmp.lt.s32.totalorder %s11, 2
    // Predicated region
    $region17: #{forward.5} parent=5 // pred_check
      %p184 = pneg %p183
    $region18: #{forward.5} parent=5 // pred_check_branch
      %186 = sbr.rel (%p184) target = $region20
    $region19: #{forward.5} parent=5 // pred_region
      // Predicated region
      $region21: #{forward.5} parent=19 // pred_check
        %p187 = pneg %p45
      $region22: #{forward.5} parent=19 // pred_check_branch
        %189 = sbr.rel (%p187) target = $region24
      $region23: #{forward.5} parent=19 // pred_region
        %p190 = scmp.lt.s32.totalorder %s18, 1
        %s191 = scalar_select %p190, %s18, 1
        %p192 = scmp.lt.s32.totalorder %s19, 0
        %s193 = scalar_select %p192, %s19, 0
        %s194 = smul.addr %s191, 2
        %s195 = sadd.s32 %s193, %s194
        %s196 = smul.addr %s195, 8
        %s197 = scalar_lea.vmem %s0, %s196
      $region24: #{forward.5} parent=19 // pred_fallthru
        _
      // Predicated region
      $region25: #{forward.5} parent=19 // pred_check
        %p198 = pneg %p73
      $region26: #{forward.5} parent=19 // pred_check_branch
        %200 = sbr.rel (%p198) target = $region28
      $region27: #{forward.5} parent=19 // pred_region
        %p201 = scmp.lt.s32.totalorder %s18, 1
        %s202 = scalar_select %p201, %s18, 1
        %p203 = scmp.lt.s32.totalorder %s19, 0
        %s204 = scalar_select %p203, %s19, 0
        %s205 = smul.addr %s202, 2
        %s206 = sadd.s32 %s204, %s205
        %s207 = smul.addr %s206, 8
        %s208 = scalar_lea.vmem %s1, %s207
      $region28: #{forward.5} parent=19 // pred_fallthru
        _
    $region20: #{forward.5} parent=5 // pred_fallthru
      _
    %p209 = scmp.le.s32.totalorder 1, %s11
    %p210 = scmp.lt.s32.totalorder %s11, 3
    %p211 = pnand %p209, %p210
    %p212 = pneg %p211
    // Predicated region
    $region29: #{forward.5} parent=5 // pred_check
      _
    $region30: #{forward.5} parent=5 // pred_check_branch
      %214 = sbr.rel (%p211) target = $region32
    $region31: #{forward.5} parent=5 // pred_region
      %s215 = ssub.s32 %s11, 1
      %p216 = scmp.lt.s32.totalorder %s20, 1
      %s217 = scalar_select %p216, %s20, 1
      %p218 = scmp.lt.s32.totalorder %s21, 0
      %s219 = scalar_select %p218, %s21, 0
      %s220 = smul.addr %s217, 2
      %s221 = sadd.s32 %s219, %s220
      %s222 = smul.addr %s221, 8
      %s223 = scalar_lea.vmem %s0, %s222
      %p224 = pneg %p51
      %p225 = pneg %p48
      %p226 = scmp.lt.s32.totalorder %s20, 1
      %s227 = scalar_select %p226, %s20, 1
      %p228 = scmp.lt.s32.totalorder %s21, 0
      %s229 = scalar_select %p228, %s21, 0
      %s230 = smul.addr %s227, 2
      %s231 = sadd.s32 %s229, %s230
      %s232 = smul.addr %s231, 8
      %s233 = scalar_lea.vmem %s1, %s232
      %p234 = pneg %p79
      %p235 = pneg %p76
      %p236 = scmp.lt.s32.totalorder %s21, 0
      %s237 = scalar_select %p236, %s21, 0
      %s238 = smul.addr %s237, 8
      %s239 = scalar_lea.vmem %s2, %s238
      %p240 = pneg %p105
      %p241 = pneg %p102
      %p242 = pneg %p133
      %p243 = pneg %p130
      %s244 = smul.u32 4, %s20
      %p245 = scmp.lt.s32.totalorder %s244, 7
      %s246 = scalar_select %p245, %s244, 7
      %p247 = scmp.lt.s32.totalorder %s21, 0
      %s248 = scalar_select %p247, %s21, 0
      %s249 = smul.addr %s246, 2
      %s250 = sadd.s32 %s248, %s249
      %s251 = smul.addr %s250, 8
      %s252 = scalar_lea.vmem %s3, %s251
      %p253 = pneg %p161
      %p254 = pneg %p158
      %s255 = smul.u32 4, %s20
      %p256 = scmp.lt.s32.totalorder %s255, 7
      %s257 = scalar_select %p256, %s255, 7
      %p258 = scmp.lt.s32.totalorder %s21, 0
      %s259 = scalar_select %p258, %s21, 0
      %s260 = smul.addr %s257, 2
      %s261 = sadd.s32 %s259, %s260
      %s262 = smul.addr %s261, 8
      %s263 = scalar_lea.vmem %s4, %s262
      %p264 = scmp.lt.s32.totalorder %s20, 1
      %s265 = scalar_select %p264, %s20, 1
      %p266 = scmp.lt.s32.totalorder %s21, 0
      %s267 = scalar_select %p266, %s21, 0
      %s268 = smul.addr %s265, 2
      %s269 = sadd.s32 %s267, %s268
      %s270 = smul.addr %s269, 8
      %s271 = scalar_lea.vmem %s0, %s270
      %p272 = scmp.lt.s32.totalorder %s20, 1
      %s273 = scalar_select %p272, %s20, 1
      %p274 = scmp.lt.s32.totalorder %s21, 0
      %s275 = scalar_select %p274, %s21, 0
      %s276 = smul.addr %s273, 2
      %s277 = sadd.s32 %s275, %s276
      %s278 = smul.addr %s277, 8
      %s279 = scalar_lea.vmem %s1, %s278
      %p280 = scmp.lt.s32.totalorder %s21, 0
      %s281 = scalar_select %p280, %s21, 0
      %s282 = smul.addr %s281, 8
      %s283 = scalar_lea.vmem %s2, %s282
      %s284 = smul.u32 4, %s20
      %p285 = scmp.lt.s32.totalorder %s284, 7
      %s286 = scalar_select %p285, %s284, 7
      %p287 = scmp.lt.s32.totalorder %s21, 0
      %s288 = scalar_select %p287, %s21, 0
      %s289 = smul.addr %s286, 2
      %s290 = sadd.s32 %s288, %s289
      %s291 = smul.addr %s290, 8
      %s292 = scalar_lea.vmem %s3, %s291
      %s293 = smul.u32 4, %s20
      %s294 = smul.u32 4, %s20
      %p295 = scmp.lt.s32.totalorder %s294, 7
      %s296 = scalar_select %p295, %s294, 7
      %p297 = scmp.lt.s32.totalorder %s21, 0
      %s298 = scalar_select %p297, %s21, 0
      %s299 = smul.addr %s296, 2
      %s300 = sadd.s32 %s298, %s299
      %s301 = smul.addr %s300, 8
      %s302 = scalar_lea.vmem %s4, %s301
      %s303 = smul.u32 4, %s20
      %v304 = vld [vmem:[%s271] sm:$0xff]
      %v305 = vld [vmem:[%s271 + $0x8] sm:$0x1]
      %v306 = vld [vmem:[%s279] sm:$0xff]
      %v307 = vld [vmem:[%s279 + $0x8] sm:$0x1]
      %v308 = vld [vmem:[%s283] sm:$0xff]
      %v309 = vld [vmem:[%s283 + $0x8] sm:$0x1]
      %v310 = vsub.f32 0.0, %v308
      %v311 = vsub.f32 0.0, %v309
      %v312 = vmul.f32 %v310, %v306
      %v313 = vmul.f32 %v311, %v307
      %vm314 = vcmask 130048
      %315 = vst.msk [vmem:[%s292] sm:$0xff] %vm314, %v312
      %vm316 = vcmask 122880
      %317 = vst.msk [vmem:[%s292 + $0x8] sm:$0x1] %vm316, %v313
      %v318 = vmul.f32 %v308, %v304
      %v319 = vmul.f32 %v309, %v305
      %320 = vst.msk [vmem:[%s302] sm:$0xff] %vm314, %v318
      %321 = vst.msk [vmem:[%s302 + $0x8] sm:$0x1] %vm316, %v319
      %s322 = scalar_lea.vmem %s283, 16
      %v323 = vld [vmem:[%s322] sm:$0xff]
      %v324 = vld [vmem:[%s322 + $0x8] sm:$0x1]
      %v325 = vsub.f32 0.0, %v323
      %v326 = vsub.f32 0.0, %v324
      %v327 = vmul.f32 %v325, %v306
      %v328 = vmul.f32 %v326, %v307
      %s329 = scalar_lea.vmem %s292, 16
      %330 = vst.msk [vmem:[%s329] sm:$0xff] %vm314, %v327
      %331 = vst.msk [vmem:[%s329 + $0x8] sm:$0x1] %vm316, %v328
      %v332 = vmul.f32 %v323, %v304
      %v333 = vmul.f32 %v324, %v305
      %s334 = scalar_lea.vmem %s302, 16
      %335 = vst.msk [vmem:[%s334] sm:$0xff] %vm314, %v332
      %336 = vst.msk [vmem:[%s334 + $0x8] sm:$0x1] %vm316, %v333
      %s337 = scalar_lea.vmem %s283, 32
      %v338 = vld [vmem:[%s337] sm:$0xff]
      %v339 = vld [vmem:[%s337 + $0x8] sm:$0x1]
      %v340 = vsub.f32 0.0, %v338
      %v341 = vsub.f32 0.0, %v339
      %v342 = vmul.f32 %v340, %v306
      %v343 = vmul.f32 %v341, %v307
      %s344 = scalar_lea.vmem %s292, 32
      %345 = vst.msk [vmem:[%s344] sm:$0xff] %vm314, %v342
      %346 = vst.msk [vmem:[%s344 + $0x8] sm:$0x1] %vm316, %v343
      %v347 = vmul.f32 %v338, %v304
      %v348 = vmul.f32 %v339, %v305
      %s349 = scalar_lea.vmem %s302, 32
      %350 = vst.msk [vmem:[%s349] sm:$0xff] %vm314, %v347
      %351 = vst.msk [vmem:[%s349 + $0x8] sm:$0x1] %vm316, %v348
      %s352 = scalar_lea.vmem %s283, 48
      %v353 = vld [vmem:[%s352] sm:$0xff]
      %v354 = vld [vmem:[%s352 + $0x8] sm:$0x1]
      %v355 = vsub.f32 0.0, %v353
      %v356 = vsub.f32 0.0, %v354
      %v357 = vmul.f32 %v355, %v306
      %v358 = vmul.f32 %v356, %v307
      %s359 = scalar_lea.vmem %s292, 48
      %360 = vst.msk [vmem:[%s359] sm:$0xff] %vm314, %v357
      %361 = vst.msk [vmem:[%s359 + $0x8] sm:$0x1] %vm316, %v358
      %v362 = vmul.f32 %v353, %v304
      %v363 = vmul.f32 %v354, %v305
      %s364 = scalar_lea.vmem %s302, 48
      %365 = vst.msk [vmem:[%s364] sm:$0xff] %vm314, %v362
      %366 = vst.msk [vmem:[%s364 + $0x8] sm:$0x1] %vm316, %v363
      %s367 = smul.u32 4, %s20
      %p368 = scmp.lt.s32.totalorder %s367, 7
      %s369 = scalar_select %p368, %s367, 7
      %p370 = scmp.lt.s32.totalorder %s21, 0
      %s371 = scalar_select %p370, %s21, 0
      %s372 = smul.addr %s369, 2
      %s373 = sadd.s32 %s371, %s372
      %s374 = smul.addr %s373, 8
      %s375 = scalar_lea.vmem %s3, %s374
      %s376 = smul.u32 4, %s20
      %p377 = scmp.lt.s32.totalorder %s376, 7
      %s378 = scalar_select %p377, %s376, 7
      %p379 = scmp.lt.s32.totalorder %s21, 0
      %s380 = scalar_select %p379, %s21, 0
      %s381 = smul.addr %s378, 2
      %s382 = sadd.s32 %s380, %s381
      %s383 = smul.addr %s382, 8
      %s384 = scalar_lea.vmem %s4, %s383
      // Predicated region
      $region33: #{forward.5} parent=31 // pred_check
        %p385 = pneg %p130
      $region34: #{forward.5} parent=31 // pred_check_branch
        %387 = sbr.rel (%p385) target = $region36
      $region35: #{forward.5} parent=31 // pred_region
        %s388 = smul.u32 4, %s20
      $region36: #{forward.5} parent=31 // pred_fallthru
        _
      // Predicated region
      $region37: #{forward.5} parent=31 // pred_check
        %p389 = pneg %p158
      $region38: #{forward.5} parent=31 // pred_check_branch
        %391 = sbr.rel (%p389) target = $region40
      $region39: #{forward.5} parent=31 // pred_region
        %s392 = smul.u32 4, %s20
      $region40: #{forward.5} parent=31 // pred_fallthru
        _
    $region32: #{forward.5} parent=5 // pred_fallthru
      _
    %p393 = scmp.le.s32.totalorder 2, %s11
    // Predicated region
    $region41: #{forward.5} parent=5 // pred_check
      %p394 = pneg %p393
    $region42: #{forward.5} parent=5 // pred_check_branch
      %396 = sbr.rel (%p394) target = $region44
    $region43: #{forward.5} parent=5 // pred_region
      %s397 = ssub.s32 %s11, 2
      // Predicated region
      $region45: #{forward.5} parent=43 // pred_check
        %p398 = pneg %p136
      $region46: #{forward.5} parent=43 // pred_check_branch
        %400 = sbr.rel (%p398) target = $region48
      $region47: #{forward.5} parent=43 // pred_region
        %s401 = smul.u32 4, %s22
        %p402 = scmp.lt.s32.totalorder %s401, 7
        %s403 = scalar_select %p402, %s401, 7
        %p404 = scmp.lt.s32.totalorder %s23, 0
        %s405 = scalar_select %p404, %s23, 0
        %s406 = smul.addr %s403, 2
        %s407 = sadd.s32 %s405, %s406
        %s408 = smul.addr %s407, 8
        %s409 = scalar_lea.vmem %s3, %s408
      $region48: #{forward.5} parent=43 // pred_fallthru
        _
      // Predicated region
      $region49: #{forward.5} parent=43 // pred_check
        %p410 = pneg %p164
      $region50: #{forward.5} parent=43 // pred_check_branch
        %412 = sbr.rel (%p410) target = $region52
      $region51: #{forward.5} parent=43 // pred_region
        %s413 = smul.u32 4, %s22
        %p414 = scmp.lt.s32.totalorder %s413, 7
        %s415 = scalar_select %p414, %s413, 7
        %p416 = scmp.lt.s32.totalorder %s23, 0
        %s417 = scalar_select %p416, %s23, 0
        %s418 = smul.addr %s415, 2
        %s419 = sadd.s32 %s417, %s418
        %s420 = smul.addr %s419, 8
        %s421 = scalar_lea.vmem %s4, %s420
      $region52: #{forward.5} parent=43 // pred_fallthru
        _
    $region44: #{forward.5} parent=5 // pred_fallthru
      _
  $region6: #{forward.5} parent=0 // loop_footer
    %s15 = sadd.s32 1, %s11
  $region7: #{forward.5} parent=0 // loop_footer_branch
    %10 = sbr.rel target = $region3
  $region8: #{forward.5} parent=0 // loop_exit
    _

// kernel: custom-call.3
$region0: #{custom-call.3}
  %s0 = inlined_call_operand.vmem [shape: f32[2,16,9], index: 0, kind: input, shape index: {}]
  %s1 = inlined_call_operand.vmem [shape: f32[2,16,9], index: 1, kind: input, shape index: {}]
  %s2 = inlined_call_operand.vmem [shape: c64[2,16,9], index: 2, kind: output, shape index: {}]
  %s4 = scalar_lea.vmem %s2, 32
  %v5 = vld [vmem:[%s0] sm:$0xff]
  %6 = vst [vmem:[%s2] sm:$0xff] %v5
  %s7 = scalar_lea.vmem %s2, 8
  %s8 = scalar_lea.vmem %s0, 8
  %v9 = vld [vmem:[%s8] sm:$0xff]
  %10 = vst [vmem:[%s7] sm:$0xff] %v9
  %s11 = scalar_lea.vmem %s2, 16
  %s12 = scalar_lea.vmem %s0, 16
  %v13 = vld [vmem:[%s12] sm:$0xff]
  %14 = vst [vmem:[%s11] sm:$0xff] %v13
  %s15 = scalar_lea.vmem %s2, 24
  %s16 = scalar_lea.vmem %s0, 24
  %v17 = vld [vmem:[%s16] sm:$0xff]
  %18 = vst [vmem:[%s15] sm:$0xff] %v17
  %v19 = vld [vmem:[%s1] sm:$0xff]
  %20 = vst [vmem:[%s4] sm:$0xff] %v19
  %s21 = scalar_lea.vmem %s4, 8
  %s22 = scalar_lea.vmem %s1, 8
  %v23 = vld [vmem:[%s22] sm:$0xff]
  %24 = vst [vmem:[%s21] sm:$0xff] %v23
  %s25 = scalar_lea.vmem %s4, 16
  %s26 = scalar_lea.vmem %s1, 16
  %v27 = vld [vmem:[%s26] sm:$0xff]
  %28 = vst [vmem:[%s25] sm:$0xff] %v27
  %s29 = scalar_lea.vmem %s4, 24
  %s30 = scalar_lea.vmem %s1, 24
  %v31 = vld [vmem:[%s30] sm:$0xff]
  %32 = vst [vmem:[%s29] sm:$0xff] %v31

// kernel: forward.9
$region0: #{forward.9}
  #allocation0 [shape = 'u32[]', space=smem, size = 0x4, offset = 0x4, fixed_abs, tag = 'smem constant byte address 0x4 - core index']
  #allocation1 [shape = 'u32[144,128]{1,0:T(1,128)}', space=vmem, size = 0x12000, scoped, tag = 'internal scratch']
  %s0 = inlined_call_operand.vmem [shape: f32[2,9,16], index: 0, kind: input, shape index: {}]
  %s1 = inlined_call_operand.vmem [shape: f32[2,9,16], index: 1, kind: input, shape index: {}]
  %s2 = inlined_call_operand.vmem [shape: f32[2,9,16], index: 2, kind: input, shape index: {}]
  %s3 = inlined_call_operand.vmem [shape: f32[2,9,16], index: 3, kind: input, shape index: {}]
  %s4 = inlined_call_operand.vmem [shape: f32[2,9,16], index: 4, kind: input, shape index: {}]
  %s5 = inlined_call_operand.vmem [shape: f32[2,9,16], index: 5, kind: input, shape index: {}]
  %s6 = inlined_call_operand.vmem [shape: f32[9,9,16], index: 6, kind: input, shape index: {}]
  %s7 = inlined_call_operand.vmem [shape: f32[2,9,16], index: 7, kind: output, shape index: {0}]
  %s8 = inlined_call_operand.vmem [shape: f32[2,9,16], index: 8, kind: output, shape index: {1}]
  %9 = xla_tuple %s7, %s8
  %s10 = sld [smem:[#allocation0]]
  $region69: #{forward.9} parent=0
    _
  %s12 = ssub.s32 1, %s10
  %s13 = scalar_select 0, %s12, %s10
  loop: start=0, step=1, limit=4
  $region2: #{forward.9} parent=0 // loop_pre_header
    _
  $region3: #{forward.9} parent=0 // loop_header
    %s15 = sphi 0, %s19
    %p16 = scmp.ge.s32.totalorder %s15, 4
    %s22 = sphi 0, %s34
    %s23 = sphi 0, %s30
    %s24 = sphi 0, %s22
    %s25 = sphi 0, %s23
    %s26 = sphi 0, %s24
    %s27 = sphi 0, %s25
    %s39 = sphi 0, %s41
    %s42 = sphi 0, %s39
    %s43 = sphi 0, %s42
    %s59 = sphi 0, %s43
    %s67 = sphi 0, %s69
    %s70 = sphi 0, %s67
    %s71 = sphi 0, %s70
    %s87 = sphi 0, %s71
    %s95 = sphi 0, %s97
    %s98 = sphi 0, %s95
    %s99 = sphi 0, %s98
    %s115 = sphi 0, %s99
    %s123 = sphi 0, %s125
    %s126 = sphi 0, %s123
    %s127 = sphi 0, %s126
    %s143 = sphi 0, %s127
    %s151 = sphi 0, %s153
    %s154 = sphi 0, %s151
    %s155 = sphi 0, %s154
    %s171 = sphi 0, %s155
    %s179 = sphi 0, %s181
    %s182 = sphi 0, %s179
    %s183 = sphi 0, %s182
    %s199 = sphi 0, %s183
    %s205 = sphi 0, %s207
    %s208 = sphi 0, %s205
    %s209 = sphi 0, %s208
    %s225 = sphi 0, %s209
    %s233 = sphi 0, %s235
    %s236 = sphi 0, %s233
    %s237 = sphi 0, %s236
    %s253 = sphi 0, %s237
    %s261 = sphi 0, %s263
    %s264 = sphi 0, %s261
    %s265 = sphi 0, %s264
    %s281 = sphi 0, %s265
  $region4: #{forward.9} parent=0 // loop_header_branch
    %18 = sbr.rel (%p16) target = $region8
  $region5: #{forward.9} parent=0 // loop_body
    %s20 = ssub.s32 %s15, 1
    %s21 = ssub.s32 %s15, 2
    %s28 = sadd.s32 1, %s23
    %p29 = scmp.ge.s32.totalorder %s28, 1
    %s30 = scalar_select %p29, 0, %s28
    %s31 = sadd.s32 1, %s22
    %s32 = scalar_select %p29, %s31, %s22
    %p33 = scmp.ge.s32.totalorder %s32, 2
    %s34 = scalar_select %p33, 0, %s32
    %s35 = ssub.s32 %s22, %s34
    %s36 = ssub.s32 %s23, %s30
    %s37 = sor.u32 %s35, %s36
    %p38 = scmp.eq.s32.totalorder %s37, 0
    %s40 = sadd.s32 %s39, 1
    %s41 = scalar_select %p38, %s39, %s40
    %p44 = pneg %p38
    %p45 = scmp.eq.s32.totalorder %s15, 1
    %p46 = por %p44, %p45
    %p47 = scmp.ne.s32.totalorder %s39, %s42
    %p48 = scmp.eq.s32.totalorder %s15, 0
    %p49 = por %p47, %p48
    %p50 = scmp.ne.s32.totalorder %s39, %s42
    %p51 = scmp.eq.s32.totalorder %s20, 1
    %p52 = por %p50, %p51
    %p53 = scmp.ne.s32.totalorder %s42, %s43
    %p54 = scmp.eq.s32.totalorder %s20, 0
    %p55 = por %p53, %p54
    %p56 = scmp.ne.s32.totalorder %s42, %s43
    %p57 = scmp.eq.s32.totalorder %s21, 1
    %p58 = por %p56, %p57
    %p60 = scmp.ne.s32.totalorder %s43, %s59
    %p61 = scmp.eq.s32.totalorder %s21, 0
    %p62 = por %p60, %p61
    %s63 = ssub.s32 %s22, %s34
    %s64 = ssub.s32 %s23, %s30
    %s65 = sor.u32 %s63, %s64
    %p66 = scmp.eq.s32.totalorder %s65, 0
    %s68 = sadd.s32 %s67, 1
    %s69 = scalar_select %p66, %s67, %s68
    %p72 = pneg %p66
    %p73 = scmp.eq.s32.totalorder %s15, 1
    %p74 = por %p72, %p73
    %p75 = scmp.ne.s32.totalorder %s67, %s70
    %p76 = scmp.eq.s32.totalorder %s15, 0
    %p77 = por %p75, %p76
    %p78 = scmp.ne.s32.totalorder %s67, %s70
    %p79 = scmp.eq.s32.totalorder %s20, 1
    %p80 = por %p78, %p79
    %p81 = scmp.ne.s32.totalorder %s70, %s71
    %p82 = scmp.eq.s32.totalorder %s20, 0
    %p83 = por %p81, %p82
    %p84 = scmp.ne.s32.totalorder %s70, %s71
    %p85 = scmp.eq.s32.totalorder %s21, 1
    %p86 = por %p84, %p85
    %p88 = scmp.ne.s32.totalorder %s71, %s87
    %p89 = scmp.eq.s32.totalorder %s21, 0
    %p90 = por %p88, %p89
    %s91 = ssub.s32 %s22, %s34
    %s92 = ssub.s32 %s23, %s30
    %s93 = sor.u32 %s91, %s92
    %p94 = scmp.eq.s32.totalorder %s93, 0
    %s96 = sadd.s32 %s95, 1
    %s97 = scalar_select %p94, %s95, %s96
    %p100 = pneg %p94
    %p101 = scmp.eq.s32.totalorder %s15, 1
    %p102 = por %p100, %p101
    %p103 = scmp.ne.s32.totalorder %s95, %s98
    %p104 = scmp.eq.s32.totalorder %s15, 0
    %p105 = por %p103, %p104
    %p106 = scmp.ne.s32.totalorder %s95, %s98
    %p107 = scmp.eq.s32.totalorder %s20, 1
    %p108 = por %p106, %p107
    %p109 = scmp.ne.s32.totalorder %s98, %s99
    %p110 = scmp.eq.s32.totalorder %s20, 0
    %p111 = por %p109, %p110
    %p112 = scmp.ne.s32.totalorder %s98, %s99
    %p113 = scmp.eq.s32.totalorder %s21, 1
    %p114 = por %p112, %p113
    %p116 = scmp.ne.s32.totalorder %s99, %s115
    %p117 = scmp.eq.s32.totalorder %s21, 0
    %p118 = por %p116, %p117
    %s119 = ssub.s32 %s22, %s34
    %s120 = ssub.s32 %s23, %s30
    %s121 = sor.u32 %s119, %s120
    %p122 = scmp.eq.s32.totalorder %s121, 0
    %s124 = sadd.s32 %s123, 1
    %s125 = scalar_select %p122, %s123, %s124
    %p128 = pneg %p122
    %p129 = scmp.eq.s32.totalorder %s15, 1
    %p130 = por %p128, %p129
    %p131 = scmp.ne.s32.totalorder %s123, %s126
    %p132 = scmp.eq.s32.totalorder %s15, 0
    %p133 = por %p131, %p132
    %p134 = scmp.ne.s32.totalorder %s123, %s126
    %p135 = scmp.eq.s32.totalorder %s20, 1
    %p136 = por %p134, %p135
    %p137 = scmp.ne.s32.totalorder %s126, %s127
    %p138 = scmp.eq.s32.totalorder %s20, 0
    %p139 = por %p137, %p138
    %p140 = scmp.ne.s32.totalorder %s126, %s127
    %p141 = scmp.eq.s32.totalorder %s21, 1
    %p142 = por %p140, %p141
    %p144 = scmp.ne.s32.totalorder %s127, %s143
    %p145 = scmp.eq.s32.totalorder %s21, 0
    %p146 = por %p144, %p145
    %s147 = ssub.s32 %s22, %s34
    %s148 = ssub.s32 %s23, %s30
    %s149 = sor.u32 %s147, %s148
    %p150 = scmp.eq.s32.totalorder %s149, 0
    %s152 = sadd.s32 %s151, 1
    %s153 = scalar_select %p150, %s151, %s152
    %p156 = pneg %p150
    %p157 = scmp.eq.s32.totalorder %s15, 1
    %p158 = por %p156, %p157
    %p159 = scmp.ne.s32.totalorder %s151, %s154
    %p160 = scmp.eq.s32.totalorder %s15, 0
    %p161 = por %p159, %p160
    %p162 = scmp.ne.s32.totalorder %s151, %s154
    %p163 = scmp.eq.s32.totalorder %s20, 1
    %p164 = por %p162, %p163
    %p165 = scmp.ne.s32.totalorder %s154, %s155
    %p166 = scmp.eq.s32.totalorder %s20, 0
    %p167 = por %p165, %p166
    %p168 = scmp.ne.s32.totalorder %s154, %s155
    %p169 = scmp.eq.s32.totalorder %s21, 1
    %p170 = por %p168, %p169
    %p172 = scmp.ne.s32.totalorder %s155, %s171
    %p173 = scmp.eq.s32.totalorder %s21, 0
    %p174 = por %p172, %p173
    %s175 = ssub.s32 %s22, %s34
    %s176 = ssub.s32 %s23, %s30
    %s177 = sor.u32 %s175, %s176
    %p178 = scmp.eq.s32.totalorder %s177, 0
    %s180 = sadd.s32 %s179, 1
    %s181 = scalar_select %p178, %s179, %s180
    %p184 = pneg %p178
    %p185 = scmp.eq.s32.totalorder %s15, 1
    %p186 = por %p184, %p185
    %p187 = scmp.ne.s32.totalorder %s179, %s182
    %p188 = scmp.eq.s32.totalorder %s15, 0
    %p189 = por %p187, %p188
    %p190 = scmp.ne.s32.totalorder %s179, %s182
    %p191 = scmp.eq.s32.totalorder %s20, 1
    %p192 = por %p190, %p191
    %p193 = scmp.ne.s32.totalorder %s182, %s183
    %p194 = scmp.eq.s32.totalorder %s20, 0
    %p195 = por %p193, %p194
    %p196 = scmp.ne.s32.totalorder %s182, %s183
    %p197 = scmp.eq.s32.totalorder %s21, 1
    %p198 = por %p196, %p197
    %p200 = scmp.ne.s32.totalorder %s183, %s199
    %p201 = scmp.eq.s32.totalorder %s21, 0
    %p202 = por %p200, %p201
    %s203 = ssub.s32 %s23, %s30
    %p204 = scmp.eq.s32.totalorder %s203, 0
    %s206 = sadd.s32 %s205, 1
    %s207 = scalar_select %p204, %s205, %s206
    %p210 = pneg %p204
    %p211 = scmp.eq.s32.totalorder %s15, 1
    %p212 = por %p210, %p211
    %p213 = scmp.ne.s32.totalorder %s205, %s208
    %p214 = scmp.eq.s32.totalorder %s15, 0
    %p215 = por %p213, %p214
    %p216 = scmp.ne.s32.totalorder %s205, %s208
    %p217 = scmp.eq.s32.totalorder %s20, 1
    %p218 = por %p216, %p217
    %p219 = scmp.ne.s32.totalorder %s208, %s209
    %p220 = scmp.eq.s32.totalorder %s20, 0
    %p221 = por %p219, %p220
    %p222 = scmp.ne.s32.totalorder %s208, %s209
    %p223 = scmp.eq.s32.totalorder %s21, 1
    %p224 = por %p222, %p223
    %p226 = scmp.ne.s32.totalorder %s209, %s225
    %p227 = scmp.eq.s32.totalorder %s21, 0
    %p228 = por %p226, %p227
    %s229 = ssub.s32 %s22, %s34
    %s230 = ssub.s32 %s23, %s30
    %s231 = sor.u32 %s229, %s230
    %p232 = scmp.eq.s32.totalorder %s231, 0
    %s234 = sadd.s32 %s233, 1
    %s235 = scalar_select %p232, %s233, %s234
    %p238 = pneg %p232
    %p239 = scmp.eq.s32.totalorder %s15, 1
    %p240 = por %p238, %p239
    %p241 = scmp.ne.s32.totalorder %s233, %s236
    %p242 = scmp.eq.s32.totalorder %s15, 0
    %p243 = por %p241, %p242
    %p244 = scmp.ne.s32.totalorder %s233, %s236
    %p245 = scmp.eq.s32.totalorder %s20, 1
    %p246 = por %p244, %p245
    %p247 = scmp.ne.s32.totalorder %s236, %s237
    %p248 = scmp.eq.s32.totalorder %s20, 0
    %p249 = por %p247, %p248
    %p250 = scmp.ne.s32.totalorder %s236, %s237
    %p251 = scmp.eq.s32.totalorder %s21, 1
    %p252 = por %p250, %p251
    %p254 = scmp.ne.s32.totalorder %s237, %s253
    %p255 = scmp.eq.s32.totalorder %s21, 0
    %p256 = por %p254, %p255
    %s257 = ssub.s32 %s22, %s34
    %s258 = ssub.s32 %s23, %s30
    %s259 = sor.u32 %s257, %s258
    %p260 = scmp.eq.s32.totalorder %s259, 0
    %s262 = sadd.s32 %s261, 1
    %s263 = scalar_select %p260, %s261, %s262
    %p266 = pneg %p260
    %p267 = scmp.eq.s32.totalorder %s15, 1
    %p268 = por %p266, %p267
    %p269 = scmp.ne.s32.totalorder %s261, %s264
    %p270 = scmp.eq.s32.totalorder %s15, 0
    %p271 = por %p269, %p270
    %p272 = scmp.ne.s32.totalorder %s261, %s264
    %p273 = scmp.eq.s32.totalorder %s20, 1
    %p274 = por %p272, %p273
    %p275 = scmp.ne.s32.totalorder %s264, %s265
    %p276 = scmp.eq.s32.totalorder %s20, 0
    %p277 = por %p275, %p276
    %p278 = scmp.ne.s32.totalorder %s264, %s265
    %p279 = scmp.eq.s32.totalorder %s21, 1
    %p280 = por %p278, %p279
    %p282 = scmp.ne.s32.totalorder %s265, %s281
    %p283 = scmp.eq.s32.totalorder %s21, 0
    %p284 = por %p282, %p283
    %p285 = scmp.le.s32.totalorder 1, %s15
    %p286 = scmp.lt.s32.totalorder %s15, 3
    %p287 = pnand %p285, %p286
    %p288 = pneg %p287
    // Predicated region
    $region9: #{forward.9} parent=5 // pred_check
      _
    $region10: #{forward.9} parent=5 // pred_check_branch
      %290 = sbr.rel (%p287) target = $region12
    $region11: #{forward.9} parent=5 // pred_region
      %s291 = ssub.s32 %s15, 1
      // Predicated region
      $region13: #{forward.9} parent=11 // pred_check
        %p292 = pneg %p221
      $region14: #{forward.9} parent=11 // pred_check_branch
        %294 = sbr.rel (%p292) target = $region16
      $region15: #{forward.9} parent=11 // pred_region
        %p295 = scmp.lt.s32.totalorder %s25, 0
        %s296 = scalar_select %p295, %s25, 0
        %s297 = smul.addr %s296, 8
        %s298 = scalar_lea.vmem %s6, %s297
      $region16: #{forward.9} parent=11 // pred_fallthru
        _
    $region12: #{forward.9} parent=5 // pred_fallthru
      _
    %p299 = scmp.lt.s32.totalorder %s15, 2
    // Predicated region
    $region17: #{forward.9} parent=5 // pred_check
      %p300 = pneg %p299
    $region18: #{forward.9} parent=5 // pred_check_branch
      %302 = sbr.rel (%p300) target = $region20
    $region19: #{forward.9} parent=5 // pred_region
      // Predicated region
      $region21: #{forward.9} parent=19 // pred_check
        %p303 = pneg %p49
      $region22: #{forward.9} parent=19 // pred_check_branch
        %305 = sbr.rel (%p303) target = $region24
      $region23: #{forward.9} parent=19 // pred_region
        %p306 = scmp.lt.s32.totalorder %s22, 1
        %s307 = scalar_select %p306, %s22, 1
        %p308 = scmp.lt.s32.totalorder %s23, 0
        %s309 = scalar_select %p308, %s23, 0
        %s310 = smul.addr %s307, 2
        %s311 = sadd.s32 %s309, %s310
        %s312 = smul.addr %s311, 8
        %s313 = scalar_lea.vmem %s0, %s312
      $region24: #{forward.9} parent=19 // pred_fallthru
        _
      // Predicated region
      $region25: #{forward.9} parent=19 // pred_check
        %p314 = pneg %p77
      $region26: #{forward.9} parent=19 // pred_check_branch
        %316 = sbr.rel (%p314) target = $region28
      $region27: #{forward.9} parent=19 // pred_region
        %p317 = scmp.lt.s32.totalorder %s22, 1
        %s318 = scalar_select %p317, %s22, 1
        %p319 = scmp.lt.s32.totalorder %s23, 0
        %s320 = scalar_select %p319, %s23, 0
        %s321 = smul.addr %s318, 2
        %s322 = sadd.s32 %s320, %s321
        %s323 = smul.addr %s322, 8
        %s324 = scalar_lea.vmem %s1, %s323
      $region28: #{forward.9} parent=19 // pred_fallthru
        _
      // Predicated region
      $region29: #{forward.9} parent=19 // pred_check
        %p325 = pneg %p105
      $region30: #{forward.9} parent=19 // pred_check_branch
        %327 = sbr.rel (%p325) target = $region32
      $region31: #{forward.9} parent=19 // pred_region
        %p328 = scmp.lt.s32.totalorder %s22, 1
        %s329 = scalar_select %p328, %s22, 1
        %p330 = scmp.lt.s32.totalorder %s23, 0
        %s331 = scalar_select %p330, %s23, 0
        %s332 = smul.addr %s329, 2
        %s333 = sadd.s32 %s331, %s332
        %s334 = smul.addr %s333, 8
        %s335 = scalar_lea.vmem %s2, %s334
      $region32: #{forward.9} parent=19 // pred_fallthru
        _
      // Predicated region
      $region33: #{forward.9} parent=19 // pred_check
        %p336 = pneg %p133
      $region34: #{forward.9} parent=19 // pred_check_branch
        %338 = sbr.rel (%p336) target = $region36
      $region35: #{forward.9} parent=19 // pred_region
        %p339 = scmp.lt.s32.totalorder %s22, 1
        %s340 = scalar_select %p339, %s22, 1
        %p341 = scmp.lt.s32.totalorder %s23, 0
        %s342 = scalar_select %p341, %s23, 0
        %s343 = smul.addr %s340, 2
        %s344 = sadd.s32 %s342, %s343
        %s345 = smul.addr %s344, 8
        %s346 = scalar_lea.vmem %s3, %s345
      $region36: #{forward.9} parent=19 // pred_fallthru
        _
      // Predicated region
      $region37: #{forward.9} parent=19 // pred_check
        %p347 = pneg %p161
      $region38: #{forward.9} parent=19 // pred_check_branch
        %349 = sbr.rel (%p347) target = $region40
      $region39: #{forward.9} parent=19 // pred_region
        %p350 = scmp.lt.s32.totalorder %s22, 1
        %s351 = scalar_select %p350, %s22, 1
        %p352 = scmp.lt.s32.totalorder %s23, 0
        %s353 = scalar_select %p352, %s23, 0
        %s354 = smul.addr %s351, 2
        %s355 = sadd.s32 %s353, %s354
        %s356 = smul.addr %s355, 8
        %s357 = scalar_lea.vmem %s4, %s356
      $region40: #{forward.9} parent=19 // pred_fallthru
        _
      // Predicated region
      $region41: #{forward.9} parent=19 // pred_check
        %p358 = pneg %p189
      $region42: #{forward.9} parent=19 // pred_check_branch
        %360 = sbr.rel (%p358) target = $region44
      $region43: #{forward.9} parent=19 // pred_region
        %p361 = scmp.lt.s32.totalorder %s22, 1
        %s362 = scalar_select %p361, %s22, 1
        %p363 = scmp.lt.s32.totalorder %s23, 0
        %s364 = scalar_select %p363, %s23, 0
        %s365 = smul.addr %s362, 2
        %s366 = sadd.s32 %s364, %s365
        %s367 = smul.addr %s366, 8
        %s368 = scalar_lea.vmem %s5, %s367
      $region44: #{forward.9} parent=19 // pred_fallthru
        _
    $region20: #{forward.9} parent=5 // pred_fallthru
      _
    %p369 = scmp.le.s32.totalorder 1, %s15
    %p370 = scmp.lt.s32.totalorder %s15, 3
    %p371 = pnand %p369, %p370
    %p372 = pneg %p371
    // Predicated region
    $region45: #{forward.9} parent=5 // pred_check
      _
    $region46: #{forward.9} parent=5 // pred_check_branch
      %374 = sbr.rel (%p371) target = $region48
    $region47: #{forward.9} parent=5 // pred_region
      %s375 = ssub.s32 %s15, 1
      %p376 = scmp.lt.s32.totalorder %s24, 1
      %s377 = scalar_select %p376, %s24, 1
      %p378 = scmp.lt.s32.totalorder %s25, 0
      %s379 = scalar_select %p378, %s25, 0
      %s380 = smul.addr %s377, 2
      %s381 = sadd.s32 %s379, %s380
      %s382 = smul.addr %s381, 8
      %s383 = scalar_lea.vmem %s0, %s382
      %p384 = pneg %p55
      %p385 = pneg %p52
      %p386 = scmp.lt.s32.totalorder %s24, 1
      %s387 = scalar_select %p386, %s24, 1
      %p388 = scmp.lt.s32.totalorder %s25, 0
      %s389 = scalar_select %p388, %s25, 0
      %s390 = smul.addr %s387, 2
      %s391 = sadd.s32 %s389, %s390
      %s392 = smul.addr %s391, 8
      %s393 = scalar_lea.vmem %s1, %s392
      %p394 = pneg %p83
      %p395 = pneg %p80
      %p396 = scmp.lt.s32.totalorder %s24, 1
      %s397 = scalar_select %p396, %s24, 1
      %p398 = scmp.lt.s32.totalorder %s25, 0
      %s399 = scalar_select %p398, %s25, 0
      %s400 = smul.addr %s397, 2
      %s401 = sadd.s32 %s399, %s400
      %s402 = smul.addr %s401, 8
      %s403 = scalar_lea.vmem %s2, %s402
      %p404 = pneg %p111
      %p405 = pneg %p108
      %p406 = scmp.lt.s32.totalorder %s24, 1
      %s407 = scalar_select %p406, %s24, 1
      %p408 = scmp.lt.s32.totalorder %s25, 0
      %s409 = scalar_select %p408, %s25, 0
      %s410 = smul.addr %s407, 2
      %s411 = sadd.s32 %s409, %s410
      %s412 = smul.addr %s411, 8
      %s413 = scalar_lea.vmem %s3, %s412
      %p414 = pneg %p139
      %p415 = pneg %p136
      %p416 = scmp.lt.s32.totalorder %s24, 1
      %s417 = scalar_select %p416, %s24, 1
      %p418 = scmp.lt.s32.totalorder %s25, 0
      %s419 = scalar_select %p418, %s25, 0
      %s420 = smul.addr %s417, 2
      %s421 = sadd.s32 %s419, %s420
      %s422 = smul.addr %s421, 8
      %s423 = scalar_lea.vmem %s4, %s422
      %p424 = pneg %p167
      %p425 = pneg %p164
      %p426 = scmp.lt.s32.totalorder %s24, 1
      %s427 = scalar_select %p426, %s24, 1
      %p428 = scmp.lt.s32.totalorder %s25, 0
      %s429 = scalar_select %p428, %s25, 0
      %s430 = smul.addr %s427, 2
      %s431 = sadd.s32 %s429, %s430
      %s432 = smul.addr %s431, 8
      %s433 = scalar_lea.vmem %s5, %s432
      %p434 = pneg %p195
      %p435 = pneg %p192
      %p436 = scmp.lt.s32.totalorder %s25, 0
      %s437 = scalar_select %p436, %s25, 0
      %s438 = smul.addr %s437, 8
      %s439 = scalar_lea.vmem %s6, %s438
      %p440 = pneg %p221
      %p441 = pneg %p218
      %p442 = pneg %p249
      %p443 = pneg %p246
      %p444 = scmp.lt.s32.totalorder %s24, 1
      %s445 = scalar_select %p444, %s24, 1
      %p446 = scmp.lt.s32.totalorder %s25, 0
      %s447 = scalar_select %p446, %s25, 0
      %s448 = smul.addr %s445, 2
      %s449 = sadd.s32 %s447, %s448
      %s450 = smul.addr %s449, 8
      %s451 = scalar_lea.vmem %s7, %s450
      %p452 = pneg %p277
      %p453 = pneg %p274
      %p454 = scmp.lt.s32.totalorder %s24, 1
      %s455 = scalar_select %p454, %s24, 1
      %p456 = scmp.lt.s32.totalorder %s25, 0
      %s457 = scalar_select %p456, %s25, 0
      %s458 = smul.addr %s455, 2
      %s459 = sadd.s32 %s457, %s458
      %s460 = smul.addr %s459, 8
      %s461 = scalar_lea.vmem %s8, %s460
      %p462 = scmp.lt.s32.totalorder %s24, 1
      %s463 = scalar_select %p462, %s24, 1
      %p464 = scmp.lt.s32.totalorder %s25, 0
      %s465 = scalar_select %p464, %s25, 0
      %s466 = smul.addr %s463, 2
      %s467 = sadd.s32 %s465, %s466
      %s468 = smul.addr %s467, 8
      %s469 = scalar_lea.vmem %s0, %s468
      %p470 = scmp.lt.s32.totalorder %s24, 1
      %s471 = scalar_select %p470, %s24, 1
      %p472 = scmp.lt.s32.totalorder %s25, 0
      %s473 = scalar_select %p472, %s25, 0
      %s474 = smul.addr %s471, 2
      %s475 = sadd.s32 %s473, %s474
      %s476 = smul.addr %s475, 8
      %s477 = scalar_lea.vmem %s1, %s476
      %p478 = scmp.lt.s32.totalorder %s24, 1
      %s479 = scalar_select %p478, %s24, 1
      %p480 = scmp.lt.s32.totalorder %s25, 0
      %s481 = scalar_select %p480, %s25, 0
      %s482 = smul.addr %s479, 2
      %s483 = sadd.s32 %s481, %s482
      %s484 = smul.addr %s483, 8
      %s485 = scalar_lea.vmem %s2, %s484
      %p486 = scmp.lt.s32.totalorder %s24, 1
      %s487 = scalar_select %p486, %s24, 1
      %p488 = scmp.lt.s32.totalorder %s25, 0
      %s489 = scalar_select %p488, %s25, 0
      %s490 = smul.addr %s487, 2
      %s491 = sadd.s32 %s489, %s490
      %s492 = smul.addr %s491, 8
      %s493 = scalar_lea.vmem %s3, %s492
      %p494 = scmp.lt.s32.totalorder %s24, 1
      %s495 = scalar_select %p494, %s24, 1
      %p496 = scmp.lt.s32.totalorder %s25, 0
      %s497 = scalar_select %p496, %s25, 0
      %s498 = smul.addr %s495, 2
      %s499 = sadd.s32 %s497, %s498
      %s500 = smul.addr %s499, 8
      %s501 = scalar_lea.vmem %s4, %s500
      %p502 = scmp.lt.s32.totalorder %s24, 1
      %s503 = scalar_select %p502, %s24, 1
      %p504 = scmp.lt.s32.totalorder %s25, 0
      %s505 = scalar_select %p504, %s25, 0
      %s506 = smul.addr %s503, 2
      %s507 = sadd.s32 %s505, %s506
      %s508 = smul.addr %s507, 8
      %s509 = scalar_lea.vmem %s5, %s508
      %p510 = scmp.lt.s32.totalorder %s25, 0
      %s511 = scalar_select %p510, %s25, 0
      %s512 = smul.addr %s511, 8
      %s513 = scalar_lea.vmem %s6, %s512
      %p514 = scmp.lt.s32.totalorder %s24, 1
      %s515 = scalar_select %p514, %s24, 1
      %p516 = scmp.lt.s32.totalorder %s25, 0
      %s517 = scalar_select %p516, %s25, 0
      %s518 = smul.addr %s515, 2
      %s519 = sadd.s32 %s517, %s518
      %s520 = smul.addr %s519, 8
      %s521 = scalar_lea.vmem %s7, %s520
      %p522 = scmp.lt.s32.totalorder %s24, 1
      %s523 = scalar_select %p522, %s24, 1
      %p524 = scmp.lt.s32.totalorder %s25, 0
      %s525 = scalar_select %p524, %s25, 0
      %s526 = smul.addr %s523, 2
      %s527 = sadd.s32 %s525, %s526
      %s528 = smul.addr %s527, 8
      %s529 = scalar_lea.vmem %s8, %s528
      %s530 = scalar_lea.vmem %s513, 64
      %v531 = vld [vmem:[%s530] sm:$0xff]
      %v532 = vld [vmem:[%s530 + $0x8] sm:$0x1]
      %s533 = scalar_lea.vmem %s513, 80
      %v534 = vld [vmem:[%s533] sm:$0xff]
      %v535 = vld [vmem:[%s533 + $0x8] sm:$0x1]
      %s536 = scalar_lea.vmem %s513, 112
      %v537 = vld [vmem:[%s536] sm:$0xff]
      %v538 = vld [vmem:[%s536 + $0x8] sm:$0x1]
      %s539 = scalar_lea.vmem %s513, 128
      %v540 = vld [vmem:[%s539] sm:$0xff]
      %v541 = vld [vmem:[%s539 + $0x8] sm:$0x1]
      %v542 = vld [vmem:[%s469] sm:$0xff]
      %v543 = vld [vmem:[%s469 + $0x8] sm:$0x1]
      %v544 = vmul.f32 %v542, %v531
      %v545 = vmul.f32 %v543, %v532
      %v546 = vld [vmem:[%s501] sm:$0xff]
      %v547 = vld [vmem:[%s501 + $0x8] sm:$0x1]
      %v548 = vmul.f32 %v537, %v546
      %v549 = vmul.f32 %v538, %v547
      %v550 = vadd.f32 %v544, %v548
      %v551 = vadd.f32 %v545, %v549
      %v552 = vld [vmem:[%s485] sm:$0xff]
      %v553 = vld [vmem:[%s485 + $0x8] sm:$0x1]
      %v554 = vmul.f32 %v540, %v552
      %v555 = vmul.f32 %v541, %v553
      %v556 = vadd.f32 %v550, %v554
      %v557 = vadd.f32 %v551, %v555
      %v558 = vmul.f32 %v556, %v534
      %v559 = vmul.f32 %v557, %v535
      %vm560 = vcmask 130048
      %561 = vst.msk [vmem:[%s521] sm:$0xff] %vm560, %v558
      %vm562 = vcmask 122880
      %563 = vst.msk [vmem:[%s521 + $0x8] sm:$0x1] %vm562, %v559
      %v564 = vld [vmem:[%s477] sm:$0xff]
      %v565 = vld [vmem:[%s477 + $0x8] sm:$0x1]
      %v566 = vmul.f32 %v564, %v531
      %v567 = vmul.f32 %v565, %v532
      %v568 = vld [vmem:[%s509] sm:$0xff]
      %v569 = vld [vmem:[%s509 + $0x8] sm:$0x1]
      %v570 = vmul.f32 %v537, %v568
      %v571 = vmul.f32 %v538, %v569
      %v572 = vadd.f32 %v566, %v570
      %v573 = vadd.f32 %v567, %v571
      %v574 = vld [vmem:[%s493] sm:$0xff]
      %v575 = vld [vmem:[%s493 + $0x8] sm:$0x1]
      %v576 = vmul.f32 %v540, %v574
      %v577 = vmul.f32 %v541, %v575
      %v578 = vadd.f32 %v572, %v576
      %v579 = vadd.f32 %v573, %v577
      %v580 = vmul.f32 %v578, %v534
      %v581 = vmul.f32 %v579, %v535
      %582 = vst.msk [vmem:[%s529] sm:$0xff] %vm560, %v580
      %583 = vst.msk [vmem:[%s529 + $0x8] sm:$0x1] %vm562, %v581
      %p584 = scmp.lt.s32.totalorder %s24, 1
      %s585 = scalar_select %p584, %s24, 1
      %p586 = scmp.lt.s32.totalorder %s25, 0
      %s587 = scalar_select %p586, %s25, 0
      %s588 = smul.addr %s585, 2
      %s589 = sadd.s32 %s587, %s588
      %s590 = smul.addr %s589, 8
      %s591 = scalar_lea.vmem %s7, %s590
      %p592 = scmp.lt.s32.totalorder %s24, 1
      %s593 = scalar_select %p592, %s24, 1
      %p594 = scmp.lt.s32.totalorder %s25, 0
      %s595 = scalar_select %p594, %s25, 0
      %s596 = smul.addr %s593, 2
      %s597 = sadd.s32 %s595, %s596
      %s598 = smul.addr %s597, 8
      %s599 = scalar_lea.vmem %s8, %s598
      // Predicated region
      $region49: #{forward.9} parent=47 // pred_check
        %p600 = pneg %p246
      $region50: #{forward.9} parent=47 // pred_check_branch
        %602 = sbr.rel (%p600) target = $region52
      $region51: #{forward.9} parent=47 // pred_region
        _
      $region52: #{forward.9} parent=47 // pred_fallthru
        _
      // Predicated region
      $region53: #{forward.9} parent=47 // pred_check
        %p603 = pneg %p274
      $region54: #{forward.9} parent=47 // pred_check_branch
        %605 = sbr.rel (%p603) target = $region56
      $region55: #{forward.9} parent=47 // pred_region
        _
      $region56: #{forward.9} parent=47 // pred_fallthru
        _
    $region48: #{forward.9} parent=5 // pred_fallthru
      _
    %p606 = scmp.le.s32.totalorder 2, %s15
    // Predicated region
    $region57: #{forward.9} parent=5 // pred_check
      %p607 = pneg %p606
    $region58: #{forward.9} parent=5 // pred_check_branch
      %609 = sbr.rel (%p607) target = $region60
    $region59: #{forward.9} parent=5 // pred_region
      %s610 = ssub.s32 %s15, 2
      // Predicated region
      $region61: #{forward.9} parent=59 // pred_check
        %p611 = pneg %p252
      $region62: #{forward.9} parent=59 // pred_check_branch
        %613 = sbr.rel (%p611) target = $region64
      $region63: #{forward.9} parent=59 // pred_region
        %p614 = scmp.lt.s32.totalorder %s26, 1
        %s615 = scalar_select %p614, %s26, 1
        %p616 = scmp.lt.s32.totalorder %s27, 0
        %s617 = scalar_select %p616, %s27, 0
        %s618 = smul.addr %s615, 2
        %s619 = sadd.s32 %s617, %s618
        %s620 = smul.addr %s619, 8
        %s621 = scalar_lea.vmem %s7, %s620
      $region64: #{forward.9} parent=59 // pred_fallthru
        _
      // Predicated region
      $region65: #{forward.9} parent=59 // pred_check
        %p622 = pneg %p280
      $region66: #{forward.9} parent=59 // pred_check_branch
        %624 = sbr.rel (%p622) target = $region68
      $region67: #{forward.9} parent=59 // pred_region
        %p625 = scmp.lt.s32.totalorder %s26, 1
        %s626 = scalar_select %p625, %s26, 1
        %p627 = scmp.lt.s32.totalorder %s27, 0
        %s628 = scalar_select %p627, %s27, 0
        %s629 = smul.addr %s626, 2
        %s630 = sadd.s32 %s628, %s629
        %s631 = smul.addr %s630, 8
        %s632 = scalar_lea.vmem %s8, %s631
      $region68: #{forward.9} parent=59 // pred_fallthru
        _
    $region60: #{forward.9} parent=5 // pred_fallthru
      _
  $region6: #{forward.9} parent=0 // loop_footer
    %s19 = sadd.s32 1, %s15
  $region7: #{forward.9} parent=0 // loop_footer_branch
    %14 = sbr.rel target = $region3
  $region8: #{forward.9} parent=0 // loop_exit
    _

// kernel: forward.6
$region0: #{forward.6}
  #allocation0 [shape = 'u32[]', space=smem, size = 0x4, offset = 0x4, fixed_abs, tag = 'smem constant byte address 0x4 - core index']
  #allocation1 [shape = 'u32[144,128]{1,0:T(1,128)}', space=vmem, size = 0x12000, scoped, tag = 'internal scratch']
  %s0 = inlined_call_operand.vmem [shape: f32[2,9,16], index: 0, kind: input, shape index: {}]
  %s1 = inlined_call_operand.vmem [shape: f32[2,9,16], index: 1, kind: input, shape index: {}]
  %s2 = inlined_call_operand.vmem [shape: f32[2,9,16], index: 2, kind: input, shape index: {}]
  %s3 = inlined_call_operand.vmem [shape: f32[2,9,16], index: 3, kind: input, shape index: {}]
  %s4 = inlined_call_operand.vmem [shape: f32[9,9,16], index: 4, kind: input, shape index: {}]
  %s5 = inlined_call_operand.vmem [shape: f32[8,9,16], index: 5, kind: output, shape index: {0}]
  %s6 = inlined_call_operand.vmem [shape: f32[8,9,16], index: 6, kind: output, shape index: {1}]
  %7 = xla_tuple %s5, %s6
  %s8 = sld [smem:[#allocation0]]
  $region61: #{forward.6} parent=0
    _
  %s10 = ssub.s32 1, %s8
  %s11 = scalar_select 0, %s10, %s8
  loop: start=0, step=1, limit=4
  $region2: #{forward.6} parent=0 // loop_pre_header
    _
  $region3: #{forward.6} parent=0 // loop_header
    %s13 = sphi 0, %s17
    %p14 = scmp.ge.s32.totalorder %s13, 4
    %s20 = sphi 0, %s32
    %s21 = sphi 0, %s28
    %s22 = sphi 0, %s20
    %s23 = sphi 0, %s21
    %s24 = sphi 0, %s22
    %s25 = sphi 0, %s23
    %s37 = sphi 0, %s39
    %s40 = sphi 0, %s37
    %s41 = sphi 0, %s40
    %s57 = sphi 0, %s41
    %s65 = sphi 0, %s67
    %s68 = sphi 0, %s65
    %s69 = sphi 0, %s68
    %s85 = sphi 0, %s69
    %s93 = sphi 0, %s95
    %s96 = sphi 0, %s93
    %s97 = sphi 0, %s96
    %s113 = sphi 0, %s97
    %s121 = sphi 0, %s123
    %s124 = sphi 0, %s121
    %s125 = sphi 0, %s124
    %s141 = sphi 0, %s125
    %s147 = sphi 0, %s149
    %s150 = sphi 0, %s147
    %s151 = sphi 0, %s150
    %s167 = sphi 0, %s151
    %s175 = sphi 0, %s177
    %s178 = sphi 0, %s175
    %s179 = sphi 0, %s178
    %s195 = sphi 0, %s179
    %s203 = sphi 0, %s205
    %s206 = sphi 0, %s203
    %s207 = sphi 0, %s206
    %s223 = sphi 0, %s207
  $region4: #{forward.6} parent=0 // loop_header_branch
    %16 = sbr.rel (%p14) target = $region8
  $region5: #{forward.6} parent=0 // loop_body
    %s18 = ssub.s32 %s13, 1
    %s19 = ssub.s32 %s13, 2
    %s26 = sadd.s32 1, %s21
    %p27 = scmp.ge.s32.totalorder %s26, 1
    %s28 = scalar_select %p27, 0, %s26
    %s29 = sadd.s32 1, %s20
    %s30 = scalar_select %p27, %s29, %s20
    %p31 = scmp.ge.s32.totalorder %s30, 2
    %s32 = scalar_select %p31, 0, %s30
    %s33 = ssub.s32 %s20, %s32
    %s34 = ssub.s32 %s21, %s28
    %s35 = sor.u32 %s33, %s34
    %p36 = scmp.eq.s32.totalorder %s35, 0
    %s38 = sadd.s32 %s37, 1
    %s39 = scalar_select %p36, %s37, %s38
    %p42 = pneg %p36
    %p43 = scmp.eq.s32.totalorder %s13, 1
    %p44 = por %p42, %p43
    %p45 = scmp.ne.s32.totalorder %s37, %s40
    %p46 = scmp.eq.s32.totalorder %s13, 0
    %p47 = por %p45, %p46
    %p48 = scmp.ne.s32.totalorder %s37, %s40
    %p49 = scmp.eq.s32.totalorder %s18, 1
    %p50 = por %p48, %p49
    %p51 = scmp.ne.s32.totalorder %s40, %s41
    %p52 = scmp.eq.s32.totalorder %s18, 0
    %p53 = por %p51, %p52
    %p54 = scmp.ne.s32.totalorder %s40, %s41
    %p55 = scmp.eq.s32.totalorder %s19, 1
    %p56 = por %p54, %p55
    %p58 = scmp.ne.s32.totalorder %s41, %s57
    %p59 = scmp.eq.s32.totalorder %s19, 0
    %p60 = por %p58, %p59
    %s61 = ssub.s32 %s20, %s32
    %s62 = ssub.s32 %s21, %s28
    %s63 = sor.u32 %s61, %s62
    %p64 = scmp.eq.s32.totalorder %s63, 0
    %s66 = sadd.s32 %s65, 1
    %s67 = scalar_select %p64, %s65, %s66
    %p70 = pneg %p64
    %p71 = scmp.eq.s32.totalorder %s13, 1
    %p72 = por %p70, %p71
    %p73 = scmp.ne.s32.totalorder %s65, %s68
    %p74 = scmp.eq.s32.totalorder %s13, 0
    %p75 = por %p73, %p74
    %p76 = scmp.ne.s32.totalorder %s65, %s68
    %p77 = scmp.eq.s32.totalorder %s18, 1
    %p78 = por %p76, %p77
    %p79 = scmp.ne.s32.totalorder %s68, %s69
    %p80 = scmp.eq.s32.totalorder %s18, 0
    %p81 = por %p79, %p80
    %p82 = scmp.ne.s32.totalorder %s68, %s69
    %p83 = scmp.eq.s32.totalorder %s19, 1
    %p84 = por %p82, %p83
    %p86 = scmp.ne.s32.totalorder %s69, %s85
    %p87 = scmp.eq.s32.totalorder %s19, 0
    %p88 = por %p86, %p87
    %s89 = ssub.s32 %s20, %s32
    %s90 = ssub.s32 %s21, %s28
    %s91 = sor.u32 %s89, %s90
    %p92 = scmp.eq.s32.totalorder %s91, 0
    %s94 = sadd.s32 %s93, 1
    %s95 = scalar_select %p92, %s93, %s94
    %p98 = pneg %p92
    %p99 = scmp.eq.s32.totalorder %s13, 1
    %p100 = por %p98, %p99
    %p101 = scmp.ne.s32.totalorder %s93, %s96
    %p102 = scmp.eq.s32.totalorder %s13, 0
    %p103 = por %p101, %p102
    %p104 = scmp.ne.s32.totalorder %s93, %s96
    %p105 = scmp.eq.s32.totalorder %s18, 1
    %p106 = por %p104, %p105
    %p107 = scmp.ne.s32.totalorder %s96, %s97
    %p108 = scmp.eq.s32.totalorder %s18, 0
    %p109 = por %p107, %p108
    %p110 = scmp.ne.s32.totalorder %s96, %s97
    %p111 = scmp.eq.s32.totalorder %s19, 1
    %p112 = por %p110, %p111
    %p114 = scmp.ne.s32.totalorder %s97, %s113
    %p115 = scmp.eq.s32.totalorder %s19, 0
    %p116 = por %p114, %p115
    %s117 = ssub.s32 %s20, %s32
    %s118 = ssub.s32 %s21, %s28
    %s119 = sor.u32 %s117, %s118
    %p120 = scmp.eq.s32.totalorder %s119, 0
    %s122 = sadd.s32 %s121, 1
    %s123 = scalar_select %p120, %s121, %s122
    %p126 = pneg %p120
    %p127 = scmp.eq.s32.totalorder %s13, 1
    %p128 = por %p126, %p127
    %p129 = scmp.ne.s32.totalorder %s121, %s124
    %p130 = scmp.eq.s32.totalorder %s13, 0
    %p131 = por %p129, %p130
    %p132 = scmp.ne.s32.totalorder %s121, %s124
    %p133 = scmp.eq.s32.totalorder %s18, 1
    %p134 = por %p132, %p133
    %p135 = scmp.ne.s32.totalorder %s124, %s125
    %p136 = scmp.eq.s32.totalorder %s18, 0
    %p137 = por %p135, %p136
    %p138 = scmp.ne.s32.totalorder %s124, %s125
    %p139 = scmp.eq.s32.totalorder %s19, 1
    %p140 = por %p138, %p139
    %p142 = scmp.ne.s32.totalorder %s125, %s141
    %p143 = scmp.eq.s32.totalorder %s19, 0
    %p144 = por %p142, %p143
    %s145 = ssub.s32 %s21, %s28
    %p146 = scmp.eq.s32.totalorder %s145, 0
    %s148 = sadd.s32 %s147, 1
    %s149 = scalar_select %p146, %s147, %s148
    %p152 = pneg %p146
    %p153 = scmp.eq.s32.totalorder %s13, 1
    %p154 = por %p152, %p153
    %p155 = scmp.ne.s32.totalorder %s147, %s150
    %p156 = scmp.eq.s32.totalorder %s13, 0
    %p157 = por %p155, %p156
    %p158 = scmp.ne.s32.totalorder %s147, %s150
    %p159 = scmp.eq.s32.totalorder %s18, 1
    %p160 = por %p158, %p159
    %p161 = scmp.ne.s32.totalorder %s150, %s151
    %p162 = scmp.eq.s32.totalorder %s18, 0
    %p163 = por %p161, %p162
    %p164 = scmp.ne.s32.totalorder %s150, %s151
    %p165 = scmp.eq.s32.totalorder %s19, 1
    %p166 = por %p164, %p165
    %p168 = scmp.ne.s32.totalorder %s151, %s167
    %p169 = scmp.eq.s32.totalorder %s19, 0
    %p170 = por %p168, %p169
    %s171 = ssub.s32 %s20, %s32
    %s172 = ssub.s32 %s21, %s28
    %s173 = sor.u32 %s171, %s172
    %p174 = scmp.eq.s32.totalorder %s173, 0
    %s176 = sadd.s32 %s175, 1
    %s177 = scalar_select %p174, %s175, %s176
    %p180 = pneg %p174
    %p181 = scmp.eq.s32.totalorder %s13, 1
    %p182 = por %p180, %p181
    %p183 = scmp.ne.s32.totalorder %s175, %s178
    %p184 = scmp.eq.s32.totalorder %s13, 0
    %p185 = por %p183, %p184
    %p186 = scmp.ne.s32.totalorder %s175, %s178
    %p187 = scmp.eq.s32.totalorder %s18, 1
    %p188 = por %p186, %p187
    %p189 = scmp.ne.s32.totalorder %s178, %s179
    %p190 = scmp.eq.s32.totalorder %s18, 0
    %p191 = por %p189, %p190
    %p192 = scmp.ne.s32.totalorder %s178, %s179
    %p193 = scmp.eq.s32.totalorder %s19, 1
    %p194 = por %p192, %p193
    %p196 = scmp.ne.s32.totalorder %s179, %s195
    %p197 = scmp.eq.s32.totalorder %s19, 0
    %p198 = por %p196, %p197
    %s199 = ssub.s32 %s20, %s32
    %s200 = ssub.s32 %s21, %s28
    %s201 = sor.u32 %s199, %s200
    %p202 = scmp.eq.s32.totalorder %s201, 0
    %s204 = sadd.s32 %s203, 1
    %s205 = scalar_select %p202, %s203, %s204
    %p208 = pneg %p202
    %p209 = scmp.eq.s32.totalorder %s13, 1
    %p210 = por %p208, %p209
    %p211 = scmp.ne.s32.totalorder %s203, %s206
    %p212 = scmp.eq.s32.totalorder %s13, 0
    %p213 = por %p211, %p212
    %p214 = scmp.ne.s32.totalorder %s203, %s206
    %p215 = scmp.eq.s32.totalorder %s18, 1
    %p216 = por %p214, %p215
    %p217 = scmp.ne.s32.totalorder %s206, %s207
    %p218 = scmp.eq.s32.totalorder %s18, 0
    %p219 = por %p217, %p218
    %p220 = scmp.ne.s32.totalorder %s206, %s207
    %p221 = scmp.eq.s32.totalorder %s19, 1
    %p222 = por %p220, %p221
    %p224 = scmp.ne.s32.totalorder %s207, %s223
    %p225 = scmp.eq.s32.totalorder %s19, 0
    %p226 = por %p224, %p225
    %p227 = scmp.le.s32.totalorder 1, %s13
    %p228 = scmp.lt.s32.totalorder %s13, 3
    %p229 = pnand %p227, %p228
    %p230 = pneg %p229
    // Predicated region
    $region9: #{forward.6} parent=5 // pred_check
      _
    $region10: #{forward.6} parent=5 // pred_check_branch
      %232 = sbr.rel (%p229) target = $region12
    $region11: #{forward.6} parent=5 // pred_region
      %s233 = ssub.s32 %s13, 1
      // Predicated region
      $region13: #{forward.6} parent=11 // pred_check
        %p234 = pneg %p163
      $region14: #{forward.6} parent=11 // pred_check_branch
        %236 = sbr.rel (%p234) target = $region16
      $region15: #{forward.6} parent=11 // pred_region
        %p237 = scmp.lt.s32.totalorder %s23, 0
        %s238 = scalar_select %p237, %s23, 0
        %s239 = smul.addr %s238, 8
        %s240 = scalar_lea.vmem %s4, %s239
      $region16: #{forward.6} parent=11 // pred_fallthru
        _
    $region12: #{forward.6} parent=5 // pred_fallthru
      _
    %p241 = scmp.lt.s32.totalorder %s13, 2
    // Predicated region
    $region17: #{forward.6} parent=5 // pred_check
      %p242 = pneg %p241
    $region18: #{forward.6} parent=5 // pred_check_branch
      %244 = sbr.rel (%p242) target = $region20
    $region19: #{forward.6} parent=5 // pred_region
      // Predicated region
      $region21: #{forward.6} parent=19 // pred_check
        %p245 = pneg %p47
      $region22: #{forward.6} parent=19 // pred_check_branch
        %247 = sbr.rel (%p245) target = $region24
      $region23: #{forward.6} parent=19 // pred_region
        %p248 = scmp.lt.s32.totalorder %s20, 1
        %s249 = scalar_select %p248, %s20, 1
        %p250 = scmp.lt.s32.totalorder %s21, 0
        %s251 = scalar_select %p250, %s21, 0
        %s252 = smul.addr %s249, 2
        %s253 = sadd.s32 %s251, %s252
        %s254 = smul.addr %s253, 8
        %s255 = scalar_lea.vmem %s0, %s254
      $region24: #{forward.6} parent=19 // pred_fallthru
        _
      // Predicated region
      $region25: #{forward.6} parent=19 // pred_check
        %p256 = pneg %p75
      $region26: #{forward.6} parent=19 // pred_check_branch
        %258 = sbr.rel (%p256) target = $region28
      $region27: #{forward.6} parent=19 // pred_region
        %p259 = scmp.lt.s32.totalorder %s20, 1
        %s260 = scalar_select %p259, %s20, 1
        %p261 = scmp.lt.s32.totalorder %s21, 0
        %s262 = scalar_select %p261, %s21, 0
        %s263 = smul.addr %s260, 2
        %s264 = sadd.s32 %s262, %s263
        %s265 = smul.addr %s264, 8
        %s266 = scalar_lea.vmem %s1, %s265
      $region28: #{forward.6} parent=19 // pred_fallthru
        _
      // Predicated region
      $region29: #{forward.6} parent=19 // pred_check
        %p267 = pneg %p103
      $region30: #{forward.6} parent=19 // pred_check_branch
        %269 = sbr.rel (%p267) target = $region32
      $region31: #{forward.6} parent=19 // pred_region
        %p270 = scmp.lt.s32.totalorder %s20, 1
        %s271 = scalar_select %p270, %s20, 1
        %p272 = scmp.lt.s32.totalorder %s21, 0
        %s273 = scalar_select %p272, %s21, 0
        %s274 = smul.addr %s271, 2
        %s275 = sadd.s32 %s273, %s274
        %s276 = smul.addr %s275, 8
        %s277 = scalar_lea.vmem %s2, %s276
      $region32: #{forward.6} parent=19 // pred_fallthru
        _
      // Predicated region
      $region33: #{forward.6} parent=19 // pred_check
        %p278 = pneg %p131
      $region34: #{forward.6} parent=19 // pred_check_branch
        %280 = sbr.rel (%p278) target = $region36
      $region35: #{forward.6} parent=19 // pred_region
        %p281 = scmp.lt.s32.totalorder %s20, 1
        %s282 = scalar_select %p281, %s20, 1
        %p283 = scmp.lt.s32.totalorder %s21, 0
        %s284 = scalar_select %p283, %s21, 0
        %s285 = smul.addr %s282, 2
        %s286 = sadd.s32 %s284, %s285
        %s287 = smul.addr %s286, 8
        %s288 = scalar_lea.vmem %s3, %s287
      $region36: #{forward.6} parent=19 // pred_fallthru
        _
    $region20: #{forward.6} parent=5 // pred_fallthru
      _
    %p289 = scmp.le.s32.totalorder 1, %s13
    %p290 = scmp.lt.s32.totalorder %s13, 3
    %p291 = pnand %p289, %p290
    %p292 = pneg %p291
    // Predicated region
    $region37: #{forward.6} parent=5 // pred_check
      _
    $region38: #{forward.6} parent=5 // pred_check_branch
      %294 = sbr.rel (%p291) target = $region40
    $region39: #{forward.6} parent=5 // pred_region
      %s295 = ssub.s32 %s13, 1
      %p296 = scmp.lt.s32.totalorder %s22, 1
      %s297 = scalar_select %p296, %s22, 1
      %p298 = scmp.lt.s32.totalorder %s23, 0
      %s299 = scalar_select %p298, %s23, 0
      %s300 = smul.addr %s297, 2
      %s301 = sadd.s32 %s299, %s300
      %s302 = smul.addr %s301, 8
      %s303 = scalar_lea.vmem %s0, %s302
      %p304 = pneg %p53
      %p305 = pneg %p50
      %p306 = scmp.lt.s32.totalorder %s22, 1
      %s307 = scalar_select %p306, %s22, 1
      %p308 = scmp.lt.s32.totalorder %s23, 0
      %s309 = scalar_select %p308, %s23, 0
      %s310 = smul.addr %s307, 2
      %s311 = sadd.s32 %s309, %s310
      %s312 = smul.addr %s311, 8
      %s313 = scalar_lea.vmem %s1, %s312
      %p314 = pneg %p81
      %p315 = pneg %p78
      %p316 = scmp.lt.s32.totalorder %s22, 1
      %s317 = scalar_select %p316, %s22, 1
      %p318 = scmp.lt.s32.totalorder %s23, 0
      %s319 = scalar_select %p318, %s23, 0
      %s320 = smul.addr %s317, 2
      %s321 = sadd.s32 %s319, %s320
      %s322 = smul.addr %s321, 8
      %s323 = scalar_lea.vmem %s2, %s322
      %p324 = pneg %p109
      %p325 = pneg %p106
      %p326 = scmp.lt.s32.totalorder %s22, 1
      %s327 = scalar_select %p326, %s22, 1
      %p328 = scmp.lt.s32.totalorder %s23, 0
      %s329 = scalar_select %p328, %s23, 0
      %s330 = smul.addr %s327, 2
      %s331 = sadd.s32 %s329, %s330
      %s332 = smul.addr %s331, 8
      %s333 = scalar_lea.vmem %s3, %s332
      %p334 = pneg %p137
      %p335 = pneg %p134
      %p336 = scmp.lt.s32.totalorder %s23, 0
      %s337 = scalar_select %p336, %s23, 0
      %s338 = smul.addr %s337, 8
      %s339 = scalar_lea.vmem %s4, %s338
      %p340 = pneg %p163
      %p341 = pneg %p160
      %p342 = pneg %p191
      %p343 = pneg %p188
      %s344 = smul.u32 4, %s22
      %p345 = scmp.lt.s32.totalorder %s344, 7
      %s346 = scalar_select %p345, %s344, 7
      %p347 = scmp.lt.s32.totalorder %s23, 0
      %s348 = scalar_select %p347, %s23, 0
      %s349 = smul.addr %s346, 2
      %s350 = sadd.s32 %s348, %s349
      %s351 = smul.addr %s350, 8
      %s352 = scalar_lea.vmem %s5, %s351
      %p353 = pneg %p219
      %p354 = pneg %p216
      %s355 = smul.u32 4, %s22
      %p356 = scmp.lt.s32.totalorder %s355, 7
      %s357 = scalar_select %p356, %s355, 7
      %p358 = scmp.lt.s32.totalorder %s23, 0
      %s359 = scalar_select %p358, %s23, 0
      %s360 = smul.addr %s357, 2
      %s361 = sadd.s32 %s359, %s360
      %s362 = smul.addr %s361, 8
      %s363 = scalar_lea.vmem %s6, %s362
      %p364 = scmp.lt.s32.totalorder %s22, 1
      %s365 = scalar_select %p364, %s22, 1
      %p366 = scmp.lt.s32.totalorder %s23, 0
      %s367 = scalar_select %p366, %s23, 0
      %s368 = smul.addr %s365, 2
      %s369 = sadd.s32 %s367, %s368
      %s370 = smul.addr %s369, 8
      %s371 = scalar_lea.vmem %s0, %s370
      %p372 = scmp.lt.s32.totalorder %s22, 1
      %s373 = scalar_select %p372, %s22, 1
      %p374 = scmp.lt.s32.totalorder %s23, 0
      %s375 = scalar_select %p374, %s23, 0
      %s376 = smul.addr %s373, 2
      %s377 = sadd.s32 %s375, %s376
      %s378 = smul.addr %s377, 8
      %s379 = scalar_lea.vmem %s1, %s378
      %p380 = scmp.lt.s32.totalorder %s22, 1
      %s381 = scalar_select %p380, %s22, 1
      %p382 = scmp.lt.s32.totalorder %s23, 0
      %s383 = scalar_select %p382, %s23, 0
      %s384 = smul.addr %s381, 2
      %s385 = sadd.s32 %s383, %s384
      %s386 = smul.addr %s385, 8
      %s387 = scalar_lea.vmem %s2, %s386
      %p388 = scmp.lt.s32.totalorder %s22, 1
      %s389 = scalar_select %p388, %s22, 1
      %p390 = scmp.lt.s32.totalorder %s23, 0
      %s391 = scalar_select %p390, %s23, 0
      %s392 = smul.addr %s389, 2
      %s393 = sadd.s32 %s391, %s392
      %s394 = smul.addr %s393, 8
      %s395 = scalar_lea.vmem %s3, %s394
      %p396 = scmp.lt.s32.totalorder %s23, 0
      %s397 = scalar_select %p396, %s23, 0
      %s398 = smul.addr %s397, 8
      %s399 = scalar_lea.vmem %s4, %s398
      %s400 = smul.u32 4, %s22
      %p401 = scmp.lt.s32.totalorder %s400, 7
      %s402 = scalar_select %p401, %s400, 7
      %p403 = scmp.lt.s32.totalorder %s23, 0
      %s404 = scalar_select %p403, %s23, 0
      %s405 = smul.addr %s402, 2
      %s406 = sadd.s32 %s404, %s405
      %s407 = smul.addr %s406, 8
      %s408 = scalar_lea.vmem %s5, %s407
      %s409 = smul.u32 4, %s22
      %s410 = smul.u32 4, %s22
      %p411 = scmp.lt.s32.totalorder %s410, 7
      %s412 = scalar_select %p411, %s410, 7
      %p413 = scmp.lt.s32.totalorder %s23, 0
      %s414 = scalar_select %p413, %s23, 0
      %s415 = smul.addr %s412, 2
      %s416 = sadd.s32 %s414, %s415
      %s417 = smul.addr %s416, 8
      %s418 = scalar_lea.vmem %s6, %s417
      %s419 = smul.u32 4, %s22
      %s420 = scalar_lea.vmem %s399, 64
      %v421 = vld [vmem:[%s420] sm:$0xff]
      %v422 = vld [vmem:[%s420 + $0x8] sm:$0x1]
      %s423 = scalar_lea.vmem %s399, 80
      %v424 = vld [vmem:[%s423] sm:$0xff]
      %v425 = vld [vmem:[%s423 + $0x8] sm:$0x1]
      %s426 = scalar_lea.vmem %s399, 96
      %v427 = vld [vmem:[%s426] sm:$0xff]
      %v428 = vld [vmem:[%s426 + $0x8] sm:$0x1]
      %v429 = vld [vmem:[%s371] sm:$0xff]
      %v430 = vld [vmem:[%s371 + $0x8] sm:$0x1]
      %v431 = vmul.f32 %v429, %v421
      %v432 = vmul.f32 %v430, %v422
      %v433 = vld [vmem:[%s387] sm:$0xff]
      %v434 = vld [vmem:[%s387 + $0x8] sm:$0x1]
      %v435 = vmul.f32 %v427, %v433
      %v436 = vmul.f32 %v428, %v434
      %v437 = vadd.f32 %v431, %v435
      %v438 = vadd.f32 %v432, %v436
      %v439 = vmul.f32 %v437, %v424
      %v440 = vmul.f32 %v438, %v425
      %v441 = vld [vmem:[%s379] sm:$0xff]
      %v442 = vld [vmem:[%s379 + $0x8] sm:$0x1]
      %v443 = vmul.f32 %v441, %v421
      %v444 = vmul.f32 %v442, %v422
      %v445 = vld [vmem:[%s395] sm:$0xff]
      %v446 = vld [vmem:[%s395 + $0x8] sm:$0x1]
      %v447 = vmul.f32 %v427, %v445
      %v448 = vmul.f32 %v428, %v446
      %v449 = vadd.f32 %v443, %v447
      %v450 = vadd.f32 %v444, %v448
      %v451 = vmul.f32 %v449, %v424
      %v452 = vmul.f32 %v450, %v425
      %v453 = vld [vmem:[%s399] sm:$0xff]
      %v454 = vld [vmem:[%s399 + $0x8] sm:$0x1]
      %v455 = vsub.f32 0.0, %v453
      %v456 = vsub.f32 0.0, %v454
      %v457 = vmul.f32 %v455, %v451
      %v458 = vmul.f32 %v456, %v452
      %vm459 = vcmask 130048
      %460 = vst.msk [vmem:[%s408] sm:$0xff] %vm459, %v457
      %vm461 = vcmask 122880
      %462 = vst.msk [vmem:[%s408 + $0x8] sm:$0x1] %vm461, %v458
      %v463 = vmul.f32 %v453, %v439
      %v464 = vmul.f32 %v454, %v440
      %465 = vst.msk [vmem:[%s418] sm:$0xff] %vm459, %v463
      %466 = vst.msk [vmem:[%s418 + $0x8] sm:$0x1] %vm461, %v464
      %s467 = scalar_lea.vmem %s399, 16
      %v468 = vld [vmem:[%s467] sm:$0xff]
      %v469 = vld [vmem:[%s467 + $0x8] sm:$0x1]
      %v470 = vsub.f32 0.0, %v468
      %v471 = vsub.f32 0.0, %v469
      %v472 = vmul.f32 %v470, %v451
      %v473 = vmul.f32 %v471, %v452
      %s474 = scalar_lea.vmem %s408, 16
      %475 = vst.msk [vmem:[%s474] sm:$0xff] %vm459, %v472
      %476 = vst.msk [vmem:[%s474 + $0x8] sm:$0x1] %vm461, %v473
      %v477 = vmul.f32 %v468, %v439
      %v478 = vmul.f32 %v469, %v440
      %s479 = scalar_lea.vmem %s418, 16
      %480 = vst.msk [vmem:[%s479] sm:$0xff] %vm459, %v477
      %481 = vst.msk [vmem:[%s479 + $0x8] sm:$0x1] %vm461, %v478
      %s482 = scalar_lea.vmem %s399, 32
      %v483 = vld [vmem:[%s482] sm:$0xff]
      %v484 = vld [vmem:[%s482 + $0x8] sm:$0x1]
      %v485 = vsub.f32 0.0, %v483
      %v486 = vsub.f32 0.0, %v484
      %v487 = vmul.f32 %v485, %v451
      %v488 = vmul.f32 %v486, %v452
      %s489 = scalar_lea.vmem %s408, 32
      %490 = vst.msk [vmem:[%s489] sm:$0xff] %vm459, %v487
      %491 = vst.msk [vmem:[%s489 + $0x8] sm:$0x1] %vm461, %v488
      %v492 = vmul.f32 %v483, %v439
      %v493 = vmul.f32 %v484, %v440
      %s494 = scalar_lea.vmem %s418, 32
      %495 = vst.msk [vmem:[%s494] sm:$0xff] %vm459, %v492
      %496 = vst.msk [vmem:[%s494 + $0x8] sm:$0x1] %vm461, %v493
      %s497 = scalar_lea.vmem %s399, 48
      %v498 = vld [vmem:[%s497] sm:$0xff]
      %v499 = vld [vmem:[%s497 + $0x8] sm:$0x1]
      %v500 = vsub.f32 0.0, %v498
      %v501 = vsub.f32 0.0, %v499
      %v502 = vmul.f32 %v500, %v451
      %v503 = vmul.f32 %v501, %v452
      %s504 = scalar_lea.vmem %s408, 48
      %505 = vst.msk [vmem:[%s504] sm:$0xff] %vm459, %v502
      %506 = vst.msk [vmem:[%s504 + $0x8] sm:$0x1] %vm461, %v503
      %v507 = vmul.f32 %v498, %v439
      %v508 = vmul.f32 %v499, %v440
      %s509 = scalar_lea.vmem %s418, 48
      %510 = vst.msk [vmem:[%s509] sm:$0xff] %vm459, %v507
      %511 = vst.msk [vmem:[%s509 + $0x8] sm:$0x1] %vm461, %v508
      %s512 = smul.u32 4, %s22
      %p513 = scmp.lt.s32.totalorder %s512, 7
      %s514 = scalar_select %p513, %s512, 7
      %p515 = scmp.lt.s32.totalorder %s23, 0
      %s516 = scalar_select %p515, %s23, 0
      %s517 = smul.addr %s514, 2
      %s518 = sadd.s32 %s516, %s517
      %s519 = smul.addr %s518, 8
      %s520 = scalar_lea.vmem %s5, %s519
      %s521 = smul.u32 4, %s22
      %p522 = scmp.lt.s32.totalorder %s521, 7
      %s523 = scalar_select %p522, %s521, 7
      %p524 = scmp.lt.s32.totalorder %s23, 0
      %s525 = scalar_select %p524, %s23, 0
      %s526 = smul.addr %s523, 2
      %s527 = sadd.s32 %s525, %s526
      %s528 = smul.addr %s527, 8
      %s529 = scalar_lea.vmem %s6, %s528
      // Predicated region
      $region41: #{forward.6} parent=39 // pred_check
        %p530 = pneg %p188
      $region42: #{forward.6} parent=39 // pred_check_branch
        %532 = sbr.rel (%p530) target = $region44
      $region43: #{forward.6} parent=39 // pred_region
        %s533 = smul.u32 4, %s22
      $region44: #{forward.6} parent=39 // pred_fallthru
        _
      // Predicated region
      $region45: #{forward.6} parent=39 // pred_check
        %p534 = pneg %p216
      $region46: #{forward.6} parent=39 // pred_check_branch
        %536 = sbr.rel (%p534) target = $region48
      $region47: #{forward.6} parent=39 // pred_region
        %s537 = smul.u32 4, %s22
      $region48: #{forward.6} parent=39 // pred_fallthru
        _
    $region40: #{forward.6} parent=5 // pred_fallthru
      _
    %p538 = scmp.le.s32.totalorder 2, %s13
    // Predicated region
    $region49: #{forward.6} parent=5 // pred_check
      %p539 = pneg %p538
    $region50: #{forward.6} parent=5 // pred_check_branch
      %541 = sbr.rel (%p539) target = $region52
    $region51: #{forward.6} parent=5 // pred_region
      %s542 = ssub.s32 %s13, 2
      // Predicated region
      $region53: #{forward.6} parent=51 // pred_check
        %p543 = pneg %p194
      $region54: #{forward.6} parent=51 // pred_check_branch
        %545 = sbr.rel (%p543) target = $region56
      $region55: #{forward.6} parent=51 // pred_region
        %s546 = smul.u32 4, %s24
        %p547 = scmp.lt.s32.totalorder %s546, 7
        %s548 = scalar_select %p547, %s546, 7
        %p549 = scmp.lt.s32.totalorder %s25, 0
        %s550 = scalar_select %p549, %s25, 0
        %s551 = smul.addr %s548, 2
        %s552 = sadd.s32 %s550, %s551
        %s553 = smul.addr %s552, 8
        %s554 = scalar_lea.vmem %s5, %s553
      $region56: #{forward.6} parent=51 // pred_fallthru
        _
      // Predicated region
      $region57: #{forward.6} parent=51 // pred_check
        %p555 = pneg %p222
      $region58: #{forward.6} parent=51 // pred_check_branch
        %557 = sbr.rel (%p555) target = $region60
      $region59: #{forward.6} parent=51 // pred_region
        %s558 = smul.u32 4, %s24
        %p559 = scmp.lt.s32.totalorder %s558, 7
        %s560 = scalar_select %p559, %s558, 7
        %p561 = scmp.lt.s32.totalorder %s25, 0
        %s562 = scalar_select %p561, %s25, 0
        %s563 = smul.addr %s560, 2
        %s564 = sadd.s32 %s562, %s563
        %s565 = smul.addr %s564, 8
        %s566 = scalar_lea.vmem %s6, %s565
      $region60: #{forward.6} parent=51 // pred_fallthru
        _
    $region52: #{forward.6} parent=5 // pred_fallthru
      _
  $region6: #{forward.6} parent=0 // loop_footer
    %s17 = sadd.s32 1, %s13
  $region7: #{forward.6} parent=0 // loop_footer_branch
    %12 = sbr.rel target = $region3
  $region8: #{forward.6} parent=0 // loop_exit
    _

// kernel: forward.7
$region0: #{forward.7}
  #allocation0 [shape = 'u32[]', space=smem, size = 0x4, offset = 0x4, fixed_abs, tag = 'smem constant byte address 0x4 - core index']
  #allocation1 [shape = 'u32[144,128]{1,0:T(1,128)}', space=vmem, size = 0x12000, scoped, tag = 'internal scratch']
  %s0 = inlined_call_operand.vmem [shape: f32[2,9,16], index: 0, kind: input, shape index: {}]
  %s1 = inlined_call_operand.vmem [shape: f32[2,9,16], index: 1, kind: input, shape index: {}]
  %s2 = inlined_call_operand.vmem [shape: f32[2,9,16], index: 2, kind: input, shape index: {}]
  %s3 = inlined_call_operand.vmem [shape: f32[2,9,16], index: 3, kind: input, shape index: {}]
  %s4 = inlined_call_operand.vmem [shape: f32[2,9,16], index: 4, kind: input, shape index: {}]
  %s5 = inlined_call_operand.vmem [shape: f32[2,9,16], index: 5, kind: input, shape index: {}]
  %s6 = inlined_call_operand.vmem [shape: f32[9,9,16], index: 6, kind: input, shape index: {}]
  %s7 = inlined_call_operand.vmem [shape: f32[2,9,16], index: 7, kind: output, shape index: {0}]
  %s8 = inlined_call_operand.vmem [shape: f32[2,9,16], index: 8, kind: output, shape index: {1}]
  %s9 = inlined_call_operand.vmem [shape: f32[8,9,16], index: 9, kind: output, shape index: {2}]
  %s10 = inlined_call_operand.vmem [shape: f32[8,9,16], index: 10, kind: output, shape index: {3}]
  %11 = xla_tuple %s7, %s8, %s9, %s10
  %s12 = sld [smem:[#allocation0]]
  $region85: #{forward.7} parent=0
    _
  %s14 = ssub.s32 1, %s12
  %s15 = scalar_select 0, %s14, %s12
  loop: start=0, step=1, limit=4
  $region2: #{forward.7} parent=0 // loop_pre_header
    _
  $region3: #{forward.7} parent=0 // loop_header
    %s17 = sphi 0, %s21
    %p18 = scmp.ge.s32.totalorder %s17, 4
    %s24 = sphi 0, %s36
    %s25 = sphi 0, %s32
    %s26 = sphi 0, %s24
    %s27 = sphi 0, %s25
    %s28 = sphi 0, %s26
    %s29 = sphi 0, %s27
    %s41 = sphi 0, %s43
    %s44 = sphi 0, %s41
    %s45 = sphi 0, %s44
    %s61 = sphi 0, %s45
    %s69 = sphi 0, %s71
    %s72 = sphi 0, %s69
    %s73 = sphi 0, %s72
    %s89 = sphi 0, %s73
    %s97 = sphi 0, %s99
    %s100 = sphi 0, %s97
    %s101 = sphi 0, %s100
    %s117 = sphi 0, %s101
    %s125 = sphi 0, %s127
    %s128 = sphi 0, %s125
    %s129 = sphi 0, %s128
    %s145 = sphi 0, %s129
    %s153 = sphi 0, %s155
    %s156 = sphi 0, %s153
    %s157 = sphi 0, %s156
    %s173 = sphi 0, %s157
    %s181 = sphi 0, %s183
    %s184 = sphi 0, %s181
    %s185 = sphi 0, %s184
    %s201 = sphi 0, %s185
    %s207 = sphi 0, %s209
    %s210 = sphi 0, %s207
    %s211 = sphi 0, %s210
    %s227 = sphi 0, %s211
    %s235 = sphi 0, %s237
    %s238 = sphi 0, %s235
    %s239 = sphi 0, %s238
    %s255 = sphi 0, %s239
    %s263 = sphi 0, %s265
    %s266 = sphi 0, %s263
    %s267 = sphi 0, %s266
    %s283 = sphi 0, %s267
    %s291 = sphi 0, %s293
    %s294 = sphi 0, %s291
    %s295 = sphi 0, %s294
    %s311 = sphi 0, %s295
    %s319 = sphi 0, %s321
    %s322 = sphi 0, %s319
    %s323 = sphi 0, %s322
    %s339 = sphi 0, %s323
  $region4: #{forward.7} parent=0 // loop_header_branch
    %20 = sbr.rel (%p18) target = $region8
  $region5: #{forward.7} parent=0 // loop_body
    %s22 = ssub.s32 %s17, 1
    %s23 = ssub.s32 %s17, 2
    %s30 = sadd.s32 1, %s25
    %p31 = scmp.ge.s32.totalorder %s30, 1
    %s32 = scalar_select %p31, 0, %s30
    %s33 = sadd.s32 1, %s24
    %s34 = scalar_select %p31, %s33, %s24
    %p35 = scmp.ge.s32.totalorder %s34, 2
    %s36 = scalar_select %p35, 0, %s34
    %s37 = ssub.s32 %s24, %s36
    %s38 = ssub.s32 %s25, %s32
    %s39 = sor.u32 %s37, %s38
    %p40 = scmp.eq.s32.totalorder %s39, 0
    %s42 = sadd.s32 %s41, 1
    %s43 = scalar_select %p40, %s41, %s42
    %p46 = pneg %p40
    %p47 = scmp.eq.s32.totalorder %s17, 1
    %p48 = por %p46, %p47
    %p49 = scmp.ne.s32.totalorder %s41, %s44
    %p50 = scmp.eq.s32.totalorder %s17, 0
    %p51 = por %p49, %p50
    %p52 = scmp.ne.s32.totalorder %s41, %s44
    %p53 = scmp.eq.s32.totalorder %s22, 1
    %p54 = por %p52, %p53
    %p55 = scmp.ne.s32.totalorder %s44, %s45
    %p56 = scmp.eq.s32.totalorder %s22, 0
    %p57 = por %p55, %p56
    %p58 = scmp.ne.s32.totalorder %s44, %s45
    %p59 = scmp.eq.s32.totalorder %s23, 1
    %p60 = por %p58, %p59
    %p62 = scmp.ne.s32.totalorder %s45, %s61
    %p63 = scmp.eq.s32.totalorder %s23, 0
    %p64 = por %p62, %p63
    %s65 = ssub.s32 %s24, %s36
    %s66 = ssub.s32 %s25, %s32
    %s67 = sor.u32 %s65, %s66
    %p68 = scmp.eq.s32.totalorder %s67, 0
    %s70 = sadd.s32 %s69, 1
    %s71 = scalar_select %p68, %s69, %s70
    %p74 = pneg %p68
    %p75 = scmp.eq.s32.totalorder %s17, 1
    %p76 = por %p74, %p75
    %p77 = scmp.ne.s32.totalorder %s69, %s72
    %p78 = scmp.eq.s32.totalorder %s17, 0
    %p79 = por %p77, %p78
    %p80 = scmp.ne.s32.totalorder %s69, %s72
    %p81 = scmp.eq.s32.totalorder %s22, 1
    %p82 = por %p80, %p81
    %p83 = scmp.ne.s32.totalorder %s72, %s73
    %p84 = scmp.eq.s32.totalorder %s22, 0
    %p85 = por %p83, %p84
    %p86 = scmp.ne.s32.totalorder %s72, %s73
    %p87 = scmp.eq.s32.totalorder %s23, 1
    %p88 = por %p86, %p87
    %p90 = scmp.ne.s32.totalorder %s73, %s89
    %p91 = scmp.eq.s32.totalorder %s23, 0
    %p92 = por %p90, %p91
    %s93 = ssub.s32 %s24, %s36
    %s94 = ssub.s32 %s25, %s32
    %s95 = sor.u32 %s93, %s94
    %p96 = scmp.eq.s32.totalorder %s95, 0
    %s98 = sadd.s32 %s97, 1
    %s99 = scalar_select %p96, %s97, %s98
    %p102 = pneg %p96
    %p103 = scmp.eq.s32.totalorder %s17, 1
    %p104 = por %p102, %p103
    %p105 = scmp.ne.s32.totalorder %s97, %s100
    %p106 = scmp.eq.s32.totalorder %s17, 0
    %p107 = por %p105, %p106
    %p108 = scmp.ne.s32.totalorder %s97, %s100
    %p109 = scmp.eq.s32.totalorder %s22, 1
    %p110 = por %p108, %p109
    %p111 = scmp.ne.s32.totalorder %s100, %s101
    %p112 = scmp.eq.s32.totalorder %s22, 0
    %p113 = por %p111, %p112
    %p114 = scmp.ne.s32.totalorder %s100, %s101
    %p115 = scmp.eq.s32.totalorder %s23, 1
    %p116 = por %p114, %p115
    %p118 = scmp.ne.s32.totalorder %s101, %s117
    %p119 = scmp.eq.s32.totalorder %s23, 0
    %p120 = por %p118, %p119
    %s121 = ssub.s32 %s24, %s36
    %s122 = ssub.s32 %s25, %s32
    %s123 = sor.u32 %s121, %s122
    %p124 = scmp.eq.s32.totalorder %s123, 0
    %s126 = sadd.s32 %s125, 1
    %s127 = scalar_select %p124, %s125, %s126
    %p130 = pneg %p124
    %p131 = scmp.eq.s32.totalorder %s17, 1
    %p132 = por %p130, %p131
    %p133 = scmp.ne.s32.totalorder %s125, %s128
    %p134 = scmp.eq.s32.totalorder %s17, 0
    %p135 = por %p133, %p134
    %p136 = scmp.ne.s32.totalorder %s125, %s128
    %p137 = scmp.eq.s32.totalorder %s22, 1
    %p138 = por %p136, %p137
    %p139 = scmp.ne.s32.totalorder %s128, %s129
    %p140 = scmp.eq.s32.totalorder %s22, 0
    %p141 = por %p139, %p140
    %p142 = scmp.ne.s32.totalorder %s128, %s129
    %p143 = scmp.eq.s32.totalorder %s23, 1
    %p144 = por %p142, %p143
    %p146 = scmp.ne.s32.totalorder %s129, %s145
    %p147 = scmp.eq.s32.totalorder %s23, 0
    %p148 = por %p146, %p147
    %s149 = ssub.s32 %s24, %s36
    %s150 = ssub.s32 %s25, %s32
    %s151 = sor.u32 %s149, %s150
    %p152 = scmp.eq.s32.totalorder %s151, 0
    %s154 = sadd.s32 %s153, 1
    %s155 = scalar_select %p152, %s153, %s154
    %p158 = pneg %p152
    %p159 = scmp.eq.s32.totalorder %s17, 1
    %p160 = por %p158, %p159
    %p161 = scmp.ne.s32.totalorder %s153, %s156
    %p162 = scmp.eq.s32.totalorder %s17, 0
    %p163 = por %p161, %p162
    %p164 = scmp.ne.s32.totalorder %s153, %s156
    %p165 = scmp.eq.s32.totalorder %s22, 1
    %p166 = por %p164, %p165
    %p167 = scmp.ne.s32.totalorder %s156, %s157
    %p168 = scmp.eq.s32.totalorder %s22, 0
    %p169 = por %p167, %p168
    %p170 = scmp.ne.s32.totalorder %s156, %s157
    %p171 = scmp.eq.s32.totalorder %s23, 1
    %p172 = por %p170, %p171
    %p174 = scmp.ne.s32.totalorder %s157, %s173
    %p175 = scmp.eq.s32.totalorder %s23, 0
    %p176 = por %p174, %p175
    %s177 = ssub.s32 %s24, %s36
    %s178 = ssub.s32 %s25, %s32
    %s179 = sor.u32 %s177, %s178
    %p180 = scmp.eq.s32.totalorder %s179, 0
    %s182 = sadd.s32 %s181, 1
    %s183 = scalar_select %p180, %s181, %s182
    %p186 = pneg %p180
    %p187 = scmp.eq.s32.totalorder %s17, 1
    %p188 = por %p186, %p187
    %p189 = scmp.ne.s32.totalorder %s181, %s184
    %p190 = scmp.eq.s32.totalorder %s17, 0
    %p191 = por %p189, %p190
    %p192 = scmp.ne.s32.totalorder %s181, %s184
    %p193 = scmp.eq.s32.totalorder %s22, 1
    %p194 = por %p192, %p193
    %p195 = scmp.ne.s32.totalorder %s184, %s185
    %p196 = scmp.eq.s32.totalorder %s22, 0
    %p197 = por %p195, %p196
    %p198 = scmp.ne.s32.totalorder %s184, %s185
    %p199 = scmp.eq.s32.totalorder %s23, 1
    %p200 = por %p198, %p199
    %p202 = scmp.ne.s32.totalorder %s185, %s201
    %p203 = scmp.eq.s32.totalorder %s23, 0
    %p204 = por %p202, %p203
    %s205 = ssub.s32 %s25, %s32
    %p206 = scmp.eq.s32.totalorder %s205, 0
    %s208 = sadd.s32 %s207, 1
    %s209 = scalar_select %p206, %s207, %s208
    %p212 = pneg %p206
    %p213 = scmp.eq.s32.totalorder %s17, 1
    %p214 = por %p212, %p213
    %p215 = scmp.ne.s32.totalorder %s207, %s210
    %p216 = scmp.eq.s32.totalorder %s17, 0
    %p217 = por %p215, %p216
    %p218 = scmp.ne.s32.totalorder %s207, %s210
    %p219 = scmp.eq.s32.totalorder %s22, 1
    %p220 = por %p218, %p219
    %p221 = scmp.ne.s32.totalorder %s210, %s211
    %p222 = scmp.eq.s32.totalorder %s22, 0
    %p223 = por %p221, %p222
    %p224 = scmp.ne.s32.totalorder %s210, %s211
    %p225 = scmp.eq.s32.totalorder %s23, 1
    %p226 = por %p224, %p225
    %p228 = scmp.ne.s32.totalorder %s211, %s227
    %p229 = scmp.eq.s32.totalorder %s23, 0
    %p230 = por %p228, %p229
    %s231 = ssub.s32 %s24, %s36
    %s232 = ssub.s32 %s25, %s32
    %s233 = sor.u32 %s231, %s232
    %p234 = scmp.eq.s32.totalorder %s233, 0
    %s236 = sadd.s32 %s235, 1
    %s237 = scalar_select %p234, %s235, %s236
    %p240 = pneg %p234
    %p241 = scmp.eq.s32.totalorder %s17, 1
    %p242 = por %p240, %p241
    %p243 = scmp.ne.s32.totalorder %s235, %s238
    %p244 = scmp.eq.s32.totalorder %s17, 0
    %p245 = por %p243, %p244
    %p246 = scmp.ne.s32.totalorder %s235, %s238
    %p247 = scmp.eq.s32.totalorder %s22, 1
    %p248 = por %p246, %p247
    %p249 = scmp.ne.s32.totalorder %s238, %s239
    %p250 = scmp.eq.s32.totalorder %s22, 0
    %p251 = por %p249, %p250
    %p252 = scmp.ne.s32.totalorder %s238, %s239
    %p253 = scmp.eq.s32.totalorder %s23, 1
    %p254 = por %p252, %p253
    %p256 = scmp.ne.s32.totalorder %s239, %s255
    %p257 = scmp.eq.s32.totalorder %s23, 0
    %p258 = por %p256, %p257
    %s259 = ssub.s32 %s24, %s36
    %s260 = ssub.s32 %s25, %s32
    %s261 = sor.u32 %s259, %s260
    %p262 = scmp.eq.s32.totalorder %s261, 0
    %s264 = sadd.s32 %s263, 1
    %s265 = scalar_select %p262, %s263, %s264
    %p268 = pneg %p262
    %p269 = scmp.eq.s32.totalorder %s17, 1
    %p270 = por %p268, %p269
    %p271 = scmp.ne.s32.totalorder %s263, %s266
    %p272 = scmp.eq.s32.totalorder %s17, 0
    %p273 = por %p271, %p272
    %p274 = scmp.ne.s32.totalorder %s263, %s266
    %p275 = scmp.eq.s32.totalorder %s22, 1
    %p276 = por %p274, %p275
    %p277 = scmp.ne.s32.totalorder %s266, %s267
    %p278 = scmp.eq.s32.totalorder %s22, 0
    %p279 = por %p277, %p278
    %p280 = scmp.ne.s32.totalorder %s266, %s267
    %p281 = scmp.eq.s32.totalorder %s23, 1
    %p282 = por %p280, %p281
    %p284 = scmp.ne.s32.totalorder %s267, %s283
    %p285 = scmp.eq.s32.totalorder %s23, 0
    %p286 = por %p284, %p285
    %s287 = ssub.s32 %s24, %s36
    %s288 = ssub.s32 %s25, %s32
    %s289 = sor.u32 %s287, %s288
    %p290 = scmp.eq.s32.totalorder %s289, 0
    %s292 = sadd.s32 %s291, 1
    %s293 = scalar_select %p290, %s291, %s292
    %p296 = pneg %p290
    %p297 = scmp.eq.s32.totalorder %s17, 1
    %p298 = por %p296, %p297
    %p299 = scmp.ne.s32.totalorder %s291, %s294
    %p300 = scmp.eq.s32.totalorder %s17, 0
    %p301 = por %p299, %p300
    %p302 = scmp.ne.s32.totalorder %s291, %s294
    %p303 = scmp.eq.s32.totalorder %s22, 1
    %p304 = por %p302, %p303
    %p305 = scmp.ne.s32.totalorder %s294, %s295
    %p306 = scmp.eq.s32.totalorder %s22, 0
    %p307 = por %p305, %p306
    %p308 = scmp.ne.s32.totalorder %s294, %s295
    %p309 = scmp.eq.s32.totalorder %s23, 1
    %p310 = por %p308, %p309
    %p312 = scmp.ne.s32.totalorder %s295, %s311
    %p313 = scmp.eq.s32.totalorder %s23, 0
    %p314 = por %p312, %p313
    %s315 = ssub.s32 %s24, %s36
    %s316 = ssub.s32 %s25, %s32
    %s317 = sor.u32 %s315, %s316
    %p318 = scmp.eq.s32.totalorder %s317, 0
    %s320 = sadd.s32 %s319, 1
    %s321 = scalar_select %p318, %s319, %s320
    %p324 = pneg %p318
    %p325 = scmp.eq.s32.totalorder %s17, 1
    %p326 = por %p324, %p325
    %p327 = scmp.ne.s32.totalorder %s319, %s322
    %p328 = scmp.eq.s32.totalorder %s17, 0
    %p329 = por %p327, %p328
    %p330 = scmp.ne.s32.totalorder %s319, %s322
    %p331 = scmp.eq.s32.totalorder %s22, 1
    %p332 = por %p330, %p331
    %p333 = scmp.ne.s32.totalorder %s322, %s323
    %p334 = scmp.eq.s32.totalorder %s22, 0
    %p335 = por %p333, %p334
    %p336 = scmp.ne.s32.totalorder %s322, %s323
    %p337 = scmp.eq.s32.totalorder %s23, 1
    %p338 = por %p336, %p337
    %p340 = scmp.ne.s32.totalorder %s323, %s339
    %p341 = scmp.eq.s32.totalorder %s23, 0
    %p342 = por %p340, %p341
    %p343 = scmp.le.s32.totalorder 1, %s17
    %p344 = scmp.lt.s32.totalorder %s17, 3
    %p345 = pnand %p343, %p344
    %p346 = pneg %p345
    // Predicated region
    $region9: #{forward.7} parent=5 // pred_check
      _
    $region10: #{forward.7} parent=5 // pred_check_branch
      %348 = sbr.rel (%p345) target = $region12
    $region11: #{forward.7} parent=5 // pred_region
      %s349 = ssub.s32 %s17, 1
      // Predicated region
      $region13: #{forward.7} parent=11 // pred_check
        %p350 = pneg %p223
      $region14: #{forward.7} parent=11 // pred_check_branch
        %352 = sbr.rel (%p350) target = $region16
      $region15: #{forward.7} parent=11 // pred_region
        %p353 = scmp.lt.s32.totalorder %s27, 0
        %s354 = scalar_select %p353, %s27, 0
        %s355 = smul.addr %s354, 8
        %s356 = scalar_lea.vmem %s6, %s355
      $region16: #{forward.7} parent=11 // pred_fallthru
        _
    $region12: #{forward.7} parent=5 // pred_fallthru
      _
    %p357 = scmp.lt.s32.totalorder %s17, 2
    // Predicated region
    $region17: #{forward.7} parent=5 // pred_check
      %p358 = pneg %p357
    $region18: #{forward.7} parent=5 // pred_check_branch
      %360 = sbr.rel (%p358) target = $region20
    $region19: #{forward.7} parent=5 // pred_region
      // Predicated region
      $region21: #{forward.7} parent=19 // pred_check
        %p361 = pneg %p51
      $region22: #{forward.7} parent=19 // pred_check_branch
        %363 = sbr.rel (%p361) target = $region24
      $region23: #{forward.7} parent=19 // pred_region
        %p364 = scmp.lt.s32.totalorder %s24, 1
        %s365 = scalar_select %p364, %s24, 1
        %p366 = scmp.lt.s32.totalorder %s25, 0
        %s367 = scalar_select %p366, %s25, 0
        %s368 = smul.addr %s365, 2
        %s369 = sadd.s32 %s367, %s368
        %s370 = smul.addr %s369, 8
        %s371 = scalar_lea.vmem %s0, %s370
      $region24: #{forward.7} parent=19 // pred_fallthru
        _
      // Predicated region
      $region25: #{forward.7} parent=19 // pred_check
        %p372 = pneg %p79
      $region26: #{forward.7} parent=19 // pred_check_branch
        %374 = sbr.rel (%p372) target = $region28
      $region27: #{forward.7} parent=19 // pred_region
        %p375 = scmp.lt.s32.totalorder %s24, 1
        %s376 = scalar_select %p375, %s24, 1
        %p377 = scmp.lt.s32.totalorder %s25, 0
        %s378 = scalar_select %p377, %s25, 0
        %s379 = smul.addr %s376, 2
        %s380 = sadd.s32 %s378, %s379
        %s381 = smul.addr %s380, 8
        %s382 = scalar_lea.vmem %s1, %s381
      $region28: #{forward.7} parent=19 // pred_fallthru
        _
      // Predicated region
      $region29: #{forward.7} parent=19 // pred_check
        %p383 = pneg %p107
      $region30: #{forward.7} parent=19 // pred_check_branch
        %385 = sbr.rel (%p383) target = $region32
      $region31: #{forward.7} parent=19 // pred_region
        %p386 = scmp.lt.s32.totalorder %s24, 1
        %s387 = scalar_select %p386, %s24, 1
        %p388 = scmp.lt.s32.totalorder %s25, 0
        %s389 = scalar_select %p388, %s25, 0
        %s390 = smul.addr %s387, 2
        %s391 = sadd.s32 %s389, %s390
        %s392 = smul.addr %s391, 8
        %s393 = scalar_lea.vmem %s2, %s392
      $region32: #{forward.7} parent=19 // pred_fallthru
        _
      // Predicated region
      $region33: #{forward.7} parent=19 // pred_check
        %p394 = pneg %p135
      $region34: #{forward.7} parent=19 // pred_check_branch
        %396 = sbr.rel (%p394) target = $region36
      $region35: #{forward.7} parent=19 // pred_region
        %p397 = scmp.lt.s32.totalorder %s24, 1
        %s398 = scalar_select %p397, %s24, 1
        %p399 = scmp.lt.s32.totalorder %s25, 0
        %s400 = scalar_select %p399, %s25, 0
        %s401 = smul.addr %s398, 2
        %s402 = sadd.s32 %s400, %s401
        %s403 = smul.addr %s402, 8
        %s404 = scalar_lea.vmem %s3, %s403
      $region36: #{forward.7} parent=19 // pred_fallthru
        _
      // Predicated region
      $region37: #{forward.7} parent=19 // pred_check
        %p405 = pneg %p163
      $region38: #{forward.7} parent=19 // pred_check_branch
        %407 = sbr.rel (%p405) target = $region40
      $region39: #{forward.7} parent=19 // pred_region
        %p408 = scmp.lt.s32.totalorder %s24, 1
        %s409 = scalar_select %p408, %s24, 1
        %p410 = scmp.lt.s32.totalorder %s25, 0
        %s411 = scalar_select %p410, %s25, 0
        %s412 = smul.addr %s409, 2
        %s413 = sadd.s32 %s411, %s412
        %s414 = smul.addr %s413, 8
        %s415 = scalar_lea.vmem %s4, %s414
      $region40: #{forward.7} parent=19 // pred_fallthru
        _
      // Predicated region
      $region41: #{forward.7} parent=19 // pred_check
        %p416 = pneg %p191
      $region42: #{forward.7} parent=19 // pred_check_branch
        %418 = sbr.rel (%p416) target = $region44
      $region43: #{forward.7} parent=19 // pred_region
        %p419 = scmp.lt.s32.totalorder %s24, 1
        %s420 = scalar_select %p419, %s24, 1
        %p421 = scmp.lt.s32.totalorder %s25, 0
        %s422 = scalar_select %p421, %s25, 0
        %s423 = smul.addr %s420, 2
        %s424 = sadd.s32 %s422, %s423
        %s425 = smul.addr %s424, 8
        %s426 = scalar_lea.vmem %s5, %s425
      $region44: #{forward.7} parent=19 // pred_fallthru
        _
    $region20: #{forward.7} parent=5 // pred_fallthru
      _
    %p427 = scmp.le.s32.totalorder 1, %s17
    %p428 = scmp.lt.s32.totalorder %s17, 3
    %p429 = pnand %p427, %p428
    %p430 = pneg %p429
    // Predicated region
    $region45: #{forward.7} parent=5 // pred_check
      _
    $region46: #{forward.7} parent=5 // pred_check_branch
      %432 = sbr.rel (%p429) target = $region48
    $region47: #{forward.7} parent=5 // pred_region
      %s433 = ssub.s32 %s17, 1
      %p434 = scmp.lt.s32.totalorder %s26, 1
      %s435 = scalar_select %p434, %s26, 1
      %p436 = scmp.lt.s32.totalorder %s27, 0
      %s437 = scalar_select %p436, %s27, 0
      %s438 = smul.addr %s435, 2
      %s439 = sadd.s32 %s437, %s438
      %s440 = smul.addr %s439, 8
      %s441 = scalar_lea.vmem %s0, %s440
      %p442 = pneg %p57
      %p443 = pneg %p54
      %p444 = scmp.lt.s32.totalorder %s26, 1
      %s445 = scalar_select %p444, %s26, 1
      %p446 = scmp.lt.s32.totalorder %s27, 0
      %s447 = scalar_select %p446, %s27, 0
      %s448 = smul.addr %s445, 2
      %s449 = sadd.s32 %s447, %s448
      %s450 = smul.addr %s449, 8
      %s451 = scalar_lea.vmem %s1, %s450
      %p452 = pneg %p85
      %p453 = pneg %p82
      %p454 = scmp.lt.s32.totalorder %s26, 1
      %s455 = scalar_select %p454, %s26, 1
      %p456 = scmp.lt.s32.totalorder %s27, 0
      %s457 = scalar_select %p456, %s27, 0
      %s458 = smul.addr %s455, 2
      %s459 = sadd.s32 %s457, %s458
      %s460 = smul.addr %s459, 8
      %s461 = scalar_lea.vmem %s2, %s460
      %p462 = pneg %p113
      %p463 = pneg %p110
      %p464 = scmp.lt.s32.totalorder %s26, 1
      %s465 = scalar_select %p464, %s26, 1
      %p466 = scmp.lt.s32.totalorder %s27, 0
      %s467 = scalar_select %p466, %s27, 0
      %s468 = smul.addr %s465, 2
      %s469 = sadd.s32 %s467, %s468
      %s470 = smul.addr %s469, 8
      %s471 = scalar_lea.vmem %s3, %s470
      %p472 = pneg %p141
      %p473 = pneg %p138
      %p474 = scmp.lt.s32.totalorder %s26, 1
      %s475 = scalar_select %p474, %s26, 1
      %p476 = scmp.lt.s32.totalorder %s27, 0
      %s477 = scalar_select %p476, %s27, 0
      %s478 = smul.addr %s475, 2
      %s479 = sadd.s32 %s477, %s478
      %s480 = smul.addr %s479, 8
      %s481 = scalar_lea.vmem %s4, %s480
      %p482 = pneg %p169
      %p483 = pneg %p166
      %p484 = scmp.lt.s32.totalorder %s26, 1
      %s485 = scalar_select %p484, %s26, 1
      %p486 = scmp.lt.s32.totalorder %s27, 0
      %s487 = scalar_select %p486, %s27, 0
      %s488 = smul.addr %s485, 2
      %s489 = sadd.s32 %s487, %s488
      %s490 = smul.addr %s489, 8
      %s491 = scalar_lea.vmem %s5, %s490
      %p492 = pneg %p197
      %p493 = pneg %p194
      %p494 = scmp.lt.s32.totalorder %s27, 0
      %s495 = scalar_select %p494, %s27, 0
      %s496 = smul.addr %s495, 8
      %s497 = scalar_lea.vmem %s6, %s496
      %p498 = pneg %p223
      %p499 = pneg %p220
      %p500 = pneg %p251
      %p501 = pneg %p248
      %p502 = scmp.lt.s32.totalorder %s26, 1
      %s503 = scalar_select %p502, %s26, 1
      %p504 = scmp.lt.s32.totalorder %s27, 0
      %s505 = scalar_select %p504, %s27, 0
      %s506 = smul.addr %s503, 2
      %s507 = sadd.s32 %s505, %s506
      %s508 = smul.addr %s507, 8
      %s509 = scalar_lea.vmem %s7, %s508
      %p510 = pneg %p279
      %p511 = pneg %p276
      %p512 = scmp.lt.s32.totalorder %s26, 1
      %s513 = scalar_select %p512, %s26, 1
      %p514 = scmp.lt.s32.totalorder %s27, 0
      %s515 = scalar_select %p514, %s27, 0
      %s516 = smul.addr %s513, 2
      %s517 = sadd.s32 %s515, %s516
      %s518 = smul.addr %s517, 8
      %s519 = scalar_lea.vmem %s8, %s518
      %p520 = pneg %p307
      %p521 = pneg %p304
      %s522 = smul.u32 4, %s26
      %p523 = scmp.lt.s32.totalorder %s522, 7
      %s524 = scalar_select %p523, %s522, 7
      %p525 = scmp.lt.s32.totalorder %s27, 0
      %s526 = scalar_select %p525, %s27, 0
      %s527 = smul.addr %s524, 2
      %s528 = sadd.s32 %s526, %s527
      %s529 = smul.addr %s528, 8
      %s530 = scalar_lea.vmem %s9, %s529
      %p531 = pneg %p335
      %p532 = pneg %p332
      %s533 = smul.u32 4, %s26
      %p534 = scmp.lt.s32.totalorder %s533, 7
      %s535 = scalar_select %p534, %s533, 7
      %p536 = scmp.lt.s32.totalorder %s27, 0
      %s537 = scalar_select %p536, %s27, 0
      %s538 = smul.addr %s535, 2
      %s539 = sadd.s32 %s537, %s538
      %s540 = smul.addr %s539, 8
      %s541 = scalar_lea.vmem %s10, %s540
      %p542 = scmp.lt.s32.totalorder %s26, 1
      %s543 = scalar_select %p542, %s26, 1
      %p544 = scmp.lt.s32.totalorder %s27, 0
      %s545 = scalar_select %p544, %s27, 0
      %s546 = smul.addr %s543, 2
      %s547 = sadd.s32 %s545, %s546
      %s548 = smul.addr %s547, 8
      %s549 = scalar_lea.vmem %s0, %s548
      %p550 = scmp.lt.s32.totalorder %s26, 1
      %s551 = scalar_select %p550, %s26, 1
      %p552 = scmp.lt.s32.totalorder %s27, 0
      %s553 = scalar_select %p552, %s27, 0
      %s554 = smul.addr %s551, 2
      %s555 = sadd.s32 %s553, %s554
      %s556 = smul.addr %s555, 8
      %s557 = scalar_lea.vmem %s1, %s556
      %p558 = scmp.lt.s32.totalorder %s26, 1
      %s559 = scalar_select %p558, %s26, 1
      %p560 = scmp.lt.s32.totalorder %s27, 0
      %s561 = scalar_select %p560, %s27, 0
      %s562 = smul.addr %s559, 2
      %s563 = sadd.s32 %s561, %s562
      %s564 = smul.addr %s563, 8
      %s565 = scalar_lea.vmem %s2, %s564
      %p566 = scmp.lt.s32.totalorder %s26, 1
      %s567 = scalar_select %p566, %s26, 1
      %p568 = scmp.lt.s32.totalorder %s27, 0
      %s569 = scalar_select %p568, %s27, 0
      %s570 = smul.addr %s567, 2
      %s571 = sadd.s32 %s569, %s570
      %s572 = smul.addr %s571, 8
      %s573 = scalar_lea.vmem %s3, %s572
      %p574 = scmp.lt.s32.totalorder %s26, 1
      %s575 = scalar_select %p574, %s26, 1
      %p576 = scmp.lt.s32.totalorder %s27, 0
      %s577 = scalar_select %p576, %s27, 0
      %s578 = smul.addr %s575, 2
      %s579 = sadd.s32 %s577, %s578
      %s580 = smul.addr %s579, 8
      %s581 = scalar_lea.vmem %s4, %s580
      %p582 = scmp.lt.s32.totalorder %s26, 1
      %s583 = scalar_select %p582, %s26, 1
      %p584 = scmp.lt.s32.totalorder %s27, 0
      %s585 = scalar_select %p584, %s27, 0
      %s586 = smul.addr %s583, 2
      %s587 = sadd.s32 %s585, %s586
      %s588 = smul.addr %s587, 8
      %s589 = scalar_lea.vmem %s5, %s588
      %p590 = scmp.lt.s32.totalorder %s27, 0
      %s591 = scalar_select %p590, %s27, 0
      %s592 = smul.addr %s591, 8
      %s593 = scalar_lea.vmem %s6, %s592
      %p594 = scmp.lt.s32.totalorder %s26, 1
      %s595 = scalar_select %p594, %s26, 1
      %p596 = scmp.lt.s32.totalorder %s27, 0
      %s597 = scalar_select %p596, %s27, 0
      %s598 = smul.addr %s595, 2
      %s599 = sadd.s32 %s597, %s598
      %s600 = smul.addr %s599, 8
      %s601 = scalar_lea.vmem %s7, %s600
      %p602 = scmp.lt.s32.totalorder %s26, 1
      %s603 = scalar_select %p602, %s26, 1
      %p604 = scmp.lt.s32.totalorder %s27, 0
      %s605 = scalar_select %p604, %s27, 0
      %s606 = smul.addr %s603, 2
      %s607 = sadd.s32 %s605, %s606
      %s608 = smul.addr %s607, 8
      %s609 = scalar_lea.vmem %s8, %s608
      %s610 = smul.u32 4, %s26
      %p611 = scmp.lt.s32.totalorder %s610, 7
      %s612 = scalar_select %p611, %s610, 7
      %p613 = scmp.lt.s32.totalorder %s27, 0
      %s614 = scalar_select %p613, %s27, 0
      %s615 = smul.addr %s612, 2
      %s616 = sadd.s32 %s614, %s615
      %s617 = smul.addr %s616, 8
      %s618 = scalar_lea.vmem %s9, %s617
      %s619 = smul.u32 4, %s26
      %s620 = smul.u32 4, %s26
      %p621 = scmp.lt.s32.totalorder %s620, 7
      %s622 = scalar_select %p621, %s620, 7
      %p623 = scmp.lt.s32.totalorder %s27, 0
      %s624 = scalar_select %p623, %s27, 0
      %s625 = smul.addr %s622, 2
      %s626 = sadd.s32 %s624, %s625
      %s627 = smul.addr %s626, 8
      %s628 = scalar_lea.vmem %s10, %s627
      %s629 = smul.u32 4, %s26
      %s630 = scalar_lea.vmem %s593, 64
      %v631 = vld [vmem:[%s630] sm:$0xff]
      %v632 = vld [vmem:[%s630 + $0x8] sm:$0x1]
      %s633 = scalar_lea.vmem %s593, 80
      %v634 = vld [vmem:[%s633] sm:$0xff]
      %v635 = vld [vmem:[%s633 + $0x8] sm:$0x1]
      %s636 = scalar_lea.vmem %s593, 112
      %v637 = vld [vmem:[%s636] sm:$0xff]
      %v638 = vld [vmem:[%s636 + $0x8] sm:$0x1]
      %s639 = scalar_lea.vmem %s593, 128
      %v640 = vld [vmem:[%s639] sm:$0xff]
      %v641 = vld [vmem:[%s639 + $0x8] sm:$0x1]
      %v642 = vld [vmem:[%s549] sm:$0xff]
      %v643 = vld [vmem:[%s549 + $0x8] sm:$0x1]
      %v644 = vmul.f32 %v642, %v631
      %v645 = vmul.f32 %v643, %v632
      %v646 = vld [vmem:[%s581] sm:$0xff]
      %v647 = vld [vmem:[%s581 + $0x8] sm:$0x1]
      %v648 = vmul.f32 %v637, %v646
      %v649 = vmul.f32 %v638, %v647
      %v650 = vadd.f32 %v644, %v648
      %v651 = vadd.f32 %v645, %v649
      %v652 = vld [vmem:[%s565] sm:$0xff]
      %v653 = vld [vmem:[%s565 + $0x8] sm:$0x1]
      %v654 = vmul.f32 %v640, %v652
      %v655 = vmul.f32 %v641, %v653
      %v656 = vadd.f32 %v650, %v654
      %v657 = vadd.f32 %v651, %v655
      %v658 = vmul.f32 %v656, %v634
      %v659 = vmul.f32 %v657, %v635
      %v660 = vld [vmem:[%s557] sm:$0xff]
      %v661 = vld [vmem:[%s557 + $0x8] sm:$0x1]
      %v662 = vmul.f32 %v660, %v631
      %v663 = vmul.f32 %v661, %v632
      %v664 = vld [vmem:[%s589] sm:$0xff]
      %v665 = vld [vmem:[%s589 + $0x8] sm:$0x1]
      %v666 = vmul.f32 %v637, %v664
      %v667 = vmul.f32 %v638, %v665
      %v668 = vadd.f32 %v662, %v666
      %v669 = vadd.f32 %v663, %v667
      %v670 = vld [vmem:[%s573] sm:$0xff]
      %v671 = vld [vmem:[%s573 + $0x8] sm:$0x1]
      %v672 = vmul.f32 %v640, %v670
      %v673 = vmul.f32 %v641, %v671
      %v674 = vadd.f32 %v668, %v672
      %v675 = vadd.f32 %v669, %v673
      %v676 = vmul.f32 %v674, %v634
      %v677 = vmul.f32 %v675, %v635
      %vm678 = vcmask 130048
      %679 = vst.msk [vmem:[%s601] sm:$0xff] %vm678, %v658
      %vm680 = vcmask 122880
      %681 = vst.msk [vmem:[%s601 + $0x8] sm:$0x1] %vm680, %v659
      %682 = vst.msk [vmem:[%s609] sm:$0xff] %vm678, %v676
      %683 = vst.msk [vmem:[%s609 + $0x8] sm:$0x1] %vm680, %v677
      %v684 = vld [vmem:[%s593] sm:$0xff]
      %v685 = vld [vmem:[%s593 + $0x8] sm:$0x1]
      %v686 = vsub.f32 0.0, %v684
      %v687 = vsub.f32 0.0, %v685
      %v688 = vmul.f32 %v686, %v676
      %v689 = vmul.f32 %v687, %v677
      %690 = vst.msk [vmem:[%s618] sm:$0xff] %vm678, %v688
      %691 = vst.msk [vmem:[%s618 + $0x8] sm:$0x1] %vm680, %v689
      %v692 = vmul.f32 %v684, %v658
      %v693 = vmul.f32 %v685, %v659
      %694 = vst.msk [vmem:[%s628] sm:$0xff] %vm678, %v692
      %695 = vst.msk [vmem:[%s628 + $0x8] sm:$0x1] %vm680, %v693
      %s696 = scalar_lea.vmem %s593, 16
      %v697 = vld [vmem:[%s696] sm:$0xff]
      %v698 = vld [vmem:[%s696 + $0x8] sm:$0x1]
      %v699 = vsub.f32 0.0, %v697
      %v700 = vsub.f32 0.0, %v698
      %v701 = vmul.f32 %v699, %v676
      %v702 = vmul.f32 %v700, %v677
      %s703 = scalar_lea.vmem %s618, 16
      %704 = vst.msk [vmem:[%s703] sm:$0xff] %vm678, %v701
      %705 = vst.msk [vmem:[%s703 + $0x8] sm:$0x1] %vm680, %v702
      %v706 = vmul.f32 %v697, %v658
      %v707 = vmul.f32 %v698, %v659
      %s708 = scalar_lea.vmem %s628, 16
      %709 = vst.msk [vmem:[%s708] sm:$0xff] %vm678, %v706
      %710 = vst.msk [vmem:[%s708 + $0x8] sm:$0x1] %vm680, %v707
      %s711 = scalar_lea.vmem %s593, 32
      %v712 = vld [vmem:[%s711] sm:$0xff]
      %v713 = vld [vmem:[%s711 + $0x8] sm:$0x1]
      %v714 = vsub.f32 0.0, %v712
      %v715 = vsub.f32 0.0, %v713
      %v716 = vmul.f32 %v714, %v676
      %v717 = vmul.f32 %v715, %v677
      %s718 = scalar_lea.vmem %s618, 32
      %719 = vst.msk [vmem:[%s718] sm:$0xff] %vm678, %v716
      %720 = vst.msk [vmem:[%s718 + $0x8] sm:$0x1] %vm680, %v717
      %v721 = vmul.f32 %v712, %v658
      %v722 = vmul.f32 %v713, %v659
      %s723 = scalar_lea.vmem %s628, 32
      %724 = vst.msk [vmem:[%s723] sm:$0xff] %vm678, %v721
      %725 = vst.msk [vmem:[%s723 + $0x8] sm:$0x1] %vm680, %v722
      %s726 = scalar_lea.vmem %s593, 48
      %v727 = vld [vmem:[%s726] sm:$0xff]
      %v728 = vld [vmem:[%s726 + $0x8] sm:$0x1]
      %v729 = vsub.f32 0.0, %v727
      %v730 = vsub.f32 0.0, %v728
      %v731 = vmul.f32 %v729, %v676
      %v732 = vmul.f32 %v730, %v677
      %s733 = scalar_lea.vmem %s618, 48
      %734 = vst.msk [vmem:[%s733] sm:$0xff] %vm678, %v731
      %735 = vst.msk [vmem:[%s733 + $0x8] sm:$0x1] %vm680, %v732
      %v736 = vmul.f32 %v727, %v658
      %v737 = vmul.f32 %v728, %v659
      %s738 = scalar_lea.vmem %s628, 48
      %739 = vst.msk [vmem:[%s738] sm:$0xff] %vm678, %v736
      %740 = vst.msk [vmem:[%s738 + $0x8] sm:$0x1] %vm680, %v737
      %p741 = scmp.lt.s32.totalorder %s26, 1
      %s742 = scalar_select %p741, %s26, 1
      %p743 = scmp.lt.s32.totalorder %s27, 0
      %s744 = scalar_select %p743, %s27, 0
      %s745 = smul.addr %s742, 2
      %s746 = sadd.s32 %s744, %s745
      %s747 = smul.addr %s746, 8
      %s748 = scalar_lea.vmem %s7, %s747
      %p749 = scmp.lt.s32.totalorder %s26, 1
      %s750 = scalar_select %p749, %s26, 1
      %p751 = scmp.lt.s32.totalorder %s27, 0
      %s752 = scalar_select %p751, %s27, 0
      %s753 = smul.addr %s750, 2
      %s754 = sadd.s32 %s752, %s753
      %s755 = smul.addr %s754, 8
      %s756 = scalar_lea.vmem %s8, %s755
      %s757 = smul.u32 4, %s26
      %p758 = scmp.lt.s32.totalorder %s757, 7
      %s759 = scalar_select %p758, %s757, 7
      %p760 = scmp.lt.s32.totalorder %s27, 0
      %s761 = scalar_select %p760, %s27, 0
      %s762 = smul.addr %s759, 2
      %s763 = sadd.s32 %s761, %s762
      %s764 = smul.addr %s763, 8
      %s765 = scalar_lea.vmem %s9, %s764
      %s766 = smul.u32 4, %s26
      %p767 = scmp.lt.s32.totalorder %s766, 7
      %s768 = scalar_select %p767, %s766, 7
      %p769 = scmp.lt.s32.totalorder %s27, 0
      %s770 = scalar_select %p769, %s27, 0
      %s771 = smul.addr %s768, 2
      %s772 = sadd.s32 %s770, %s771
      %s773 = smul.addr %s772, 8
      %s774 = scalar_lea.vmem %s10, %s773
      // Predicated region
      $region49: #{forward.7} parent=47 // pred_check
        %p775 = pneg %p248
      $region50: #{forward.7} parent=47 // pred_check_branch
        %777 = sbr.rel (%p775) target = $region52
      $region51: #{forward.7} parent=47 // pred_region
        _
      $region52: #{forward.7} parent=47 // pred_fallthru
        _
      // Predicated region
      $region53: #{forward.7} parent=47 // pred_check
        %p778 = pneg %p276
      $region54: #{forward.7} parent=47 // pred_check_branch
        %780 = sbr.rel (%p778) target = $region56
      $region55: #{forward.7} parent=47 // pred_region
        _
      $region56: #{forward.7} parent=47 // pred_fallthru
        _
      // Predicated region
      $region57: #{forward.7} parent=47 // pred_check
        %p781 = pneg %p304
      $region58: #{forward.7} parent=47 // pred_check_branch
        %783 = sbr.rel (%p781) target = $region60
      $region59: #{forward.7} parent=47 // pred_region
        %s784 = smul.u32 4, %s26
      $region60: #{forward.7} parent=47 // pred_fallthru
        _
      // Predicated region
      $region61: #{forward.7} parent=47 // pred_check
        %p785 = pneg %p332
      $region62: #{forward.7} parent=47 // pred_check_branch
        %787 = sbr.rel (%p785) target = $region64
      $region63: #{forward.7} parent=47 // pred_region
        %s788 = smul.u32 4, %s26
      $region64: #{forward.7} parent=47 // pred_fallthru
        _
    $region48: #{forward.7} parent=5 // pred_fallthru
      _
    %p789 = scmp.le.s32.totalorder 2, %s17
    // Predicated region
    $region65: #{forward.7} parent=5 // pred_check
      %p790 = pneg %p789
    $region66: #{forward.7} parent=5 // pred_check_branch
      %792 = sbr.rel (%p790) target = $region68
    $region67: #{forward.7} parent=5 // pred_region
      %s793 = ssub.s32 %s17, 2
      // Predicated region
      $region69: #{forward.7} parent=67 // pred_check
        %p794 = pneg %p254
      $region70: #{forward.7} parent=67 // pred_check_branch
        %796 = sbr.rel (%p794) target = $region72
      $region71: #{forward.7} parent=67 // pred_region
        %p797 = scmp.lt.s32.totalorder %s28, 1
        %s798 = scalar_select %p797, %s28, 1
        %p799 = scmp.lt.s32.totalorder %s29, 0
        %s800 = scalar_select %p799, %s29, 0
        %s801 = smul.addr %s798, 2
        %s802 = sadd.s32 %s800, %s801
        %s803 = smul.addr %s802, 8
        %s804 = scalar_lea.vmem %s7, %s803
      $region72: #{forward.7} parent=67 // pred_fallthru
        _
      // Predicated region
      $region73: #{forward.7} parent=67 // pred_check
        %p805 = pneg %p282
      $region74: #{forward.7} parent=67 // pred_check_branch
        %807 = sbr.rel (%p805) target = $region76
      $region75: #{forward.7} parent=67 // pred_region
        %p808 = scmp.lt.s32.totalorder %s28, 1
        %s809 = scalar_select %p808, %s28, 1
        %p810 = scmp.lt.s32.totalorder %s29, 0
        %s811 = scalar_select %p810, %s29, 0
        %s812 = smul.addr %s809, 2
        %s813 = sadd.s32 %s811, %s812
        %s814 = smul.addr %s813, 8
        %s815 = scalar_lea.vmem %s8, %s814
      $region76: #{forward.7} parent=67 // pred_fallthru
        _
      // Predicated region
      $region77: #{forward.7} parent=67 // pred_check
        %p816 = pneg %p310
      $region78: #{forward.7} parent=67 // pred_check_branch
        %818 = sbr.rel (%p816) target = $region80
      $region79: #{forward.7} parent=67 // pred_region
        %s819 = smul.u32 4, %s28
        %p820 = scmp.lt.s32.totalorder %s819, 7
        %s821 = scalar_select %p820, %s819, 7
        %p822 = scmp.lt.s32.totalorder %s29, 0
        %s823 = scalar_select %p822, %s29, 0
        %s824 = smul.addr %s821, 2
        %s825 = sadd.s32 %s823, %s824
        %s826 = smul.addr %s825, 8
        %s827 = scalar_lea.vmem %s9, %s826
      $region80: #{forward.7} parent=67 // pred_fallthru
        _
      // Predicated region
      $region81: #{forward.7} parent=67 // pred_check
        %p828 = pneg %p338
      $region82: #{forward.7} parent=67 // pred_check_branch
        %830 = sbr.rel (%p828) target = $region84
      $region83: #{forward.7} parent=67 // pred_region
        %s831 = smul.u32 4, %s28
        %p832 = scmp.lt.s32.totalorder %s831, 7
        %s833 = scalar_select %p832, %s831, 7
        %p834 = scmp.lt.s32.totalorder %s29, 0
        %s835 = scalar_select %p834, %s29, 0
        %s836 = smul.addr %s833, 2
        %s837 = sadd.s32 %s835, %s836
        %s838 = smul.addr %s837, 8
        %s839 = scalar_lea.vmem %s10, %s838
      $region84: #{forward.7} parent=67 // pred_fallthru
        _
    $region68: #{forward.7} parent=5 // pred_fallthru
      _
  $region6: #{forward.7} parent=0 // loop_footer
    %s21 = sadd.s32 1, %s17
  $region7: #{forward.7} parent=0 // loop_footer_branch
    %16 = sbr.rel target = $region3
  $region8: #{forward.7} parent=0 // loop_exit
    _

</llo_original>
